<compile_context>
chip_gen: v5e
topology: v5e:2x2
jax: 0.10.0
libtpu: 0.0.40
codegen_flags: <defaults>
</compile_context>

<pallas_src>
import functools

import jax
import jax.numpy as jnp
from jax.experimental import pallas as pl
from jax.experimental.pallas import tpu as pltpu


_SQRT_HALF = 0.7071067811865476


def _gelu_exact(x):
    # PyTorch nn.GELU() default: exact erf-based GELU (computed in f32).
    return 0.5 * x * (1.0 + jax.lax.erf(x * jnp.float32(_SQRT_HALF)))


# ---------------------------------------------------------------------------
# Fused kernels: each processes one row tile and chains two matmuls on-chip.
# ---------------------------------------------------------------------------
def _stage_a_kernel(x_ref, w1_ref, b1_ref, t1_ref, tb1_ref, o_ref):
    # Conv2d(k=1) -> GELU -> ConvTranspose2d(k=4,s=4) -> GELU.
    h = jnp.dot(x_ref[...], w1_ref[...], preferred_element_type=jnp.float32)
    h = _gelu_exact(h + b1_ref[...])
    y = jnp.dot(h.astype(t1_ref.dtype), t1_ref[...],
                preferred_element_type=jnp.float32)
    y = _gelu_exact(y + tb1_ref[...])
    o_ref[...] = y.astype(o_ref.dtype)


def _stage_b_kernel(x_ref, t2_ref, tb2_ref, w2_ref, b2_ref, o_ref):
    # ConvTranspose2d(k=4,s=4) -> GELU -> final Conv2d(k=1) fused via a
    # block-diagonal weight (one block per 4x4 sub-pixel).
    h = jnp.dot(x_ref[...], t2_ref[...], preferred_element_type=jnp.float32)
    h = _gelu_exact(h + tb2_ref[...])
    y = jnp.dot(h.astype(w2_ref.dtype), w2_ref[...],
                preferred_element_type=jnp.float32)
    o_ref[...] = (y + b2_ref[...]).astype(o_ref.dtype)


def _fused_two_matmul(kernel, x, w_a, b_a, w_b, b_b, *, tm, out_dtype):
    """Run `kernel` over row tiles of x: y = f(x @ w_a + b_a) @ w_b + b_b."""
    m, k = x.shape
    n_a = w_a.shape[1]
    n_b = w_b.shape[1]
    assert m % tm == 0, (m, tm)
    return pl.pallas_call(
        kernel,
        out_shape=jax.ShapeDtypeStruct((m, n_b), out_dtype),
        grid_spec=pltpu.PrefetchScalarGridSpec(
            num_scalar_prefetch=0,
            grid=(m // tm,),
            in_specs=[
                pl.BlockSpec((tm, k), lambda i: (i, 0)),     # activation row tile
                pl.BlockSpec((k, n_a), lambda i: (0, 0)),    # weight A (resident)
                pl.BlockSpec((1, n_a), lambda i: (0, 0)),    # bias A
                pl.BlockSpec((n_a, n_b), lambda i: (0, 0)),  # weight B (resident)
                pl.BlockSpec((1, n_b), lambda i: (0, 0)),    # bias B
            ],
            out_specs=pl.BlockSpec((tm, n_b), lambda i: (i, 0)),
        ),
        compiler_params=pltpu.CompilerParams(
            dimension_semantics=("parallel",)),
    )(x, w_a, b_a, w_b, b_b)


# ---------------------------------------------------------------------------
# Row-tile planning (single up-front pad, larger tiles for larger problems).
# ---------------------------------------------------------------------------
_TM1_CAP = 512     # row tile for stage A  (layer-1 pixels)
_TM2_CAP = 2048    # row tile for stage B  (layer-2 pixels; = 16 * 128)


def _round_up(x, m):
    return ((x + m - 1) // m) * m


def _plan_rows(m1):
    """Pick (tm1, padded_m1, tm2) so both stages tile evenly (rows_B = 16*rows_A)."""
    if 16 * _round_up(m1, 8) <= _TM2_CAP:
        m1p = _round_up(m1, 8)
        tm1 = m1p
        tm2 = 16 * m1p
    else:
        tm1 = min(_TM1_CAP, _round_up(m1, 128))
        m1p = _round_up(m1, max(tm1, _TM2_CAP // 16))
        tm2 = _TM2_CAP
    assert m1p % tm1 == 0 and (16 * m1p) % tm2 == 0
    return tm1, m1p, tm2


# ---------------------------------------------------------------------------
# Parameter construction (deterministic, mirrors the PyTorch __init__ shapes)
# ---------------------------------------------------------------------------
def init_params(key, encoder_channels, decoder_embed_dim, out_channels=1):
    cin = encoder_channels[-1]
    d = decoder_embed_dim
    co1, co2 = d // 2, d // 4
    ks = jax.random.split(key, 8)
    scale = 0.05

    # PyTorch-shaped weights.
    w1 = scale * jax.random.normal(ks[0], (d, cin, 1, 1), jnp.float32)        # Conv2d
    b1 = scale * jax.random.normal(ks[1], (d,), jnp.float32)
    t1 = scale * jax.random.normal(ks[2], (d, co1, 4, 4), jnp.float32)        # ConvT (ci,co,kh,kw)
    tb1 = scale * jax.random.normal(ks[3], (co1,), jnp.float32)
    t2 = scale * jax.random.normal(ks[4], (co1, co2, 4, 4), jnp.float32)      # ConvT (ci,co,kh,kw)
    tb2 = scale * jax.random.normal(ks[5], (co2,), jnp.float32)
    w2 = scale * jax.random.normal(ks[6], (out_channels, co2, 1, 1), jnp.float32)  # Conv2d
    b2 = scale * jax.random.normal(ks[7], (out_channels,), jnp.float32)

    w2m = w2.reshape(out_channels, co2).T                                     # (co2, out)
    params = {
        "w1m": w1.reshape(d, cin).T,                                          # (cin, d)
        "b1": b1,
        # (ci,co,kh,kw) -> (ci,kh,kw,co) -> (ci, 16*co); column order (kh,kw,co)
        "t1m": jnp.transpose(t1, (0, 2, 3, 1)).reshape(d, 16 * co1),
        "t1b": jnp.tile(tb1, 16),
        "t2m": jnp.transpose(t2, (0, 2, 3, 1)).reshape(co1, 16 * co2),
        "t2b": jnp.tile(tb2, 16),
        "w2m": w2m,
        "b2": b2,
        # Final 1x1 conv folded into stage B as block-diagonal weight/bias so it
        # never runs as a separate kernel with a 1-lane output.
        "w2blk": jnp.kron(jnp.eye(16, dtype=jnp.float32), w2m),               # (16*co2, 16*out)
        "b2blk": jnp.tile(b2, 16),
    }
    return params


# ---------------------------------------------------------------------------
# Forward pass (Pallas) and a pure-jnp reference
# ---------------------------------------------------------------------------
def mae_decoder_forward(features_nchw, params, *, compute_dtype=jnp.float32):
    cin, d = params["w1m"].shape
    co1 = params["t2m"].shape[0]
    co2, out_ch = params["w2m"].shape
    cd = compute_dtype
    f32 = jnp.float32

    x = jnp.transpose(features_nchw, (0, 2, 3, 1))            # NCHW -> NHWC
    n, h, w, cin2 = x.shape
    assert cin2 == cin
    m1 = n * h * w
    tm1, m1p, tm2 = _plan_rows(m1)

    xr = x.reshape(m1, cin).astype(cd)
    if m1p != m1:
        xr = jnp.pad(xr, ((0, m1p - m1), (0, 0)))             # single cheap pad

    # Stage A: Conv1x1 -> GELU -> ConvT1 -> GELU.  Output stays in block layout
    # (pixel, kh1*4+kw1, co1) flattened to (m1p, 16*co1): no HBM scatter pass.
    y_a = _fused_two_matmul(
        _stage_a_kernel, xr,
        params["w1m"].astype(cd), params["b1"].reshape(1, d).astype(f32),
        params["t1m"].astype(cd), params["t1b"].reshape(1, 16 * co1).astype(f32),
        tm=tm1, out_dtype=cd)

    # Free contiguous reshape: rows become layer-2 pixels (p*16 + kh1*4 + kw1).
    x_b = y_a.reshape(m1p * 16, co1)

    # Stage B: ConvT2 -> GELU -> final Conv1x1 (block-diagonal, fused).
    y_b = _fused_two_matmul(
        _stage_b_kernel, x_b,
        params["t2m"].astype(cd), params["t2b"].reshape(1, 16 * co2).astype(f32),
        params["w2blk"].astype(cd), params["b2blk"].reshape(1, 16 * out_ch).astype(f32),
        tm=tm2, out_dtype=f32)

    y_b = y_b[: 16 * m1]                                      # drop padded rows

    # Single unscramble, folded with the required NHWC->NCHW transpose:
    # rows = (n, h, w, kh1, kw1), cols = (kh2, kw2, oc);
    # H = h*16 + kh1*4 + kh2,  W = w*16 + kw1*4 + kw2.
    y = y_b.reshape(n, h, w, 4, 4, 4, 4, out_ch)
    y = jnp.transpose(y, (0, 7, 1, 3, 5, 2, 4, 6))
    return y.reshape(n, out_ch, 16 * h, 16 * w)


def _upsample_block_reshape(y_cols, n, h, w, co):
    # y_cols: (n*h*w, 16*co) with columns ordered (kh, kw, co)
    y = y_cols.reshape(n, h, w, 4, 4, co)
    y = jnp.transpose(y, (0, 1, 3, 2, 4, 5))                  # (n, h, 4, w, 4, co)
    return y.reshape(n, 4 * h, 4 * w, co)


def mae_decoder_forward_ref(features_nchw, params):
    """Pure-jnp f32 reference (layer by layer, explicit scatter) for parity."""
    def mm(x, wm, b, act):
        y = jnp.dot(x, wm) + b
        return _gelu_exact(y) if act else y

    cin, d = params["w1m"].shape
    co1 = params["t2m"].shape[0]
    co2, out_ch = params["w2m"].shape
    x = jnp.transpose(features_nchw, (0, 2, 3, 1))
    n, h, w, _ = x.shape
    y = mm(x.reshape(n * h * w, cin), params["w1m"], params["b1"], True)
    y = mm(y, params["t1m"], params["t1b"], True)
    y = _upsample_block_reshape(y, n, h, w, co1)
    h, w = 4 * h, 4 * w
    y = mm(y.reshape(n * h * w, co1), params["t2m"], params["t2b"], True)
    y = _upsample_block_reshape(y, n, h, w, co2)
    h, w = 4 * h, 4 * w
    y = mm(y.reshape(n * h * w, co2), params["w2m"], params["b2"], False)
    return jnp.transpose(y.reshape(n, h, w, out_ch), (0, 3, 1, 2))


# ---------------------------------------------------------------------------
if __name__ == "__main__":
    key = jax.random.PRNGKey(0)
    k_feat, k_params = jax.random.split(key)

    encoder_channels = (16, 32)      # encoder_channels[-1] = 32 input channels
    decoder_embed_dim = 32
    out_channels = 1

    # Small deepest-level feature map: (N=2, C=32, H=4, W=4) in NCHW.
    features = jax.random.normal(k_feat, (2, encoder_channels[-1], 4, 4),
                                 dtype=jnp.float32)
    params = init_params(k_params, encoder_channels, decoder_embed_dim,
                         out_channels)

    fwd_f32 = jax.jit(functools.partial(mae_decoder_forward,
                                        compute_dtype=jnp.float32))
    fwd_bf16 = jax.jit(functools.partial(mae_decoder_forward,
                                         compute_dtype=jnp.bfloat16))

    out = jax.block_until_ready(fwd_f32(features, params))
    ref = jax.block_until_ready(mae_decoder_forward_ref(features, params))

    assert out.shape == (2, out_channels, 64, 64), out.shape
    assert jnp.allclose(out, ref, atol=1e-4, rtol=1e-4), \
        float(jnp.max(jnp.abs(out - ref)))

    # Reduced-precision path: bf16 activations/weights, f32 accumulation.
    out_bf16 = jax.block_until_ready(fwd_bf16(features, params))
    assert out_bf16.shape == (2, out_channels, 64, 64), out_bf16.shape
    assert float(jnp.max(jnp.abs(out_bf16 - ref))) < 5e-2

    print("KERNEL_OK")
</pallas_src>

<mosaic_0001>
module attributes {stable_mosaic.version = 11 : i64} {
  func.func @_stage_b_kernel(%arg0: i32, %arg1: memref<512x16xf32, #tpu.memory_space<vmem>>, %arg2: memref<16x128xf32, #tpu.memory_space<vmem>>, %arg3: memref<1x128xf32, #tpu.memory_space<vmem>>, %arg4: memref<128x16xf32, #tpu.memory_space<vmem>>, %arg5: memref<1x16xf32, #tpu.memory_space<vmem>>, %arg6: memref<512x16xf32, #tpu.memory_space<vmem>>) attributes {dimension_semantics = [#tpu.dimension_semantics<parallel>], iteration_bounds = array<i64: 1>, scalar_prefetch = 0 : i64, scratch_operands = 0 : i64, tpu.core_type = #tpu.core_type<tc>, window_params = [{transform_indices = @transform_0, window_bounds = array<i64: 512, 16>}, {pipeline_mode = #tpu.pipeline_mode<synchronous>, transform_indices = @transform_1, window_bounds = array<i64: 16, 128>}, {pipeline_mode = #tpu.pipeline_mode<synchronous>, transform_indices = @transform_2, window_bounds = array<i64: 1, 128>}, {pipeline_mode = #tpu.pipeline_mode<synchronous>, transform_indices = @transform_3, window_bounds = array<i64: 128, 16>}, {pipeline_mode = #tpu.pipeline_mode<synchronous>, transform_indices = @transform_4, window_bounds = array<i64: 1, 16>}, {transform_indices = @transform_5, window_bounds = array<i64: 512, 16>}]} {
    %c0 = arith.constant 0 : index
    %c0_0 = arith.constant 0 : index
    %0 = vector.load %arg1[%c0, %c0_0] : memref<512x16xf32, #tpu.memory_space<vmem>>, vector<512x16xf32>
    %c0_1 = arith.constant 0 : index
    %c0_2 = arith.constant 0 : index
    %1 = vector.load %arg2[%c0_1, %c0_2] : memref<16x128xf32, #tpu.memory_space<vmem>>, vector<16x128xf32>
    %cst = arith.constant dense<0.000000e+00> : vector<512x128xf32>
    %2 = tpu.matmul %0, %1, %cst {dimension_numbers = #tpu.dot_dimension_numbers<[1], [0], [0], [1], [0, 0, 1, 1], [], []>} : vector<512x16xf32>, vector<16x128xf32>, vector<512x128xf32> -> vector<512x128xf32>
    %c0_3 = arith.constant 0 : index
    %c0_4 = arith.constant 0 : index
    %3 = vector.load %arg3[%c0_3, %c0_4] : memref<1x128xf32, #tpu.memory_space<vmem>>, vector<1x128xf32>
    %4 = vector.broadcast %3 : vector<1x128xf32> to vector<512x128xf32>
    %5 = arith.addf %2, %4 : vector<512x128xf32>
    %cst_5 = arith.constant 5.000000e-01 : f32
    %6 = vector.broadcast %cst_5 : f32 to vector<512x128xf32>
    %7 = arith.mulf %6, %5 : vector<512x128xf32>
    %cst_6 = arith.constant 0.707106769 : f32
    %8 = vector.broadcast %cst_6 : f32 to vector<512x128xf32>
    %9 = arith.mulf %5, %8 : vector<512x128xf32>
    %10 = math.erf %9 : vector<512x128xf32>
    %cst_7 = arith.constant 1.000000e+00 : f32
    %11 = vector.broadcast %cst_7 : f32 to vector<512x128xf32>
    %12 = arith.addf %11, %10 : vector<512x128xf32>
    %13 = arith.mulf %7, %12 : vector<512x128xf32>
    %c0_8 = arith.constant 0 : index
    %c0_9 = arith.constant 0 : index
    %14 = vector.load %arg4[%c0_8, %c0_9] : memref<128x16xf32, #tpu.memory_space<vmem>>, vector<128x16xf32>
    %cst_10 = arith.constant dense<0.000000e+00> : vector<512x16xf32>
    %15 = tpu.matmul %13, %14, %cst_10 {dimension_numbers = #tpu.dot_dimension_numbers<[1], [0], [0], [1], [0, 0, 1, 1], [], []>} : vector<512x128xf32>, vector<128x16xf32>, vector<512x16xf32> -> vector<512x16xf32>
    %c0_11 = arith.constant 0 : index
    %c0_12 = arith.constant 0 : index
    %16 = vector.load %arg5[%c0_11, %c0_12] : memref<1x16xf32, #tpu.memory_space<vmem>>, vector<1x16xf32>
    %17 = vector.broadcast %16 : vector<1x16xf32> to vector<512x16xf32>
    %18 = arith.addf %15, %17 : vector<512x16xf32>
    %c0_13 = arith.constant 0 : index
    %c0_14 = arith.constant 0 : index
    %19 = vector.load %arg6[%c0_13, %c0_14] : memref<512x16xf32, #tpu.memory_space<vmem>>, vector<512x16xf32>
    tpu.vector_store %arg6[%c0_13, %c0_14], %18 {strides = array<i32>} : memref<512x16xf32, #tpu.memory_space<vmem>>, vector<512x16xf32>,
    return
  }
  func.func @transform_0(%arg0: i32) -> (i32, i32) {
    %c0_i32 = arith.constant 0 : i32
    %c0_i32_0 = arith.constant 0 : i32
    return %arg0, %c0_i32 : i32, i32
  }
  func.func @transform_1(%arg0: i32) -> (i32, i32) {
    %c0_i32 = arith.constant 0 : i32
    %c0_i32_0 = arith.constant 0 : i32
    %c0_i32_1 = arith.constant 0 : i32
    return %c0_i32, %c0_i32_0 : i32, i32
  }
  func.func @transform_2(%arg0: i32) -> (i32, i32) {
    %c0_i32 = arith.constant 0 : i32
    %c0_i32_0 = arith.constant 0 : i32
    %c0_i32_1 = arith.constant 0 : i32
    return %c0_i32, %c0_i32_0 : i32, i32
  }
  func.func @transform_3(%arg0: i32) -> (i32, i32) {
    %c0_i32 = arith.constant 0 : i32
    %c0_i32_0 = arith.constant 0 : i32
    %c0_i32_1 = arith.constant 0 : i32
    return %c0_i32, %c0_i32_0 : i32, i32
  }
  func.func @transform_4(%arg0: i32) -> (i32, i32) {
    %c0_i32 = arith.constant 0 : i32
    %c0_i32_0 = arith.constant 0 : i32
    %c0_i32_1 = arith.constant 0 : i32
    return %c0_i32, %c0_i32_0 : i32, i32
  }
  func.func @transform_5(%arg0: i32) -> (i32, i32) {
    %c0_i32 = arith.constant 0 : i32
    %c0_i32_0 = arith.constant 0 : i32
    return %arg0, %c0_i32 : i32, i32
  }
}

module attributes {stable_mosaic.version = 11 : i64} {
  func.func @_stage_a_kernel(%arg0: i32, %arg1: memref<32x32xf32, #tpu.memory_space<vmem>>, %arg2: memref<32x32xf32, #tpu.memory_space<vmem>>, %arg3: memref<1x32xf32, #tpu.memory_space<vmem>>, %arg4: memref<32x256xf32, #tpu.memory_space<vmem>>, %arg5: memref<1x256xf32, #tpu.memory_space<vmem>>, %arg6: memref<32x256xf32, #tpu.memory_space<vmem>>) attributes {dimension_semantics = [#tpu.dimension_semantics<parallel>], iteration_bounds = array<i64: 1>, scalar_prefetch = 0 : i64, scratch_operands = 0 : i64, tpu.core_type = #tpu.core_type<tc>, window_params = [{transform_indices = @transform_0, window_bounds = array<i64: 32, 32>}, {pipeline_mode = #tpu.pipeline_mode<synchronous>, transform_indices = @transform_1, window_bounds = array<i64: 32, 32>}, {pipeline_mode = #tpu.pipeline_mode<synchronous>, transform_indices = @transform_2, window_bounds = array<i64: 1, 32>}, {pipeline_mode = #tpu.pipeline_mode<synchronous>, transform_indices = @transform_3, window_bounds = array<i64: 32, 256>}, {pipeline_mode = #tpu.pipeline_mode<synchronous>, transform_indices = @transform_4, window_bounds = array<i64: 1, 256>}, {transform_indices = @transform_5, window_bounds = array<i64: 32, 256>}]} {
    %c0 = arith.constant 0 : index
    %c0_0 = arith.constant 0 : index
    %0 = vector.load %arg1[%c0, %c0_0] : memref<32x32xf32, #tpu.memory_space<vmem>>, vector<32x32xf32>
    %c0_1 = arith.constant 0 : index
    %c0_2 = arith.constant 0 : index
    %1 = vector.load %arg2[%c0_1, %c0_2] : memref<32x32xf32, #tpu.memory_space<vmem>>, vector<32x32xf32>
    %cst = arith.constant dense<0.000000e+00> : vector<32x32xf32>
    %2 = tpu.matmul %0, %1, %cst {dimension_numbers = #tpu.dot_dimension_numbers<[1], [0], [0], [1], [0, 0, 1, 1], [], []>} : vector<32x32xf32>, vector<32x32xf32>, vector<32x32xf32> -> vector<32x32xf32>
    %c0_3 = arith.constant 0 : index
    %c0_4 = arith.constant 0 : index
    %3 = vector.load %arg3[%c0_3, %c0_4] : memref<1x32xf32, #tpu.memory_space<vmem>>, vector<1x32xf32>
    %4 = vector.broadcast %3 : vector<1x32xf32> to vector<32x32xf32>
    %5 = arith.addf %2, %4 : vector<32x32xf32>
    %cst_5 = arith.constant 5.000000e-01 : f32
    %6 = vector.broadcast %cst_5 : f32 to vector<32x32xf32>
    %7 = arith.mulf %6, %5 : vector<32x32xf32>
    %cst_6 = arith.constant 0.707106769 : f32
    %8 = vector.broadcast %cst_6 : f32 to vector<32x32xf32>
    %9 = arith.mulf %5, %8 : vector<32x32xf32>
    %10 = math.erf %9 : vector<32x32xf32>
    %cst_7 = arith.constant 1.000000e+00 : f32
    %11 = vector.broadcast %cst_7 : f32 to vector<32x32xf32>
    %12 = arith.addf %11, %10 : vector<32x32xf32>
    %13 = arith.mulf %7, %12 : vector<32x32xf32>
    %c0_8 = arith.constant 0 : index
    %c0_9 = arith.constant 0 : index
    %14 = vector.load %arg4[%c0_8, %c0_9] : memref<32x256xf32, #tpu.memory_space<vmem>>, vector<32x256xf32>
    %cst_10 = arith.constant dense<0.000000e+00> : vector<32x256xf32>
    %15 = tpu.matmul %13, %14, %cst_10 {dimension_numbers = #tpu.dot_dimension_numbers<[1], [0], [0], [1], [0, 0, 1, 1], [], []>} : vector<32x32xf32>, vector<32x256xf32>, vector<32x256xf32> -> vector<32x256xf32>
    %c0_11 = arith.constant 0 : index
    %c0_12 = arith.constant 0 : index
    %16 = vector.load %arg5[%c0_11, %c0_12] : memref<1x256xf32, #tpu.memory_space<vmem>>, vector<1x256xf32>
    %17 = vector.broadcast %16 : vector<1x256xf32> to vector<32x256xf32>
    %18 = arith.addf %15, %17 : vector<32x256xf32>
    %cst_13 = arith.constant 5.000000e-01 : f32
    %19 = vector.broadcast %cst_13 : f32 to vector<32x256xf32>
    %20 = arith.mulf %19, %18 : vector<32x256xf32>
    %cst_14 = arith.constant 0.707106769 : f32
    %21 = vector.broadcast %cst_14 : f32 to vector<32x256xf32>
    %22 = arith.mulf %18, %21 : vector<32x256xf32>
    %23 = math.erf %22 : vector<32x256xf32>
    %cst_15 = arith.constant 1.000000e+00 : f32
    %24 = vector.broadcast %cst_15 : f32 to vector<32x256xf32>
    %25 = arith.addf %24, %23 : vector<32x256xf32>
    %26 = arith.mulf %20, %25 : vector<32x256xf32>
    %c0_16 = arith.constant 0 : index
    %c0_17 = arith.constant 0 : index
    %27 = vector.load %arg6[%c0_16, %c0_17] : memref<32x256xf32, #tpu.memory_space<vmem>>, vector<32x256xf32>
    tpu.vector_store %arg6[%c0_16, %c0_17], %26 {strides = array<i32>} : memref<32x256xf32, #tpu.memory_space<vmem>>, vector<32x256xf32>,
    return
  }
  func.func @transform_0(%arg0: i32) -> (i32, i32) {
    %c0_i32 = arith.constant 0 : i32
    %c0_i32_0 = arith.constant 0 : i32
    return %arg0, %c0_i32 : i32, i32
  }
  func.func @transform_1(%arg0: i32) -> (i32, i32) {
    %c0_i32 = arith.constant 0 : i32
    %c0_i32_0 = arith.constant 0 : i32
    %c0_i32_1 = arith.constant 0 : i32
    return %c0_i32, %c0_i32_0 : i32, i32
  }
  func.func @transform_2(%arg0: i32) -> (i32, i32) {
    %c0_i32 = arith.constant 0 : i32
    %c0_i32_0 = arith.constant 0 : i32
    %c0_i32_1 = arith.constant 0 : i32
    return %c0_i32, %c0_i32_0 : i32, i32
  }
  func.func @transform_3(%arg0: i32) -> (i32, i32) {
    %c0_i32 = arith.constant 0 : i32
    %c0_i32_0 = arith.constant 0 : i32
    %c0_i32_1 = arith.constant 0 : i32
    return %c0_i32, %c0_i32_0 : i32, i32
  }
  func.func @transform_4(%arg0: i32) -> (i32, i32) {
    %c0_i32 = arith.constant 0 : i32
    %c0_i32_0 = arith.constant 0 : i32
    %c0_i32_1 = arith.constant 0 : i32
    return %c0_i32, %c0_i32_0 : i32, i32
  }
  func.func @transform_5(%arg0: i32) -> (i32, i32) {
    %c0_i32 = arith.constant 0 : i32
    %c0_i32_0 = arith.constant 0 : i32
    return %arg0, %c0_i32 : i32, i32
  }
}

</mosaic_0001>

<llo_original>
// kernel: mae_decoder_forward.2
$region0: #{mae_decoder_forward.2}
  #allocation0 [shape = 'u32[]', space=smem, size = 0x4, offset = 0x4, fixed_abs, tag = 'smem constant byte address 0x4 - core index']
  #allocation1 [shape = 'u32[72,128]{1,0:T(1,128)}', space=vmem, size = 0x9000, scoped, tag = 'internal scratch']
  %s0 = inlined_call_operand.hbm [shape: f32[32,32], index: 0, kind: input, shape index: {}]
  %s1 = inlined_call_operand.hbm [shape: f32[32,32], index: 1, kind: input, shape index: {}]
  %s2 = inlined_call_operand.vmem [shape: f32[1,32], index: 2, kind: input, shape index: {}]
  %s3 = inlined_call_operand.hbm [shape: f32[32,256], index: 3, kind: input, shape index: {}]
  %s4 = inlined_call_operand.vmem [shape: f32[1,256], index: 4, kind: input, shape index: {}]
  %s5 = inlined_call_operand.vmem [shape: f32[32,256], index: 5, kind: output, shape index: {}]
  %s6 = sld [smem:[#allocation0]]
  $region42: #{mae_decoder_forward.2} parent=0
    _
  %s8 = ssub.s32 1, %s6
  %s9 = scalar_select 0, %s8, %s6
  $region1: #{mae_decoder_forward.2} parent=0
    #allocation2 [shape = 'u8[16384]{0}', space=vmem, size = 0x4000, scoped, tag = 'input window, operand 0, single buffered']
    #allocation3 [shape = 's32[1]{0}', space=sflag, size = 0x4, scoped, tag = 'scoped memory for mae_decoder_forward.2']
    #allocation4 [shape = 'u8[16384]{0}', space=vmem, size = 0x4000, scoped, tag = 'input window, operand 1, single buffered']
    #allocation5 [shape = 's32[1]{0}', space=sflag, size = 0x4, scoped, tag = 'scoped memory for mae_decoder_forward.2']
    #allocation6 [shape = 'u8[32768]{0}', space=vmem, size = 0x8000, scoped, tag = 'input window, operand 3, single buffered']
    %10 = vsyncpa [#allocation3], 0
    %11 = vsyncpa [#allocation5], 0
    // Predicated region
    $region2: #{mae_decoder_forward.2} parent=1 // pred_check
      _
    $region3: #{mae_decoder_forward.2} parent=1 // pred_check_branch
      %13 = sbr.rel (0) target = $region5
    $region4: #{mae_decoder_forward.2} parent=1 // pred_region
      %15 = vsyncadd [#allocation3], 0
      %s16 = sshll.u32 %s0, 4
      %s17 = int_to_ptr.hbm [resolvable:$true] %s16
      %s18 = sshll.u32 [#allocation2], 4
      %s19 = int_to_ptr.vmem [resolvable:$true] %s18
      %24 = dma.hbm_to_vmem [thread:$0]  %s17, 512, %s19, [#allocation3], 128, 128, 8
    $region5: #{mae_decoder_forward.2} parent=1 // pred_fallthru
      _
    // Predicated region
    $region6: #{mae_decoder_forward.2} parent=1 // pred_check
      _
    $region7: #{mae_decoder_forward.2} parent=1 // pred_check_branch
      %26 = sbr.rel (0) target = $region9
    $region8: #{mae_decoder_forward.2} parent=1 // pred_region
      %28 = vsyncadd [#allocation5], 0
      %s29 = sshll.u32 %s1, 4
      %s30 = int_to_ptr.hbm [resolvable:$true] %s29
      %s31 = sshll.u32 [#allocation4], 4
      %s32 = int_to_ptr.vmem [resolvable:$true] %s31
      %37 = dma.hbm_to_vmem [thread:$0]  %s30, 512, %s32, [#allocation5], 128, 128, 8
    $region9: #{mae_decoder_forward.2} parent=1 // pred_fallthru
      _
    // Predicated region
    $region10: #{mae_decoder_forward.2} parent=1 // pred_check
      _
    $region11: #{mae_decoder_forward.2} parent=1 // pred_check_branch
      %39 = sbr.rel (0) target = $region13
    $region12: #{mae_decoder_forward.2} parent=1 // pred_region
      _
    $region13: #{mae_decoder_forward.2} parent=1 // pred_fallthru
      _
    // Predicated region
    $region14: #{mae_decoder_forward.2} parent=1 // pred_check
      _
    $region15: #{mae_decoder_forward.2} parent=1 // pred_check_branch
      %41 = sbr.rel (0) target = $region17
    $region16: #{mae_decoder_forward.2} parent=1 // pred_region
      %43 = vsyncadd [#allocation5], 0
      %s44 = sshll.u32 %s3, 4
      %s45 = int_to_ptr.hbm [resolvable:$true] %s44
      %s46 = sshll.u32 [#allocation6], 4
      %s47 = int_to_ptr.vmem [resolvable:$true] %s46
      %52 = dma.hbm_to_vmem [thread:$0]  %s45, 1024, %s47, [#allocation5], 256, 256, 16
    $region17: #{mae_decoder_forward.2} parent=1 // pred_fallthru
      _
    // Predicated region
    $region18: #{mae_decoder_forward.2} parent=1 // pred_check
      _
    $region19: #{mae_decoder_forward.2} parent=1 // pred_check_branch
      %54 = sbr.rel (0) target = $region21
    $region20: #{mae_decoder_forward.2} parent=1 // pred_region
      _
    $region21: #{mae_decoder_forward.2} parent=1 // pred_fallthru
      _
    // Predicated region
    $region22: #{mae_decoder_forward.2} parent=1 // pred_check
      _
    $region23: #{mae_decoder_forward.2} parent=1 // pred_check_branch
      %56 = sbr.rel (0) target = $region25
    $region24: #{mae_decoder_forward.2} parent=1 // pred_region
      %58 = dma.done [#allocation3], 512
    $region25: #{mae_decoder_forward.2} parent=1 // pred_fallthru
      _
    // Predicated region
    $region26: #{mae_decoder_forward.2} parent=1 // pred_check
      _
    $region27: #{mae_decoder_forward.2} parent=1 // pred_check_branch
      %60 = sbr.rel (0) target = $region29
    $region28: #{mae_decoder_forward.2} parent=1 // pred_region
      %62 = dma.done [#allocation5], 512
    $region29: #{mae_decoder_forward.2} parent=1 // pred_fallthru
      _
    // Predicated region
    $region30: #{mae_decoder_forward.2} parent=1 // pred_check
      _
    $region31: #{mae_decoder_forward.2} parent=1 // pred_check_branch
      %64 = sbr.rel (0) target = $region33
    $region32: #{mae_decoder_forward.2} parent=1 // pred_region
      %66 = dma.done [#allocation5], 1024
    $region33: #{mae_decoder_forward.2} parent=1 // pred_fallthru
      _
    %v67 = vld [vmem:[#allocation2] sm:$0xff]
    %v68 = vld [vmem:[#allocation2 + $0x8] sm:$0xff]
    %v69 = vld [vmem:[#allocation2 + $0x10] sm:$0xff]
    %v70 = vld [vmem:[#allocation2 + $0x18] sm:$0xff]
    %v71 = vld [vmem:[#allocation4] sm:$0xff]
    %v72 = vld [vmem:[#allocation4 + $0x8] sm:$0xff]
    %v73 = vld [vmem:[#allocation4 + $0x10] sm:$0xff]
    %v74 = vld [vmem:[#allocation4 + $0x18] sm:$0xff]
    %v75 = vld [vmem:[%s2] sm:$0x1]
    %v77 = vperm.slane %v75, 0
    %vm79 = vcmask 261120
    %v81 = vsel %vm79, %v67, 0
    %v84 = vsel %vm79, %v68, 0
    %v87 = vsel %vm79, %v69, 0
    %v90 = vsel %vm79, %v70, 0
    %92 = vmatpush.msra.mxu0 0.0
    %93 = vmatpush.msra.mxu0 0.0
    %94 = vmatpush.msra.mxu0 0.0
    %95 = vmatpush.msra.mxu0 0.0
    %96 = vmatpush.msra.mxu0 0.0
    %97 = vmatpush.msra.mxu0 0.0
    %98 = vmatpush.msra.mxu0 0.0
    %99 = vmatpush.msra.mxu0 0.0
    %100 = vmatpush.msra.mxu0 0.0
    %101 = vmatpush.msra.mxu0 0.0
    %102 = vmatpush.msra.mxu0 0.0
    %103 = vmatpush.msra.mxu0 0.0
    %104 = vmatpush.msra.mxu0 %v74
    %105 = vmatpush.msra.mxu0 %v73
    %106 = vmatpush.msra.mxu0 %v72
    %107 = vmatpush.msra.mxu0 %v71
    %108 = vmatmul.f32.gmra.mxu0 %v81
    %v109 = vpop.f32.mrf.mxu0
    %v110 = vadd.f32 %v77, %v109
    %111 = vmatmul.f32.gmra.mxu0 %v84
    %v112 = vpop.f32.mrf.mxu0
    %v113 = vadd.f32 %v77, %v112
    %114 = vmatmul.f32.gmra.mxu0 %v87
    %v115 = vpop.f32.mrf.mxu0
    %v116 = vadd.f32 %v77, %v115
    %117 = vmatmul.f32.gmra.mxu0 %v90
    %v118 = vpop.f32.mrf.mxu0
    %v119 = vadd.f32 %v77, %v118
    %120 = vdwg.mxu0
    %v121 = vmul.f32 %v110, 0.5
    %v122 = vmul.f32 %v113, 0.5
    %v123 = vmul.f32 %v116, 0.5
    %v124 = vmul.f32 %v119, 0.5
    %v125 = vmul.f32 %v110, 0.70710677
    %v126 = vmul.f32 %v113, 0.70710677
    %v127 = vmul.f32 %v116, 0.70710677
    %v128 = vmul.f32 %v119, 0.70710677
    %v129 = vmul.f32 %v125, %v125
    %v130 = vmin.f32 16.0, %v129
    %v131 = vmul.f32 %v130, 2.1237322e-06
    %v132 = vadd.f32 %v131, 0.00028619796
    %v133 = vmul.f32 %v130, %v132
    %v134 = vadd.f32 %v133, 0.0036580483
    %v135 = vmul.f32 %v130, %v134
    %v136 = vadd.f32 %v135, 0.05243302
    %v137 = vmul.f32 %v130, %v136
    %v138 = vadd.f32 %v137, 0.18741608
    %v139 = vmul.f32 %v130, %v138
    %v140 = vadd.f32 %v139, 1.1283791
    %v141 = vmul.f32 %v125, %v140
    %v142 = vmul.f32 %v130, 3.8918573e-05
    %v143 = vadd.f32 %v142, 0.001143296
    %v144 = vmul.f32 %v130, %v143
    %v145 = vadd.f32 %v144, 0.014752088
    %v146 = vmul.f32 %v130, %v145
    %v147 = vadd.f32 %v146, 0.112945676
    %v148 = vmul.f32 %v130, %v147
    %v149 = vadd.f32 %v148, 0.4994258
    %v150 = vmul.f32 %v130, %v149
    %v151 = vadd.f32 %v150, 1.0
    %v152 = vrcp.pop %v151
    %v153 = vmul.f32 %v151, %v152
    %v154 = vsub.f32 1.0, %v153
    %v155 = vmul.f32 %v152, %v154
    %v156 = vadd.f32 %v152, %v155
    %vm157 = vweird.f32 %v151
    %vm158 = vweird.f32 %v152
    %vm159 = vmor %vm157, %vm158
    %v160 = vsel %vm159, %v152, %v156
    %v161 = vand.u32 2147483647, %v151
    %vm162 = vcmp.eq.f32.partialorder %v161, 8.507059e+37
    %v163 = vand.u32 %v151, 2147483648
    %v164 = vor.u32 1.1754944e-38, %v163
    %v165 = vsel %vm162, %v164, %v160
    %v166 = vmul.f32 %v141, %v165
    %v167 = vmin.f32 %v166, 1.0
    %v168 = vmax.f32 %v167, -1.0
    %v169 = vmul.f32 %v126, %v126
    %v170 = vmin.f32 16.0, %v169
    %v171 = vmul.f32 %v170, 2.1237322e-06
    %v172 = vadd.f32 %v171, 0.00028619796
    %v173 = vmul.f32 %v170, %v172
    %v174 = vadd.f32 %v173, 0.0036580483
    %v175 = vmul.f32 %v170, %v174
    %v176 = vadd.f32 %v175, 0.05243302
    %v177 = vmul.f32 %v170, %v176
    %v178 = vadd.f32 %v177, 0.18741608
    %v179 = vmul.f32 %v170, %v178
    %v180 = vadd.f32 %v179, 1.1283791
    %v181 = vmul.f32 %v126, %v180
    %v182 = vmul.f32 %v170, 3.8918573e-05
    %v183 = vadd.f32 %v182, 0.001143296
    %v184 = vmul.f32 %v170, %v183
    %v185 = vadd.f32 %v184, 0.014752088
    %v186 = vmul.f32 %v170, %v185
    %v187 = vadd.f32 %v186, 0.112945676
    %v188 = vmul.f32 %v170, %v187
    %v189 = vadd.f32 %v188, 0.4994258
    %v190 = vmul.f32 %v170, %v189
    %v191 = vadd.f32 %v190, 1.0
    %v192 = vrcp.pop %v191
    %v193 = vmul.f32 %v191, %v192
    %v194 = vsub.f32 1.0, %v193
    %v195 = vmul.f32 %v192, %v194
    %v196 = vadd.f32 %v192, %v195
    %vm197 = vweird.f32 %v191
    %vm198 = vweird.f32 %v192
    %vm199 = vmor %vm197, %vm198
    %v200 = vsel %vm199, %v192, %v196
    %v201 = vand.u32 2147483647, %v191
    %vm202 = vcmp.eq.f32.partialorder %v201, 8.507059e+37
    %v203 = vand.u32 %v191, 2147483648
    %v204 = vor.u32 1.1754944e-38, %v203
    %v205 = vsel %vm202, %v204, %v200
    %v206 = vmul.f32 %v181, %v205
    %v207 = vmin.f32 %v206, 1.0
    %v208 = vmax.f32 %v207, -1.0
    %v209 = vmul.f32 %v127, %v127
    %v210 = vmin.f32 16.0, %v209
    %v211 = vmul.f32 %v210, 2.1237322e-06
    %v212 = vadd.f32 %v211, 0.00028619796
    %v213 = vmul.f32 %v210, %v212
    %v214 = vadd.f32 %v213, 0.0036580483
    %v215 = vmul.f32 %v210, %v214
    %v216 = vadd.f32 %v215, 0.05243302
    %v217 = vmul.f32 %v210, %v216
    %v218 = vadd.f32 %v217, 0.18741608
    %v219 = vmul.f32 %v210, %v218
    %v220 = vadd.f32 %v219, 1.1283791
    %v221 = vmul.f32 %v127, %v220
    %v222 = vmul.f32 %v210, 3.8918573e-05
    %v223 = vadd.f32 %v222, 0.001143296
    %v224 = vmul.f32 %v210, %v223
    %v225 = vadd.f32 %v224, 0.014752088
    %v226 = vmul.f32 %v210, %v225
    %v227 = vadd.f32 %v226, 0.112945676
    %v228 = vmul.f32 %v210, %v227
    %v229 = vadd.f32 %v228, 0.4994258
    %v230 = vmul.f32 %v210, %v229
    %v231 = vadd.f32 %v230, 1.0
    %v232 = vrcp.pop %v231
    %v233 = vmul.f32 %v231, %v232
    %v234 = vsub.f32 1.0, %v233
    %v235 = vmul.f32 %v232, %v234
    %v236 = vadd.f32 %v232, %v235
    %vm237 = vweird.f32 %v231
    %vm238 = vweird.f32 %v232
    %vm239 = vmor %vm237, %vm238
    %v240 = vsel %vm239, %v232, %v236
    %v241 = vand.u32 2147483647, %v231
    %vm242 = vcmp.eq.f32.partialorder %v241, 8.507059e+37
    %v243 = vand.u32 %v231, 2147483648
    %v244 = vor.u32 1.1754944e-38, %v243
    %v245 = vsel %vm242, %v244, %v240
    %v246 = vmul.f32 %v221, %v245
    %v247 = vmin.f32 %v246, 1.0
    %v248 = vmax.f32 %v247, -1.0
    %v249 = vmul.f32 %v128, %v128
    %v250 = vmin.f32 16.0, %v249
    %v251 = vmul.f32 %v250, 2.1237322e-06
    %v252 = vadd.f32 %v251, 0.00028619796
    %v253 = vmul.f32 %v250, %v252
    %v254 = vadd.f32 %v253, 0.0036580483
    %v255 = vmul.f32 %v250, %v254
    %v256 = vadd.f32 %v255, 0.05243302
    %v257 = vmul.f32 %v250, %v256
    %v258 = vadd.f32 %v257, 0.18741608
    %v259 = vmul.f32 %v250, %v258
    %v260 = vadd.f32 %v259, 1.1283791
    %v261 = vmul.f32 %v128, %v260
    %v262 = vmul.f32 %v250, 3.8918573e-05
    %v263 = vadd.f32 %v262, 0.001143296
    %v264 = vmul.f32 %v250, %v263
    %v265 = vadd.f32 %v264, 0.014752088
    %v266 = vmul.f32 %v250, %v265
    %v267 = vadd.f32 %v266, 0.112945676
    %v268 = vmul.f32 %v250, %v267
    %v269 = vadd.f32 %v268, 0.4994258
    %v270 = vmul.f32 %v250, %v269
    %v271 = vadd.f32 %v270, 1.0
    %v272 = vrcp.pop %v271
    %v273 = vmul.f32 %v271, %v272
    %v274 = vsub.f32 1.0, %v273
    %v275 = vmul.f32 %v272, %v274
    %v276 = vadd.f32 %v272, %v275
    %vm277 = vweird.f32 %v271
    %vm278 = vweird.f32 %v272
    %vm279 = vmor %vm277, %vm278
    %v280 = vsel %vm279, %v272, %v276
    %v281 = vand.u32 2147483647, %v271
    %vm282 = vcmp.eq.f32.partialorder %v281, 8.507059e+37
    %v283 = vand.u32 %v271, 2147483648
    %v284 = vor.u32 1.1754944e-38, %v283
    %v285 = vsel %vm282, %v284, %v280
    %v286 = vmul.f32 %v261, %v285
    %v287 = vmin.f32 %v286, 1.0
    %v288 = vmax.f32 %v287, -1.0
    %v289 = vadd.f32 %v168, 1.0
    %v290 = vadd.f32 %v208, 1.0
    %v291 = vadd.f32 %v248, 1.0
    %v292 = vadd.f32 %v288, 1.0
    %v293 = vmul.f32 %v121, %v289
    %v294 = vmul.f32 %v122, %v290
    %v295 = vmul.f32 %v123, %v291
    %v296 = vmul.f32 %v124, %v292
    %v297 = vld [vmem:[#allocation6] sm:$0xff]
    %v298 = vld [vmem:[#allocation6 + $0x8] sm:$0xff]
    %v299 = vld [vmem:[#allocation6 + $0x10] sm:$0xff]
    %v300 = vld [vmem:[#allocation6 + $0x18] sm:$0xff]
    %v301 = vld [vmem:[#allocation6 + $0x20] sm:$0xff]
    %v302 = vld [vmem:[#allocation6 + $0x28] sm:$0xff]
    %v303 = vld [vmem:[#allocation6 + $0x30] sm:$0xff]
    %v304 = vld [vmem:[#allocation6 + $0x38] sm:$0xff]
    %v305 = vld [vmem:[%s4] sm:$0x3]
    %v307 = vperm.slane %v305, 0
    %v308 = vperm.slane %v305, 1
    %v312 = vsel %vm79, %v293, 0
    %v315 = vsel %vm79, %v294, 0
    %v318 = vsel %vm79, %v295, 0
    %v321 = vsel %vm79, %v296, 0
    %323 = vmatpush.msra.mxu0 0.0
    %324 = vmatpush.msra.mxu0 0.0
    %325 = vmatpush.msra.mxu0 0.0
    %326 = vmatpush.msra.mxu0 0.0
    %327 = vmatpush.msra.mxu0 0.0
    %328 = vmatpush.msra.mxu0 0.0
    %329 = vmatpush.msra.mxu0 0.0
    %330 = vmatpush.msra.mxu0 0.0
    %331 = vmatpush.msra.mxu0 0.0
    %332 = vmatpush.msra.mxu0 0.0
    %333 = vmatpush.msra.mxu0 0.0
    %334 = vmatpush.msra.mxu0 0.0
    %335 = vmatpush.msra.mxu0 %v303
    %336 = vmatpush.msra.mxu0 %v301
    %337 = vmatpush.msra.mxu0 %v299
    %338 = vmatpush.msra.mxu0 %v297
    %339 = vmatmul.f32.gmra.mxu0 %v312
    %v340 = vpop.f32.mrf.mxu0
    %v341 = vadd.f32 %v307, %v340
    %342 = vmatmul.f32.gmra.mxu0 %v315
    %v343 = vpop.f32.mrf.mxu0
    %v344 = vadd.f32 %v307, %v343
    %345 = vmatmul.f32.gmra.mxu0 %v318
    %v346 = vpop.f32.mrf.mxu0
    %v347 = vadd.f32 %v307, %v346
    %348 = vmatmul.f32.gmra.mxu0 %v321
    %v349 = vpop.f32.mrf.mxu0
    %v350 = vadd.f32 %v307, %v349
    %351 = vdwg.mxu0
    %352 = vmatpush.msra.mxu0 0.0
    %353 = vmatpush.msra.mxu0 0.0
    %354 = vmatpush.msra.mxu0 0.0
    %355 = vmatpush.msra.mxu0 0.0
    %356 = vmatpush.msra.mxu0 0.0
    %357 = vmatpush.msra.mxu0 0.0
    %358 = vmatpush.msra.mxu0 0.0
    %359 = vmatpush.msra.mxu0 0.0
    %360 = vmatpush.msra.mxu0 0.0
    %361 = vmatpush.msra.mxu0 0.0
    %362 = vmatpush.msra.mxu0 0.0
    %363 = vmatpush.msra.mxu0 0.0
    %364 = vmatpush.msra.mxu0 %v304
    %365 = vmatpush.msra.mxu0 %v302
    %366 = vmatpush.msra.mxu0 %v300
    %367 = vmatpush.msra.mxu0 %v298
    %368 = vmatmul.f32.gmra.mxu0 %v312
    %v369 = vpop.f32.mrf.mxu0
    %v370 = vadd.f32 %v308, %v369
    %371 = vmatmul.f32.gmra.mxu0 %v315
    %v372 = vpop.f32.mrf.mxu0
    %v373 = vadd.f32 %v308, %v372
    %374 = vmatmul.f32.gmra.mxu0 %v318
    %v375 = vpop.f32.mrf.mxu0
    %v376 = vadd.f32 %v308, %v375
    %377 = vmatmul.f32.gmra.mxu0 %v321
    %v378 = vpop.f32.mrf.mxu0
    %v379 = vadd.f32 %v308, %v378
    %380 = vdwg.mxu0
    %v381 = vmul.f32 %v341, 0.5
    %v382 = vmul.f32 %v370, 0.5
    %v383 = vmul.f32 %v344, 0.5
    %v384 = vmul.f32 %v373, 0.5
    %v385 = vmul.f32 %v347, 0.5
    %v386 = vmul.f32 %v376, 0.5
    %v387 = vmul.f32 %v350, 0.5
    %v388 = vmul.f32 %v379, 0.5
    %v389 = vmul.f32 %v341, 0.70710677
    %v390 = vmul.f32 %v370, 0.70710677
    %v391 = vmul.f32 %v344, 0.70710677
    %v392 = vmul.f32 %v373, 0.70710677
    %v393 = vmul.f32 %v347, 0.70710677
    %v394 = vmul.f32 %v376, 0.70710677
    %v395 = vmul.f32 %v350, 0.70710677
    %v396 = vmul.f32 %v379, 0.70710677
    %v397 = vmul.f32 %v389, %v389
    %v398 = vmin.f32 16.0, %v397
    %v399 = vmul.f32 %v398, 2.1237322e-06
    %v400 = vadd.f32 %v399, 0.00028619796
    %v401 = vmul.f32 %v398, %v400
    %v402 = vadd.f32 %v401, 0.0036580483
    %v403 = vmul.f32 %v398, %v402
    %v404 = vadd.f32 %v403, 0.05243302
    %v405 = vmul.f32 %v398, %v404
    %v406 = vadd.f32 %v405, 0.18741608
    %v407 = vmul.f32 %v398, %v406
    %v408 = vadd.f32 %v407, 1.1283791
    %v409 = vmul.f32 %v389, %v408
    %v410 = vmul.f32 %v398, 3.8918573e-05
    %v411 = vadd.f32 %v410, 0.001143296
    %v412 = vmul.f32 %v398, %v411
    %v413 = vadd.f32 %v412, 0.014752088
    %v414 = vmul.f32 %v398, %v413
    %v415 = vadd.f32 %v414, 0.112945676
    %v416 = vmul.f32 %v398, %v415
    %v417 = vadd.f32 %v416, 0.4994258
    %v418 = vmul.f32 %v398, %v417
    %v419 = vadd.f32 %v418, 1.0
    %v420 = vrcp.pop %v419
    %v421 = vmul.f32 %v419, %v420
    %v422 = vsub.f32 1.0, %v421
    %v423 = vmul.f32 %v420, %v422
    %v424 = vadd.f32 %v420, %v423
    %vm425 = vweird.f32 %v419
    %vm426 = vweird.f32 %v420
    %vm427 = vmor %vm425, %vm426
    %v428 = vsel %vm427, %v420, %v424
    %v429 = vand.u32 2147483647, %v419
    %vm430 = vcmp.eq.f32.partialorder %v429, 8.507059e+37
    %v431 = vand.u32 %v419, 2147483648
    %v432 = vor.u32 1.1754944e-38, %v431
    %v433 = vsel %vm430, %v432, %v428
    %v434 = vmul.f32 %v409, %v433
    %v435 = vmin.f32 %v434, 1.0
    %v436 = vmax.f32 %v435, -1.0
    %v437 = vmul.f32 %v390, %v390
    %v438 = vmin.f32 16.0, %v437
    %v439 = vmul.f32 %v438, 2.1237322e-06
    %v440 = vadd.f32 %v439, 0.00028619796
    %v441 = vmul.f32 %v438, %v440
    %v442 = vadd.f32 %v441, 0.0036580483
    %v443 = vmul.f32 %v438, %v442
    %v444 = vadd.f32 %v443, 0.05243302
    %v445 = vmul.f32 %v438, %v444
    %v446 = vadd.f32 %v445, 0.18741608
    %v447 = vmul.f32 %v438, %v446
    %v448 = vadd.f32 %v447, 1.1283791
    %v449 = vmul.f32 %v390, %v448
    %v450 = vmul.f32 %v438, 3.8918573e-05
    %v451 = vadd.f32 %v450, 0.001143296
    %v452 = vmul.f32 %v438, %v451
    %v453 = vadd.f32 %v452, 0.014752088
    %v454 = vmul.f32 %v438, %v453
    %v455 = vadd.f32 %v454, 0.112945676
    %v456 = vmul.f32 %v438, %v455
    %v457 = vadd.f32 %v456, 0.4994258
    %v458 = vmul.f32 %v438, %v457
    %v459 = vadd.f32 %v458, 1.0
    %v460 = vrcp.pop %v459
    %v461 = vmul.f32 %v459, %v460
    %v462 = vsub.f32 1.0, %v461
    %v463 = vmul.f32 %v460, %v462
    %v464 = vadd.f32 %v460, %v463
    %vm465 = vweird.f32 %v459
    %vm466 = vweird.f32 %v460
    %vm467 = vmor %vm465, %vm466
    %v468 = vsel %vm467, %v460, %v464
    %v469 = vand.u32 2147483647, %v459
    %vm470 = vcmp.eq.f32.partialorder %v469, 8.507059e+37
    %v471 = vand.u32 %v459, 2147483648
    %v472 = vor.u32 1.1754944e-38, %v471
    %v473 = vsel %vm470, %v472, %v468
    %v474 = vmul.f32 %v449, %v473
    %v475 = vmin.f32 %v474, 1.0
    %v476 = vmax.f32 %v475, -1.0
    %v477 = vmul.f32 %v391, %v391
    %v478 = vmin.f32 16.0, %v477
    %v479 = vmul.f32 %v478, 2.1237322e-06
    %v480 = vadd.f32 %v479, 0.00028619796
    %v481 = vmul.f32 %v478, %v480
    %v482 = vadd.f32 %v481, 0.0036580483
    %v483 = vmul.f32 %v478, %v482
    %v484 = vadd.f32 %v483, 0.05243302
    %v485 = vmul.f32 %v478, %v484
    %v486 = vadd.f32 %v485, 0.18741608
    %v487 = vmul.f32 %v478, %v486
    %v488 = vadd.f32 %v487, 1.1283791
    %v489 = vmul.f32 %v391, %v488
    %v490 = vmul.f32 %v478, 3.8918573e-05
    %v491 = vadd.f32 %v490, 0.001143296
    %v492 = vmul.f32 %v478, %v491
    %v493 = vadd.f32 %v492, 0.014752088
    %v494 = vmul.f32 %v478, %v493
    %v495 = vadd.f32 %v494, 0.112945676
    %v496 = vmul.f32 %v478, %v495
    %v497 = vadd.f32 %v496, 0.4994258
    %v498 = vmul.f32 %v478, %v497
    %v499 = vadd.f32 %v498, 1.0
    %v500 = vrcp.pop %v499
    %v501 = vmul.f32 %v499, %v500
    %v502 = vsub.f32 1.0, %v501
    %v503 = vmul.f32 %v500, %v502
    %v504 = vadd.f32 %v500, %v503
    %vm505 = vweird.f32 %v499
    %vm506 = vweird.f32 %v500
    %vm507 = vmor %vm505, %vm506
    %v508 = vsel %vm507, %v500, %v504
    %v509 = vand.u32 2147483647, %v499
    %vm510 = vcmp.eq.f32.partialorder %v509, 8.507059e+37
    %v511 = vand.u32 %v499, 2147483648
    %v512 = vor.u32 1.1754944e-38, %v511
    %v513 = vsel %vm510, %v512, %v508
    %v514 = vmul.f32 %v489, %v513
    %v515 = vmin.f32 %v514, 1.0
    %v516 = vmax.f32 %v515, -1.0
    %v517 = vmul.f32 %v392, %v392
    %v518 = vmin.f32 16.0, %v517
    %v519 = vmul.f32 %v518, 2.1237322e-06
    %v520 = vadd.f32 %v519, 0.00028619796
    %v521 = vmul.f32 %v518, %v520
    %v522 = vadd.f32 %v521, 0.0036580483
    %v523 = vmul.f32 %v518, %v522
    %v524 = vadd.f32 %v523, 0.05243302
    %v525 = vmul.f32 %v518, %v524
    %v526 = vadd.f32 %v525, 0.18741608
    %v527 = vmul.f32 %v518, %v526
    %v528 = vadd.f32 %v527, 1.1283791
    %v529 = vmul.f32 %v392, %v528
    %v530 = vmul.f32 %v518, 3.8918573e-05
    %v531 = vadd.f32 %v530, 0.001143296
    %v532 = vmul.f32 %v518, %v531
    %v533 = vadd.f32 %v532, 0.014752088
    %v534 = vmul.f32 %v518, %v533
    %v535 = vadd.f32 %v534, 0.112945676
    %v536 = vmul.f32 %v518, %v535
    %v537 = vadd.f32 %v536, 0.4994258
    %v538 = vmul.f32 %v518, %v537
    %v539 = vadd.f32 %v538, 1.0
    %v540 = vrcp.pop %v539
    %v541 = vmul.f32 %v539, %v540
    %v542 = vsub.f32 1.0, %v541
    %v543 = vmul.f32 %v540, %v542
    %v544 = vadd.f32 %v540, %v543
    %vm545 = vweird.f32 %v539
    %vm546 = vweird.f32 %v540
    %vm547 = vmor %vm545, %vm546
    %v548 = vsel %vm547, %v540, %v544
    %v549 = vand.u32 2147483647, %v539
    %vm550 = vcmp.eq.f32.partialorder %v549, 8.507059e+37
    %v551 = vand.u32 %v539, 2147483648
    %v552 = vor.u32 1.1754944e-38, %v551
    %v553 = vsel %vm550, %v552, %v548
    %v554 = vmul.f32 %v529, %v553
    %v555 = vmin.f32 %v554, 1.0
    %v556 = vmax.f32 %v555, -1.0
    %v557 = vmul.f32 %v393, %v393
    %v558 = vmin.f32 16.0, %v557
    %v559 = vmul.f32 %v558, 2.1237322e-06
    %v560 = vadd.f32 %v559, 0.00028619796
    %v561 = vmul.f32 %v558, %v560
    %v562 = vadd.f32 %v561, 0.0036580483
    %v563 = vmul.f32 %v558, %v562
    %v564 = vadd.f32 %v563, 0.05243302
    %v565 = vmul.f32 %v558, %v564
    %v566 = vadd.f32 %v565, 0.18741608
    %v567 = vmul.f32 %v558, %v566
    %v568 = vadd.f32 %v567, 1.1283791
    %v569 = vmul.f32 %v393, %v568
    %v570 = vmul.f32 %v558, 3.8918573e-05
    %v571 = vadd.f32 %v570, 0.001143296
    %v572 = vmul.f32 %v558, %v571
    %v573 = vadd.f32 %v572, 0.014752088
    %v574 = vmul.f32 %v558, %v573
    %v575 = vadd.f32 %v574, 0.112945676
    %v576 = vmul.f32 %v558, %v575
    %v577 = vadd.f32 %v576, 0.4994258
    %v578 = vmul.f32 %v558, %v577
    %v579 = vadd.f32 %v578, 1.0
    %v580 = vrcp.pop %v579
    %v581 = vmul.f32 %v579, %v580
    %v582 = vsub.f32 1.0, %v581
    %v583 = vmul.f32 %v580, %v582
    %v584 = vadd.f32 %v580, %v583
    %vm585 = vweird.f32 %v579
    %vm586 = vweird.f32 %v580
    %vm587 = vmor %vm585, %vm586
    %v588 = vsel %vm587, %v580, %v584
    %v589 = vand.u32 2147483647, %v579
    %vm590 = vcmp.eq.f32.partialorder %v589, 8.507059e+37
    %v591 = vand.u32 %v579, 2147483648
    %v592 = vor.u32 1.1754944e-38, %v591
    %v593 = vsel %vm590, %v592, %v588
    %v594 = vmul.f32 %v569, %v593
    %v595 = vmin.f32 %v594, 1.0
    %v596 = vmax.f32 %v595, -1.0
    %v597 = vmul.f32 %v394, %v394
    %v598 = vmin.f32 16.0, %v597
    %v599 = vmul.f32 %v598, 2.1237322e-06
    %v600 = vadd.f32 %v599, 0.00028619796
    %v601 = vmul.f32 %v598, %v600
    %v602 = vadd.f32 %v601, 0.0036580483
    %v603 = vmul.f32 %v598, %v602
    %v604 = vadd.f32 %v603, 0.05243302
    %v605 = vmul.f32 %v598, %v604
    %v606 = vadd.f32 %v605, 0.18741608
    %v607 = vmul.f32 %v598, %v606
    %v608 = vadd.f32 %v607, 1.1283791
    %v609 = vmul.f32 %v394, %v608
    %v610 = vmul.f32 %v598, 3.8918573e-05
    %v611 = vadd.f32 %v610, 0.001143296
    %v612 = vmul.f32 %v598, %v611
    %v613 = vadd.f32 %v612, 0.014752088
    %v614 = vmul.f32 %v598, %v613
    %v615 = vadd.f32 %v614, 0.112945676
    %v616 = vmul.f32 %v598, %v615
    %v617 = vadd.f32 %v616, 0.4994258
    %v618 = vmul.f32 %v598, %v617
    %v619 = vadd.f32 %v618, 1.0
    %v620 = vrcp.pop %v619
    %v621 = vmul.f32 %v619, %v620
    %v622 = vsub.f32 1.0, %v621
    %v623 = vmul.f32 %v620, %v622
    %v624 = vadd.f32 %v620, %v623
    %vm625 = vweird.f32 %v619
    %vm626 = vweird.f32 %v620
    %vm627 = vmor %vm625, %vm626
    %v628 = vsel %vm627, %v620, %v624
    %v629 = vand.u32 2147483647, %v619
    %vm630 = vcmp.eq.f32.partialorder %v629, 8.507059e+37
    %v631 = vand.u32 %v619, 2147483648
    %v632 = vor.u32 1.1754944e-38, %v631
    %v633 = vsel %vm630, %v632, %v628
    %v634 = vmul.f32 %v609, %v633
    %v635 = vmin.f32 %v634, 1.0
    %v636 = vmax.f32 %v635, -1.0
    %v637 = vmul.f32 %v395, %v395
    %v638 = vmin.f32 16.0, %v637
    %v639 = vmul.f32 %v638, 2.1237322e-06
    %v640 = vadd.f32 %v639, 0.00028619796
    %v641 = vmul.f32 %v638, %v640
    %v642 = vadd.f32 %v641, 0.0036580483
    %v643 = vmul.f32 %v638, %v642
    %v644 = vadd.f32 %v643, 0.05243302
    %v645 = vmul.f32 %v638, %v644
    %v646 = vadd.f32 %v645, 0.18741608
    %v647 = vmul.f32 %v638, %v646
    %v648 = vadd.f32 %v647, 1.1283791
    %v649 = vmul.f32 %v395, %v648
    %v650 = vmul.f32 %v638, 3.8918573e-05
    %v651 = vadd.f32 %v650, 0.001143296
    %v652 = vmul.f32 %v638, %v651
    %v653 = vadd.f32 %v652, 0.014752088
    %v654 = vmul.f32 %v638, %v653
    %v655 = vadd.f32 %v654, 0.112945676
    %v656 = vmul.f32 %v638, %v655
    %v657 = vadd.f32 %v656, 0.4994258
    %v658 = vmul.f32 %v638, %v657
    %v659 = vadd.f32 %v658, 1.0
    %v660 = vrcp.pop %v659
    %v661 = vmul.f32 %v659, %v660
    %v662 = vsub.f32 1.0, %v661
    %v663 = vmul.f32 %v660, %v662
    %v664 = vadd.f32 %v660, %v663
    %vm665 = vweird.f32 %v659
    %vm666 = vweird.f32 %v660
    %vm667 = vmor %vm665, %vm666
    %v668 = vsel %vm667, %v660, %v664
    %v669 = vand.u32 2147483647, %v659
    %vm670 = vcmp.eq.f32.partialorder %v669, 8.507059e+37
    %v671 = vand.u32 %v659, 2147483648
    %v672 = vor.u32 1.1754944e-38, %v671
    %v673 = vsel %vm670, %v672, %v668
    %v674 = vmul.f32 %v649, %v673
    %v675 = vmin.f32 %v674, 1.0
    %v676 = vmax.f32 %v675, -1.0
    %v677 = vmul.f32 %v396, %v396
    %v678 = vmin.f32 16.0, %v677
    %v679 = vmul.f32 %v678, 2.1237322e-06
    %v680 = vadd.f32 %v679, 0.00028619796
    %v681 = vmul.f32 %v678, %v680
    %v682 = vadd.f32 %v681, 0.0036580483
    %v683 = vmul.f32 %v678, %v682
    %v684 = vadd.f32 %v683, 0.05243302
    %v685 = vmul.f32 %v678, %v684
    %v686 = vadd.f32 %v685, 0.18741608
    %v687 = vmul.f32 %v678, %v686
    %v688 = vadd.f32 %v687, 1.1283791
    %v689 = vmul.f32 %v396, %v688
    %v690 = vmul.f32 %v678, 3.8918573e-05
    %v691 = vadd.f32 %v690, 0.001143296
    %v692 = vmul.f32 %v678, %v691
    %v693 = vadd.f32 %v692, 0.014752088
    %v694 = vmul.f32 %v678, %v693
    %v695 = vadd.f32 %v694, 0.112945676
    %v696 = vmul.f32 %v678, %v695
    %v697 = vadd.f32 %v696, 0.4994258
    %v698 = vmul.f32 %v678, %v697
    %v699 = vadd.f32 %v698, 1.0
    %v700 = vrcp.pop %v699
    %v701 = vmul.f32 %v699, %v700
    %v702 = vsub.f32 1.0, %v701
    %v703 = vmul.f32 %v700, %v702
    %v704 = vadd.f32 %v700, %v703
    %vm705 = vweird.f32 %v699
    %vm706 = vweird.f32 %v700
    %vm707 = vmor %vm705, %vm706
    %v708 = vsel %vm707, %v700, %v704
    %v709 = vand.u32 2147483647, %v699
    %vm710 = vcmp.eq.f32.partialorder %v709, 8.507059e+37
    %v711 = vand.u32 %v699, 2147483648
    %v712 = vor.u32 1.1754944e-38, %v711
    %v713 = vsel %vm710, %v712, %v708
    %v714 = vmul.f32 %v689, %v713
    %v715 = vmin.f32 %v714, 1.0
    %v716 = vmax.f32 %v715, -1.0
    %v717 = vadd.f32 %v436, 1.0
    %v718 = vadd.f32 %v476, 1.0
    %v719 = vadd.f32 %v516, 1.0
    %v720 = vadd.f32 %v556, 1.0
    %v721 = vadd.f32 %v596, 1.0
    %v722 = vadd.f32 %v636, 1.0
    %v723 = vadd.f32 %v676, 1.0
    %v724 = vadd.f32 %v716, 1.0
    %v725 = vmul.f32 %v381, %v717
    %v726 = vmul.f32 %v382, %v718
    %v727 = vmul.f32 %v383, %v719
    %v728 = vmul.f32 %v384, %v720
    %v729 = vmul.f32 %v385, %v721
    %v730 = vmul.f32 %v386, %v722
    %v731 = vmul.f32 %v387, %v723
    %v732 = vmul.f32 %v388, %v724
    %733 = vst [vmem:[%s5] sm:$0xff] %v725
    %734 = vst [vmem:[%s5 + $0x8] sm:$0xff] %v726
    %735 = vst [vmem:[%s5 + $0x10] sm:$0xff] %v727
    %736 = vst [vmem:[%s5 + $0x18] sm:$0xff] %v728
    %737 = vst [vmem:[%s5 + $0x20] sm:$0xff] %v729
    %738 = vst [vmem:[%s5 + $0x28] sm:$0xff] %v730
    %739 = vst [vmem:[%s5 + $0x30] sm:$0xff] %v731
    %740 = vst [vmem:[%s5 + $0x38] sm:$0xff] %v732
    // Predicated region
    $region34: #{mae_decoder_forward.2} parent=1 // pred_check
      _
    $region35: #{mae_decoder_forward.2} parent=1 // pred_check_branch
      %742 = sbr.rel (0) target = $region37
    $region36: #{mae_decoder_forward.2} parent=1 // pred_region
      _
    $region37: #{mae_decoder_forward.2} parent=1 // pred_fallthru
      _
    // Predicated region
    $region38: #{mae_decoder_forward.2} parent=1 // pred_check
      _
    $region39: #{mae_decoder_forward.2} parent=1 // pred_check_branch
      %744 = sbr.rel (0) target = $region41
    $region40: #{mae_decoder_forward.2} parent=1 // pred_region
      _
    $region41: #{mae_decoder_forward.2} parent=1 // pred_fallthru
      _
    %745 = vsyncpa [#allocation3], 1
    %746 = vsyncpa [#allocation5], 1

// kernel: mae_decoder_forward.3
$region0: #{mae_decoder_forward.3}
  #allocation0 [shape = 'u32[]', space=smem, size = 0x4, offset = 0x4, fixed_abs, tag = 'smem constant byte address 0x4 - core index']
  #allocation1 [shape = 'u32[72,128]{1,0:T(1,128)}', space=vmem, size = 0x9000, scoped, tag = 'internal scratch']
  %s0 = inlined_call_operand.vmem [shape: f32[512,16], index: 0, kind: input, shape index: {}]
  %s1 = inlined_call_operand.vmem [shape: f32[16,128], index: 1, kind: input, shape index: {}]
  %s2 = inlined_call_operand.vmem [shape: f32[1,128], index: 2, kind: input, shape index: {}]
  %s3 = inlined_call_operand.vmem [shape: f32[128,16], index: 3, kind: input, shape index: {}]
  %s4 = inlined_call_operand.vmem [shape: f32[1,16], index: 4, kind: input, shape index: {}]
  %s5 = inlined_call_operand.vmem [shape: f32[512,16], index: 5, kind: output, shape index: {}]
  %s6 = sld [smem:[#allocation0]]
  $region30: #{mae_decoder_forward.3} parent=0
    _
  %s8 = ssub.s32 1, %s6
  %s9 = scalar_select 0, %s8, %s6
  // Predicated region
  $region2: #{mae_decoder_forward.3} parent=0 // pred_check
    _
  $region3: #{mae_decoder_forward.3} parent=0 // pred_check_branch
    %11 = sbr.rel (0) target = $region5
  $region4: #{mae_decoder_forward.3} parent=0 // pred_region
    _
  $region5: #{mae_decoder_forward.3} parent=0 // pred_fallthru
    _
  // Predicated region
  $region6: #{mae_decoder_forward.3} parent=0 // pred_check
    _
  $region7: #{mae_decoder_forward.3} parent=0 // pred_check_branch
    %13 = sbr.rel (0) target = $region9
  $region8: #{mae_decoder_forward.3} parent=0 // pred_region
    _
  $region9: #{mae_decoder_forward.3} parent=0 // pred_fallthru
    _
  // Predicated region
  $region10: #{mae_decoder_forward.3} parent=0 // pred_check
    _
  $region11: #{mae_decoder_forward.3} parent=0 // pred_check_branch
    %15 = sbr.rel (0) target = $region13
  $region12: #{mae_decoder_forward.3} parent=0 // pred_region
    _
  $region13: #{mae_decoder_forward.3} parent=0 // pred_fallthru
    _
  // Predicated region
  $region14: #{mae_decoder_forward.3} parent=0 // pred_check
    _
  $region15: #{mae_decoder_forward.3} parent=0 // pred_check_branch
    %17 = sbr.rel (0) target = $region17
  $region16: #{mae_decoder_forward.3} parent=0 // pred_region
    _
  $region17: #{mae_decoder_forward.3} parent=0 // pred_fallthru
    _
  // Predicated region
  $region18: #{mae_decoder_forward.3} parent=0 // pred_check
    _
  $region19: #{mae_decoder_forward.3} parent=0 // pred_check_branch
    %19 = sbr.rel (0) target = $region21
  $region20: #{mae_decoder_forward.3} parent=0 // pred_region
    _
  $region21: #{mae_decoder_forward.3} parent=0 // pred_fallthru
    _
  %v20 = vld [vmem:[%s0] sm:$0xff]
  %v21 = vld [vmem:[%s0 + $0x8] sm:$0xff]
  %v22 = vld [vmem:[%s0 + $0x10] sm:$0xff]
  %v23 = vld [vmem:[%s0 + $0x18] sm:$0xff]
  %v24 = vld [vmem:[%s0 + $0x20] sm:$0xff]
  %v25 = vld [vmem:[%s0 + $0x28] sm:$0xff]
  %v26 = vld [vmem:[%s0 + $0x30] sm:$0xff]
  %v27 = vld [vmem:[%s0 + $0x38] sm:$0xff]
  %v28 = vld [vmem:[%s0 + $0x40] sm:$0xff]
  %v29 = vld [vmem:[%s0 + $0x48] sm:$0xff]
  %v30 = vld [vmem:[%s0 + $0x50] sm:$0xff]
  %v31 = vld [vmem:[%s0 + $0x58] sm:$0xff]
  %v32 = vld [vmem:[%s0 + $0x60] sm:$0xff]
  %v33 = vld [vmem:[%s0 + $0x68] sm:$0xff]
  %v34 = vld [vmem:[%s0 + $0x70] sm:$0xff]
  %v35 = vld [vmem:[%s0 + $0x78] sm:$0xff]
  %v36 = vld [vmem:[%s0 + $0x80] sm:$0xff]
  %v37 = vld [vmem:[%s0 + $0x88] sm:$0xff]
  %v38 = vld [vmem:[%s0 + $0x90] sm:$0xff]
  %v39 = vld [vmem:[%s0 + $0x98] sm:$0xff]
  %v40 = vld [vmem:[%s0 + $0xa0] sm:$0xff]
  %v41 = vld [vmem:[%s0 + $0xa8] sm:$0xff]
  %v42 = vld [vmem:[%s0 + $0xb0] sm:$0xff]
  %v43 = vld [vmem:[%s0 + $0xb8] sm:$0xff]
  %v44 = vld [vmem:[%s0 + $0xc0] sm:$0xff]
  %v45 = vld [vmem:[%s0 + $0xc8] sm:$0xff]
  %v46 = vld [vmem:[%s0 + $0xd0] sm:$0xff]
  %v47 = vld [vmem:[%s0 + $0xd8] sm:$0xff]
  %v48 = vld [vmem:[%s0 + $0xe0] sm:$0xff]
  %v49 = vld [vmem:[%s0 + $0xe8] sm:$0xff]
  %v50 = vld [vmem:[%s0 + $0xf0] sm:$0xff]
  %v51 = vld [vmem:[%s0 + $0xf8] sm:$0xff]
  %v52 = vld [vmem:[%s0 + $0x100] sm:$0xff]
  %v53 = vld [vmem:[%s0 + $0x108] sm:$0xff]
  %v54 = vld [vmem:[%s0 + $0x110] sm:$0xff]
  %v55 = vld [vmem:[%s0 + $0x118] sm:$0xff]
  %v56 = vld [vmem:[%s0 + $0x120] sm:$0xff]
  %v57 = vld [vmem:[%s0 + $0x128] sm:$0xff]
  %v58 = vld [vmem:[%s0 + $0x130] sm:$0xff]
  %v59 = vld [vmem:[%s0 + $0x138] sm:$0xff]
  %v60 = vld [vmem:[%s0 + $0x140] sm:$0xff]
  %v61 = vld [vmem:[%s0 + $0x148] sm:$0xff]
  %v62 = vld [vmem:[%s0 + $0x150] sm:$0xff]
  %v63 = vld [vmem:[%s0 + $0x158] sm:$0xff]
  %v64 = vld [vmem:[%s0 + $0x160] sm:$0xff]
  %v65 = vld [vmem:[%s0 + $0x168] sm:$0xff]
  %v66 = vld [vmem:[%s0 + $0x170] sm:$0xff]
  %v67 = vld [vmem:[%s0 + $0x178] sm:$0xff]
  %v68 = vld [vmem:[%s0 + $0x180] sm:$0xff]
  %v69 = vld [vmem:[%s0 + $0x188] sm:$0xff]
  %v70 = vld [vmem:[%s0 + $0x190] sm:$0xff]
  %v71 = vld [vmem:[%s0 + $0x198] sm:$0xff]
  %v72 = vld [vmem:[%s0 + $0x1a0] sm:$0xff]
  %v73 = vld [vmem:[%s0 + $0x1a8] sm:$0xff]
  %v74 = vld [vmem:[%s0 + $0x1b0] sm:$0xff]
  %v75 = vld [vmem:[%s0 + $0x1b8] sm:$0xff]
  %v76 = vld [vmem:[%s0 + $0x1c0] sm:$0xff]
  %v77 = vld [vmem:[%s0 + $0x1c8] sm:$0xff]
  %v78 = vld [vmem:[%s0 + $0x1d0] sm:$0xff]
  %v79 = vld [vmem:[%s0 + $0x1d8] sm:$0xff]
  %v80 = vld [vmem:[%s0 + $0x1e0] sm:$0xff]
  %v81 = vld [vmem:[%s0 + $0x1e8] sm:$0xff]
  %v82 = vld [vmem:[%s0 + $0x1f0] sm:$0xff]
  %v83 = vld [vmem:[%s0 + $0x1f8] sm:$0xff]
  %v84 = vld [vmem:[%s1] sm:$0xff]
  %v85 = vld [vmem:[%s1 + $0x8] sm:$0xff]
  %v86 = vld [vmem:[%s2] sm:$0x1]
  %v88 = vperm.slane %v86, 0
  %vm90 = vcmask 130048
  %v92 = vsel %vm90, %v20, 0
  %v95 = vsel %vm90, %v21, 0
  %v98 = vsel %vm90, %v22, 0
  %v101 = vsel %vm90, %v23, 0
  %v104 = vsel %vm90, %v24, 0
  %v107 = vsel %vm90, %v25, 0
  %v110 = vsel %vm90, %v26, 0
  %v113 = vsel %vm90, %v27, 0
  %v116 = vsel %vm90, %v28, 0
  %v119 = vsel %vm90, %v29, 0
  %v122 = vsel %vm90, %v30, 0
  %v125 = vsel %vm90, %v31, 0
  %v128 = vsel %vm90, %v32, 0
  %v131 = vsel %vm90, %v33, 0
  %v134 = vsel %vm90, %v34, 0
  %v137 = vsel %vm90, %v35, 0
  %v140 = vsel %vm90, %v36, 0
  %v143 = vsel %vm90, %v37, 0
  %v146 = vsel %vm90, %v38, 0
  %v149 = vsel %vm90, %v39, 0
  %v152 = vsel %vm90, %v40, 0
  %v155 = vsel %vm90, %v41, 0
  %v158 = vsel %vm90, %v42, 0
  %v161 = vsel %vm90, %v43, 0
  %v164 = vsel %vm90, %v44, 0
  %v167 = vsel %vm90, %v45, 0
  %v170 = vsel %vm90, %v46, 0
  %v173 = vsel %vm90, %v47, 0
  %v176 = vsel %vm90, %v48, 0
  %v179 = vsel %vm90, %v49, 0
  %v182 = vsel %vm90, %v50, 0
  %v185 = vsel %vm90, %v51, 0
  %v188 = vsel %vm90, %v52, 0
  %v191 = vsel %vm90, %v53, 0
  %v194 = vsel %vm90, %v54, 0
  %v197 = vsel %vm90, %v55, 0
  %v200 = vsel %vm90, %v56, 0
  %v203 = vsel %vm90, %v57, 0
  %v206 = vsel %vm90, %v58, 0
  %v209 = vsel %vm90, %v59, 0
  %v212 = vsel %vm90, %v60, 0
  %v215 = vsel %vm90, %v61, 0
  %v218 = vsel %vm90, %v62, 0
  %v221 = vsel %vm90, %v63, 0
  %v224 = vsel %vm90, %v64, 0
  %v227 = vsel %vm90, %v65, 0
  %v230 = vsel %vm90, %v66, 0
  %v233 = vsel %vm90, %v67, 0
  %v236 = vsel %vm90, %v68, 0
  %v239 = vsel %vm90, %v69, 0
  %v242 = vsel %vm90, %v70, 0
  %v245 = vsel %vm90, %v71, 0
  %v248 = vsel %vm90, %v72, 0
  %v251 = vsel %vm90, %v73, 0
  %v254 = vsel %vm90, %v74, 0
  %v257 = vsel %vm90, %v75, 0
  %v260 = vsel %vm90, %v76, 0
  %v263 = vsel %vm90, %v77, 0
  %v266 = vsel %vm90, %v78, 0
  %v269 = vsel %vm90, %v79, 0
  %v272 = vsel %vm90, %v80, 0
  %v275 = vsel %vm90, %v81, 0
  %v278 = vsel %vm90, %v82, 0
  %v281 = vsel %vm90, %v83, 0
  %283 = vmatpush.msra.mxu0 0.0
  %284 = vmatpush.msra.mxu0 0.0
  %285 = vmatpush.msra.mxu0 0.0
  %286 = vmatpush.msra.mxu0 0.0
  %287 = vmatpush.msra.mxu0 0.0
  %288 = vmatpush.msra.mxu0 0.0
  %289 = vmatpush.msra.mxu0 0.0
  %290 = vmatpush.msra.mxu0 0.0
  %291 = vmatpush.msra.mxu0 0.0
  %292 = vmatpush.msra.mxu0 0.0
  %293 = vmatpush.msra.mxu0 0.0
  %294 = vmatpush.msra.mxu0 0.0
  %295 = vmatpush.msra.mxu0 0.0
  %296 = vmatpush.msra.mxu0 0.0
  %297 = vmatpush.msra.mxu0 %v85
  %298 = vmatpush.msra.mxu0 %v84
  %299 = vmatmul.f32.gmra.mxu0 %v92
  %v300 = vpop.f32.mrf.mxu0
  %v301 = vadd.f32 %v88, %v300
  %302 = vmatmul.f32.gmra.mxu0 %v95
  %v303 = vpop.f32.mrf.mxu0
  %v304 = vadd.f32 %v88, %v303
  %305 = vmatmul.f32.gmra.mxu0 %v98
  %v306 = vpop.f32.mrf.mxu0
  %v307 = vadd.f32 %v88, %v306
  %308 = vmatmul.f32.gmra.mxu0 %v101
  %v309 = vpop.f32.mrf.mxu0
  %v310 = vadd.f32 %v88, %v309
  %311 = vmatmul.f32.gmra.mxu0 %v104
  %v312 = vpop.f32.mrf.mxu0
  %v313 = vadd.f32 %v88, %v312
  %314 = vmatmul.f32.gmra.mxu0 %v107
  %v315 = vpop.f32.mrf.mxu0
  %v316 = vadd.f32 %v88, %v315
  %317 = vmatmul.f32.gmra.mxu0 %v110
  %v318 = vpop.f32.mrf.mxu0
  %v319 = vadd.f32 %v88, %v318
  %320 = vmatmul.f32.gmra.mxu0 %v113
  %v321 = vpop.f32.mrf.mxu0
  %v322 = vadd.f32 %v88, %v321
  %323 = vmatmul.f32.gmra.mxu0 %v116
  %v324 = vpop.f32.mrf.mxu0
  %v325 = vadd.f32 %v88, %v324
  %326 = vmatmul.f32.gmra.mxu0 %v119
  %v327 = vpop.f32.mrf.mxu0
  %v328 = vadd.f32 %v88, %v327
  %329 = vmatmul.f32.gmra.mxu0 %v122
  %v330 = vpop.f32.mrf.mxu0
  %v331 = vadd.f32 %v88, %v330
  %332 = vmatmul.f32.gmra.mxu0 %v125
  %v333 = vpop.f32.mrf.mxu0
  %v334 = vadd.f32 %v88, %v333
  %335 = vmatmul.f32.gmra.mxu0 %v128
  %v336 = vpop.f32.mrf.mxu0
  %v337 = vadd.f32 %v88, %v336
  %338 = vmatmul.f32.gmra.mxu0 %v131
  %v339 = vpop.f32.mrf.mxu0
  %v340 = vadd.f32 %v88, %v339
  %341 = vmatmul.f32.gmra.mxu0 %v134
  %v342 = vpop.f32.mrf.mxu0
  %v343 = vadd.f32 %v88, %v342
  %344 = vmatmul.f32.gmra.mxu0 %v137
  %v345 = vpop.f32.mrf.mxu0
  %v346 = vadd.f32 %v88, %v345
  %347 = vmatmul.f32.gmra.mxu0 %v140
  %v348 = vpop.f32.mrf.mxu0
  %v349 = vadd.f32 %v88, %v348
  %350 = vmatmul.f32.gmra.mxu0 %v143
  %v351 = vpop.f32.mrf.mxu0
  %v352 = vadd.f32 %v88, %v351
  %353 = vmatmul.f32.gmra.mxu0 %v146
  %v354 = vpop.f32.mrf.mxu0
  %v355 = vadd.f32 %v88, %v354
  %356 = vmatmul.f32.gmra.mxu0 %v149
  %v357 = vpop.f32.mrf.mxu0
  %v358 = vadd.f32 %v88, %v357
  %359 = vmatmul.f32.gmra.mxu0 %v152
  %v360 = vpop.f32.mrf.mxu0
  %v361 = vadd.f32 %v88, %v360
  %362 = vmatmul.f32.gmra.mxu0 %v155
  %v363 = vpop.f32.mrf.mxu0
  %v364 = vadd.f32 %v88, %v363
  %365 = vmatmul.f32.gmra.mxu0 %v158
  %v366 = vpop.f32.mrf.mxu0
  %v367 = vadd.f32 %v88, %v366
  %368 = vmatmul.f32.gmra.mxu0 %v161
  %v369 = vpop.f32.mrf.mxu0
  %v370 = vadd.f32 %v88, %v369
  %371 = vmatmul.f32.gmra.mxu0 %v164
  %v372 = vpop.f32.mrf.mxu0
  %v373 = vadd.f32 %v88, %v372
  %374 = vmatmul.f32.gmra.mxu0 %v167
  %v375 = vpop.f32.mrf.mxu0
  %v376 = vadd.f32 %v88, %v375
  %377 = vmatmul.f32.gmra.mxu0 %v170
  %v378 = vpop.f32.mrf.mxu0
  %v379 = vadd.f32 %v88, %v378
  %380 = vmatmul.f32.gmra.mxu0 %v173
  %v381 = vpop.f32.mrf.mxu0
  %v382 = vadd.f32 %v88, %v381
  %383 = vmatmul.f32.gmra.mxu0 %v176
  %v384 = vpop.f32.mrf.mxu0
  %v385 = vadd.f32 %v88, %v384
  %386 = vmatmul.f32.gmra.mxu0 %v179
  %v387 = vpop.f32.mrf.mxu0
  %v388 = vadd.f32 %v88, %v387
  %389 = vmatmul.f32.gmra.mxu0 %v182
  %v390 = vpop.f32.mrf.mxu0
  %v391 = vadd.f32 %v88, %v390
  %392 = vmatmul.f32.gmra.mxu0 %v185
  %v393 = vpop.f32.mrf.mxu0
  %v394 = vadd.f32 %v88, %v393
  %395 = vmatmul.f32.gmra.mxu0 %v188
  %v396 = vpop.f32.mrf.mxu0
  %v397 = vadd.f32 %v88, %v396
  %398 = vmatmul.f32.gmra.mxu0 %v191
  %v399 = vpop.f32.mrf.mxu0
  %v400 = vadd.f32 %v88, %v399
  %401 = vmatmul.f32.gmra.mxu0 %v194
  %v402 = vpop.f32.mrf.mxu0
  %v403 = vadd.f32 %v88, %v402
  %404 = vmatmul.f32.gmra.mxu0 %v197
  %v405 = vpop.f32.mrf.mxu0
  %v406 = vadd.f32 %v88, %v405
  %407 = vmatmul.f32.gmra.mxu0 %v200
  %v408 = vpop.f32.mrf.mxu0
  %v409 = vadd.f32 %v88, %v408
  %410 = vmatmul.f32.gmra.mxu0 %v203
  %v411 = vpop.f32.mrf.mxu0
  %v412 = vadd.f32 %v88, %v411
  %413 = vmatmul.f32.gmra.mxu0 %v206
  %v414 = vpop.f32.mrf.mxu0
  %v415 = vadd.f32 %v88, %v414
  %416 = vmatmul.f32.gmra.mxu0 %v209
  %v417 = vpop.f32.mrf.mxu0
  %v418 = vadd.f32 %v88, %v417
  %419 = vmatmul.f32.gmra.mxu0 %v212
  %v420 = vpop.f32.mrf.mxu0
  %v421 = vadd.f32 %v88, %v420
  %422 = vmatmul.f32.gmra.mxu0 %v215
  %v423 = vpop.f32.mrf.mxu0
  %v424 = vadd.f32 %v88, %v423
  %425 = vmatmul.f32.gmra.mxu0 %v218
  %v426 = vpop.f32.mrf.mxu0
  %v427 = vadd.f32 %v88, %v426
  %428 = vmatmul.f32.gmra.mxu0 %v221
  %v429 = vpop.f32.mrf.mxu0
  %v430 = vadd.f32 %v88, %v429
  %431 = vmatmul.f32.gmra.mxu0 %v224
  %v432 = vpop.f32.mrf.mxu0
  %v433 = vadd.f32 %v88, %v432
  %434 = vmatmul.f32.gmra.mxu0 %v227
  %v435 = vpop.f32.mrf.mxu0
  %v436 = vadd.f32 %v88, %v435
  %437 = vmatmul.f32.gmra.mxu0 %v230
  %v438 = vpop.f32.mrf.mxu0
  %v439 = vadd.f32 %v88, %v438
  %440 = vmatmul.f32.gmra.mxu0 %v233
  %v441 = vpop.f32.mrf.mxu0
  %v442 = vadd.f32 %v88, %v441
  %443 = vmatmul.f32.gmra.mxu0 %v236
  %v444 = vpop.f32.mrf.mxu0
  %v445 = vadd.f32 %v88, %v444
  %446 = vmatmul.f32.gmra.mxu0 %v239
  %v447 = vpop.f32.mrf.mxu0
  %v448 = vadd.f32 %v88, %v447
  %449 = vmatmul.f32.gmra.mxu0 %v242
  %v450 = vpop.f32.mrf.mxu0
  %v451 = vadd.f32 %v88, %v450
  %452 = vmatmul.f32.gmra.mxu0 %v245
  %v453 = vpop.f32.mrf.mxu0
  %v454 = vadd.f32 %v88, %v453
  %455 = vmatmul.f32.gmra.mxu0 %v248
  %v456 = vpop.f32.mrf.mxu0
  %v457 = vadd.f32 %v88, %v456
  %458 = vmatmul.f32.gmra.mxu0 %v251
  %v459 = vpop.f32.mrf.mxu0
  %v460 = vadd.f32 %v88, %v459
  %461 = vmatmul.f32.gmra.mxu0 %v254
  %v462 = vpop.f32.mrf.mxu0
  %v463 = vadd.f32 %v88, %v462
  %464 = vmatmul.f32.gmra.mxu0 %v257
  %v465 = vpop.f32.mrf.mxu0
  %v466 = vadd.f32 %v88, %v465
  %467 = vmatmul.f32.gmra.mxu0 %v260
  %v468 = vpop.f32.mrf.mxu0
  %v469 = vadd.f32 %v88, %v468
  %470 = vmatmul.f32.gmra.mxu0 %v263
  %v471 = vpop.f32.mrf.mxu0
  %v472 = vadd.f32 %v88, %v471
  %473 = vmatmul.f32.gmra.mxu0 %v266
  %v474 = vpop.f32.mrf.mxu0
  %v475 = vadd.f32 %v88, %v474
  %476 = vmatmul.f32.gmra.mxu0 %v269
  %v477 = vpop.f32.mrf.mxu0
  %v478 = vadd.f32 %v88, %v477
  %479 = vmatmul.f32.gmra.mxu0 %v272
  %v480 = vpop.f32.mrf.mxu0
  %v481 = vadd.f32 %v88, %v480
  %482 = vmatmul.f32.gmra.mxu0 %v275
  %v483 = vpop.f32.mrf.mxu0
  %v484 = vadd.f32 %v88, %v483
  %485 = vmatmul.f32.gmra.mxu0 %v278
  %v486 = vpop.f32.mrf.mxu0
  %v487 = vadd.f32 %v88, %v486
  %488 = vmatmul.f32.gmra.mxu0 %v281
  %v489 = vpop.f32.mrf.mxu0
  %v490 = vadd.f32 %v88, %v489
  %491 = vdwg.mxu0
  %v492 = vmul.f32 %v301, 0.5
  %v493 = vmul.f32 %v304, 0.5
  %v494 = vmul.f32 %v307, 0.5
  %v495 = vmul.f32 %v310, 0.5
  %v496 = vmul.f32 %v313, 0.5
  %v497 = vmul.f32 %v316, 0.5
  %v498 = vmul.f32 %v319, 0.5
  %v499 = vmul.f32 %v322, 0.5
  %v500 = vmul.f32 %v325, 0.5
  %v501 = vmul.f32 %v328, 0.5
  %v502 = vmul.f32 %v331, 0.5
  %v503 = vmul.f32 %v334, 0.5
  %v504 = vmul.f32 %v337, 0.5
  %v505 = vmul.f32 %v340, 0.5
  %v506 = vmul.f32 %v343, 0.5
  %v507 = vmul.f32 %v346, 0.5
  %v508 = vmul.f32 %v349, 0.5
  %v509 = vmul.f32 %v352, 0.5
  %v510 = vmul.f32 %v355, 0.5
  %v511 = vmul.f32 %v358, 0.5
  %v512 = vmul.f32 %v361, 0.5
  %v513 = vmul.f32 %v364, 0.5
  %v514 = vmul.f32 %v367, 0.5
  %v515 = vmul.f32 %v370, 0.5
  %v516 = vmul.f32 %v373, 0.5
  %v517 = vmul.f32 %v376, 0.5
  %v518 = vmul.f32 %v379, 0.5
  %v519 = vmul.f32 %v382, 0.5
  %v520 = vmul.f32 %v385, 0.5
  %v521 = vmul.f32 %v388, 0.5
  %v522 = vmul.f32 %v391, 0.5
  %v523 = vmul.f32 %v394, 0.5
  %v524 = vmul.f32 %v397, 0.5
  %v525 = vmul.f32 %v400, 0.5
  %v526 = vmul.f32 %v403, 0.5
  %v527 = vmul.f32 %v406, 0.5
  %v528 = vmul.f32 %v409, 0.5
  %v529 = vmul.f32 %v412, 0.5
  %v530 = vmul.f32 %v415, 0.5
  %v531 = vmul.f32 %v418, 0.5
  %v532 = vmul.f32 %v421, 0.5
  %v533 = vmul.f32 %v424, 0.5
  %v534 = vmul.f32 %v427, 0.5
  %v535 = vmul.f32 %v430, 0.5
  %v536 = vmul.f32 %v433, 0.5
  %v537 = vmul.f32 %v436, 0.5
  %v538 = vmul.f32 %v439, 0.5
  %v539 = vmul.f32 %v442, 0.5
  %v540 = vmul.f32 %v445, 0.5
  %v541 = vmul.f32 %v448, 0.5
  %v542 = vmul.f32 %v451, 0.5
  %v543 = vmul.f32 %v454, 0.5
  %v544 = vmul.f32 %v457, 0.5
  %v545 = vmul.f32 %v460, 0.5
  %v546 = vmul.f32 %v463, 0.5
  %v547 = vmul.f32 %v466, 0.5
  %v548 = vmul.f32 %v469, 0.5
  %v549 = vmul.f32 %v472, 0.5
  %v550 = vmul.f32 %v475, 0.5
  %v551 = vmul.f32 %v478, 0.5
  %v552 = vmul.f32 %v481, 0.5
  %v553 = vmul.f32 %v484, 0.5
  %v554 = vmul.f32 %v487, 0.5
  %v555 = vmul.f32 %v490, 0.5
  %v556 = vmul.f32 %v301, 0.70710677
  %v557 = vmul.f32 %v304, 0.70710677
  %v558 = vmul.f32 %v307, 0.70710677
  %v559 = vmul.f32 %v310, 0.70710677
  %v560 = vmul.f32 %v313, 0.70710677
  %v561 = vmul.f32 %v316, 0.70710677
  %v562 = vmul.f32 %v319, 0.70710677
  %v563 = vmul.f32 %v322, 0.70710677
  %v564 = vmul.f32 %v325, 0.70710677
  %v565 = vmul.f32 %v328, 0.70710677
  %v566 = vmul.f32 %v331, 0.70710677
  %v567 = vmul.f32 %v334, 0.70710677
  %v568 = vmul.f32 %v337, 0.70710677
  %v569 = vmul.f32 %v340, 0.70710677
  %v570 = vmul.f32 %v343, 0.70710677
  %v571 = vmul.f32 %v346, 0.70710677
  %v572 = vmul.f32 %v349, 0.70710677
  %v573 = vmul.f32 %v352, 0.70710677
  %v574 = vmul.f32 %v355, 0.70710677
  %v575 = vmul.f32 %v358, 0.70710677
  %v576 = vmul.f32 %v361, 0.70710677
  %v577 = vmul.f32 %v364, 0.70710677
  %v578 = vmul.f32 %v367, 0.70710677
  %v579 = vmul.f32 %v370, 0.70710677
  %v580 = vmul.f32 %v373, 0.70710677
  %v581 = vmul.f32 %v376, 0.70710677
  %v582 = vmul.f32 %v379, 0.70710677
  %v583 = vmul.f32 %v382, 0.70710677
  %v584 = vmul.f32 %v385, 0.70710677
  %v585 = vmul.f32 %v388, 0.70710677
  %v586 = vmul.f32 %v391, 0.70710677
  %v587 = vmul.f32 %v394, 0.70710677
  %v588 = vmul.f32 %v397, 0.70710677
  %v589 = vmul.f32 %v400, 0.70710677
  %v590 = vmul.f32 %v403, 0.70710677
  %v591 = vmul.f32 %v406, 0.70710677
  %v592 = vmul.f32 %v409, 0.70710677
  %v593 = vmul.f32 %v412, 0.70710677
  %v594 = vmul.f32 %v415, 0.70710677
  %v595 = vmul.f32 %v418, 0.70710677
  %v596 = vmul.f32 %v421, 0.70710677
  %v597 = vmul.f32 %v424, 0.70710677
  %v598 = vmul.f32 %v427, 0.70710677
  %v599 = vmul.f32 %v430, 0.70710677
  %v600 = vmul.f32 %v433, 0.70710677
  %v601 = vmul.f32 %v436, 0.70710677
  %v602 = vmul.f32 %v439, 0.70710677
  %v603 = vmul.f32 %v442, 0.70710677
  %v604 = vmul.f32 %v445, 0.70710677
  %v605 = vmul.f32 %v448, 0.70710677
  %v606 = vmul.f32 %v451, 0.70710677
  %v607 = vmul.f32 %v454, 0.70710677
  %v608 = vmul.f32 %v457, 0.70710677
  %v609 = vmul.f32 %v460, 0.70710677
  %v610 = vmul.f32 %v463, 0.70710677
  %v611 = vmul.f32 %v466, 0.70710677
  %v612 = vmul.f32 %v469, 0.70710677
  %v613 = vmul.f32 %v472, 0.70710677
  %v614 = vmul.f32 %v475, 0.70710677
  %v615 = vmul.f32 %v478, 0.70710677
  %v616 = vmul.f32 %v481, 0.70710677
  %v617 = vmul.f32 %v484, 0.70710677
  %v618 = vmul.f32 %v487, 0.70710677
  %v619 = vmul.f32 %v490, 0.70710677
  %v620 = vmul.f32 %v556, %v556
  %v621 = vmin.f32 16.0, %v620
  %v622 = vmul.f32 %v621, 2.1237322e-06
  %v623 = vadd.f32 %v622, 0.00028619796
  %v624 = vmul.f32 %v621, %v623
  %v625 = vadd.f32 %v624, 0.0036580483
  %v626 = vmul.f32 %v621, %v625
  %v627 = vadd.f32 %v626, 0.05243302
  %v628 = vmul.f32 %v621, %v627
  %v629 = vadd.f32 %v628, 0.18741608
  %v630 = vmul.f32 %v621, %v629
  %v631 = vadd.f32 %v630, 1.1283791
  %v632 = vmul.f32 %v556, %v631
  %v633 = vmul.f32 %v621, 3.8918573e-05
  %v634 = vadd.f32 %v633, 0.001143296
  %v635 = vmul.f32 %v621, %v634
  %v636 = vadd.f32 %v635, 0.014752088
  %v637 = vmul.f32 %v621, %v636
  %v638 = vadd.f32 %v637, 0.112945676
  %v639 = vmul.f32 %v621, %v638
  %v640 = vadd.f32 %v639, 0.4994258
  %v641 = vmul.f32 %v621, %v640
  %v642 = vadd.f32 %v641, 1.0
  %v643 = vrcp.pop %v642
  %v644 = vmul.f32 %v642, %v643
  %v645 = vsub.f32 1.0, %v644
  %v646 = vmul.f32 %v643, %v645
  %v647 = vadd.f32 %v643, %v646
  %vm648 = vweird.f32 %v642
  %vm649 = vweird.f32 %v643
  %vm650 = vmor %vm648, %vm649
  %v651 = vsel %vm650, %v643, %v647
  %v652 = vand.u32 2147483647, %v642
  %vm653 = vcmp.eq.f32.partialorder %v652, 8.507059e+37
  %v654 = vand.u32 %v642, 2147483648
  %v655 = vor.u32 1.1754944e-38, %v654
  %v656 = vsel %vm653, %v655, %v651
  %v657 = vmul.f32 %v632, %v656
  %v658 = vmin.f32 %v657, 1.0
  %v659 = vmax.f32 %v658, -1.0
  %v660 = vmul.f32 %v557, %v557
  %v661 = vmin.f32 16.0, %v660
  %v662 = vmul.f32 %v661, 2.1237322e-06
  %v663 = vadd.f32 %v662, 0.00028619796
  %v664 = vmul.f32 %v661, %v663
  %v665 = vadd.f32 %v664, 0.0036580483
  %v666 = vmul.f32 %v661, %v665
  %v667 = vadd.f32 %v666, 0.05243302
  %v668 = vmul.f32 %v661, %v667
  %v669 = vadd.f32 %v668, 0.18741608
  %v670 = vmul.f32 %v661, %v669
  %v671 = vadd.f32 %v670, 1.1283791
  %v672 = vmul.f32 %v557, %v671
  %v673 = vmul.f32 %v661, 3.8918573e-05
  %v674 = vadd.f32 %v673, 0.001143296
  %v675 = vmul.f32 %v661, %v674
  %v676 = vadd.f32 %v675, 0.014752088
  %v677 = vmul.f32 %v661, %v676
  %v678 = vadd.f32 %v677, 0.112945676
  %v679 = vmul.f32 %v661, %v678
  %v680 = vadd.f32 %v679, 0.4994258
  %v681 = vmul.f32 %v661, %v680
  %v682 = vadd.f32 %v681, 1.0
  %v683 = vrcp.pop %v682
  %v684 = vmul.f32 %v682, %v683
  %v685 = vsub.f32 1.0, %v684
  %v686 = vmul.f32 %v683, %v685
  %v687 = vadd.f32 %v683, %v686
  %vm688 = vweird.f32 %v682
  %vm689 = vweird.f32 %v683
  %vm690 = vmor %vm688, %vm689
  %v691 = vsel %vm690, %v683, %v687
  %v692 = vand.u32 2147483647, %v682
  %vm693 = vcmp.eq.f32.partialorder %v692, 8.507059e+37
  %v694 = vand.u32 %v682, 2147483648
  %v695 = vor.u32 1.1754944e-38, %v694
  %v696 = vsel %vm693, %v695, %v691
  %v697 = vmul.f32 %v672, %v696
  %v698 = vmin.f32 %v697, 1.0
  %v699 = vmax.f32 %v698, -1.0
  %v700 = vmul.f32 %v558, %v558
  %v701 = vmin.f32 16.0, %v700
  %v702 = vmul.f32 %v701, 2.1237322e-06
  %v703 = vadd.f32 %v702, 0.00028619796
  %v704 = vmul.f32 %v701, %v703
  %v705 = vadd.f32 %v704, 0.0036580483
  %v706 = vmul.f32 %v701, %v705
  %v707 = vadd.f32 %v706, 0.05243302
  %v708 = vmul.f32 %v701, %v707
  %v709 = vadd.f32 %v708, 0.18741608
  %v710 = vmul.f32 %v701, %v709
  %v711 = vadd.f32 %v710, 1.1283791
  %v712 = vmul.f32 %v558, %v711
  %v713 = vmul.f32 %v701, 3.8918573e-05
  %v714 = vadd.f32 %v713, 0.001143296
  %v715 = vmul.f32 %v701, %v714
  %v716 = vadd.f32 %v715, 0.014752088
  %v717 = vmul.f32 %v701, %v716
  %v718 = vadd.f32 %v717, 0.112945676
  %v719 = vmul.f32 %v701, %v718
  %v720 = vadd.f32 %v719, 0.4994258
  %v721 = vmul.f32 %v701, %v720
  %v722 = vadd.f32 %v721, 1.0
  %v723 = vrcp.pop %v722
  %v724 = vmul.f32 %v722, %v723
  %v725 = vsub.f32 1.0, %v724
  %v726 = vmul.f32 %v723, %v725
  %v727 = vadd.f32 %v723, %v726
  %vm728 = vweird.f32 %v722
  %vm729 = vweird.f32 %v723
  %vm730 = vmor %vm728, %vm729
  %v731 = vsel %vm730, %v723, %v727
  %v732 = vand.u32 2147483647, %v722
  %vm733 = vcmp.eq.f32.partialorder %v732, 8.507059e+37
  %v734 = vand.u32 %v722, 2147483648
  %v735 = vor.u32 1.1754944e-38, %v734
  %v736 = vsel %vm733, %v735, %v731
  %v737 = vmul.f32 %v712, %v736
  %v738 = vmin.f32 %v737, 1.0
  %v739 = vmax.f32 %v738, -1.0
  %v740 = vmul.f32 %v559, %v559
  %v741 = vmin.f32 16.0, %v740
  %v742 = vmul.f32 %v741, 2.1237322e-06
  %v743 = vadd.f32 %v742, 0.00028619796
  %v744 = vmul.f32 %v741, %v743
  %v745 = vadd.f32 %v744, 0.0036580483
  %v746 = vmul.f32 %v741, %v745
  %v747 = vadd.f32 %v746, 0.05243302
  %v748 = vmul.f32 %v741, %v747
  %v749 = vadd.f32 %v748, 0.18741608
  %v750 = vmul.f32 %v741, %v749
  %v751 = vadd.f32 %v750, 1.1283791
  %v752 = vmul.f32 %v559, %v751
  %v753 = vmul.f32 %v741, 3.8918573e-05
  %v754 = vadd.f32 %v753, 0.001143296
  %v755 = vmul.f32 %v741, %v754
  %v756 = vadd.f32 %v755, 0.014752088
  %v757 = vmul.f32 %v741, %v756
  %v758 = vadd.f32 %v757, 0.112945676
  %v759 = vmul.f32 %v741, %v758
  %v760 = vadd.f32 %v759, 0.4994258
  %v761 = vmul.f32 %v741, %v760
  %v762 = vadd.f32 %v761, 1.0
  %v763 = vrcp.pop %v762
  %v764 = vmul.f32 %v762, %v763
  %v765 = vsub.f32 1.0, %v764
  %v766 = vmul.f32 %v763, %v765
  %v767 = vadd.f32 %v763, %v766
  %vm768 = vweird.f32 %v762
  %vm769 = vweird.f32 %v763
  %vm770 = vmor %vm768, %vm769
  %v771 = vsel %vm770, %v763, %v767
  %v772 = vand.u32 2147483647, %v762
  %vm773 = vcmp.eq.f32.partialorder %v772, 8.507059e+37
  %v774 = vand.u32 %v762, 2147483648
  %v775 = vor.u32 1.1754944e-38, %v774
  %v776 = vsel %vm773, %v775, %v771
  %v777 = vmul.f32 %v752, %v776
  %v778 = vmin.f32 %v777, 1.0
  %v779 = vmax.f32 %v778, -1.0
  %v780 = vmul.f32 %v560, %v560
  %v781 = vmin.f32 16.0, %v780
  %v782 = vmul.f32 %v781, 2.1237322e-06
  %v783 = vadd.f32 %v782, 0.00028619796
  %v784 = vmul.f32 %v781, %v783
  %v785 = vadd.f32 %v784, 0.0036580483
  %v786 = vmul.f32 %v781, %v785
  %v787 = vadd.f32 %v786, 0.05243302
  %v788 = vmul.f32 %v781, %v787
  %v789 = vadd.f32 %v788, 0.18741608
  %v790 = vmul.f32 %v781, %v789
  %v791 = vadd.f32 %v790, 1.1283791
  %v792 = vmul.f32 %v560, %v791
  %v793 = vmul.f32 %v781, 3.8918573e-05
  %v794 = vadd.f32 %v793, 0.001143296
  %v795 = vmul.f32 %v781, %v794
  %v796 = vadd.f32 %v795, 0.014752088
  %v797 = vmul.f32 %v781, %v796
  %v798 = vadd.f32 %v797, 0.112945676
  %v799 = vmul.f32 %v781, %v798
  %v800 = vadd.f32 %v799, 0.4994258
  %v801 = vmul.f32 %v781, %v800
  %v802 = vadd.f32 %v801, 1.0
  %v803 = vrcp.pop %v802
  %v804 = vmul.f32 %v802, %v803
  %v805 = vsub.f32 1.0, %v804
  %v806 = vmul.f32 %v803, %v805
  %v807 = vadd.f32 %v803, %v806
  %vm808 = vweird.f32 %v802
  %vm809 = vweird.f32 %v803
  %vm810 = vmor %vm808, %vm809
  %v811 = vsel %vm810, %v803, %v807
  %v812 = vand.u32 2147483647, %v802
  %vm813 = vcmp.eq.f32.partialorder %v812, 8.507059e+37
  %v814 = vand.u32 %v802, 2147483648
  %v815 = vor.u32 1.1754944e-38, %v814
  %v816 = vsel %vm813, %v815, %v811
  %v817 = vmul.f32 %v792, %v816
  %v818 = vmin.f32 %v817, 1.0
  %v819 = vmax.f32 %v818, -1.0
  %v820 = vmul.f32 %v561, %v561
  %v821 = vmin.f32 16.0, %v820
  %v822 = vmul.f32 %v821, 2.1237322e-06
  %v823 = vadd.f32 %v822, 0.00028619796
  %v824 = vmul.f32 %v821, %v823
  %v825 = vadd.f32 %v824, 0.0036580483
  %v826 = vmul.f32 %v821, %v825
  %v827 = vadd.f32 %v826, 0.05243302
  %v828 = vmul.f32 %v821, %v827
  %v829 = vadd.f32 %v828, 0.18741608
  %v830 = vmul.f32 %v821, %v829
  %v831 = vadd.f32 %v830, 1.1283791
  %v832 = vmul.f32 %v561, %v831
  %v833 = vmul.f32 %v821, 3.8918573e-05
  %v834 = vadd.f32 %v833, 0.001143296
  %v835 = vmul.f32 %v821, %v834
  %v836 = vadd.f32 %v835, 0.014752088
  %v837 = vmul.f32 %v821, %v836
  %v838 = vadd.f32 %v837, 0.112945676
  %v839 = vmul.f32 %v821, %v838
  %v840 = vadd.f32 %v839, 0.4994258
  %v841 = vmul.f32 %v821, %v840
  %v842 = vadd.f32 %v841, 1.0
  %v843 = vrcp.pop %v842
  %v844 = vmul.f32 %v842, %v843
  %v845 = vsub.f32 1.0, %v844
  %v846 = vmul.f32 %v843, %v845
  %v847 = vadd.f32 %v843, %v846
  %vm848 = vweird.f32 %v842
  %vm849 = vweird.f32 %v843
  %vm850 = vmor %vm848, %vm849
  %v851 = vsel %vm850, %v843, %v847
  %v852 = vand.u32 2147483647, %v842
  %vm853 = vcmp.eq.f32.partialorder %v852, 8.507059e+37
  %v854 = vand.u32 %v842, 2147483648
  %v855 = vor.u32 1.1754944e-38, %v854
  %v856 = vsel %vm853, %v855, %v851
  %v857 = vmul.f32 %v832, %v856
  %v858 = vmin.f32 %v857, 1.0
  %v859 = vmax.f32 %v858, -1.0
  %v860 = vmul.f32 %v562, %v562
  %v861 = vmin.f32 16.0, %v860
  %v862 = vmul.f32 %v861, 2.1237322e-06
  %v863 = vadd.f32 %v862, 0.00028619796
  %v864 = vmul.f32 %v861, %v863
  %v865 = vadd.f32 %v864, 0.0036580483
  %v866 = vmul.f32 %v861, %v865
  %v867 = vadd.f32 %v866, 0.05243302
  %v868 = vmul.f32 %v861, %v867
  %v869 = vadd.f32 %v868, 0.18741608
  %v870 = vmul.f32 %v861, %v869
  %v871 = vadd.f32 %v870, 1.1283791
  %v872 = vmul.f32 %v562, %v871
  %v873 = vmul.f32 %v861, 3.8918573e-05
  %v874 = vadd.f32 %v873, 0.001143296
  %v875 = vmul.f32 %v861, %v874
  %v876 = vadd.f32 %v875, 0.014752088
  %v877 = vmul.f32 %v861, %v876
  %v878 = vadd.f32 %v877, 0.112945676
  %v879 = vmul.f32 %v861, %v878
  %v880 = vadd.f32 %v879, 0.4994258
  %v881 = vmul.f32 %v861, %v880
  %v882 = vadd.f32 %v881, 1.0
  %v883 = vrcp.pop %v882
  %v884 = vmul.f32 %v882, %v883
  %v885 = vsub.f32 1.0, %v884
  %v886 = vmul.f32 %v883, %v885
  %v887 = vadd.f32 %v883, %v886
  %vm888 = vweird.f32 %v882
  %vm889 = vweird.f32 %v883
  %vm890 = vmor %vm888, %vm889
  %v891 = vsel %vm890, %v883, %v887
  %v892 = vand.u32 2147483647, %v882
  %vm893 = vcmp.eq.f32.partialorder %v892, 8.507059e+37
  %v894 = vand.u32 %v882, 2147483648
  %v895 = vor.u32 1.1754944e-38, %v894
  %v896 = vsel %vm893, %v895, %v891
  %v897 = vmul.f32 %v872, %v896
  %v898 = vmin.f32 %v897, 1.0
  %v899 = vmax.f32 %v898, -1.0
  %v900 = vmul.f32 %v563, %v563
  %v901 = vmin.f32 16.0, %v900
  %v902 = vmul.f32 %v901, 2.1237322e-06
  %v903 = vadd.f32 %v902, 0.00028619796
  %v904 = vmul.f32 %v901, %v903
  %v905 = vadd.f32 %v904, 0.0036580483
  %v906 = vmul.f32 %v901, %v905
  %v907 = vadd.f32 %v906, 0.05243302
  %v908 = vmul.f32 %v901, %v907
  %v909 = vadd.f32 %v908, 0.18741608
  %v910 = vmul.f32 %v901, %v909
  %v911 = vadd.f32 %v910, 1.1283791
  %v912 = vmul.f32 %v563, %v911
  %v913 = vmul.f32 %v901, 3.8918573e-05
  %v914 = vadd.f32 %v913, 0.001143296
  %v915 = vmul.f32 %v901, %v914
  %v916 = vadd.f32 %v915, 0.014752088
  %v917 = vmul.f32 %v901, %v916
  %v918 = vadd.f32 %v917, 0.112945676
  %v919 = vmul.f32 %v901, %v918
  %v920 = vadd.f32 %v919, 0.4994258
  %v921 = vmul.f32 %v901, %v920
  %v922 = vadd.f32 %v921, 1.0
  %v923 = vrcp.pop %v922
  %v924 = vmul.f32 %v922, %v923
  %v925 = vsub.f32 1.0, %v924
  %v926 = vmul.f32 %v923, %v925
  %v927 = vadd.f32 %v923, %v926
  %vm928 = vweird.f32 %v922
  %vm929 = vweird.f32 %v923
  %vm930 = vmor %vm928, %vm929
  %v931 = vsel %vm930, %v923, %v927
  %v932 = vand.u32 2147483647, %v922
  %vm933 = vcmp.eq.f32.partialorder %v932, 8.507059e+37
  %v934 = vand.u32 %v922, 2147483648
  %v935 = vor.u32 1.1754944e-38, %v934
  %v936 = vsel %vm933, %v935, %v931
  %v937 = vmul.f32 %v912, %v936
  %v938 = vmin.f32 %v937, 1.0
  %v939 = vmax.f32 %v938, -1.0
  %v940 = vmul.f32 %v564, %v564
  %v941 = vmin.f32 16.0, %v940
  %v942 = vmul.f32 %v941, 2.1237322e-06
  %v943 = vadd.f32 %v942, 0.00028619796
  %v944 = vmul.f32 %v941, %v943
  %v945 = vadd.f32 %v944, 0.0036580483
  %v946 = vmul.f32 %v941, %v945
  %v947 = vadd.f32 %v946, 0.05243302
  %v948 = vmul.f32 %v941, %v947
  %v949 = vadd.f32 %v948, 0.18741608
  %v950 = vmul.f32 %v941, %v949
  %v951 = vadd.f32 %v950, 1.1283791
  %v952 = vmul.f32 %v564, %v951
  %v953 = vmul.f32 %v941, 3.8918573e-05
  %v954 = vadd.f32 %v953, 0.001143296
  %v955 = vmul.f32 %v941, %v954
  %v956 = vadd.f32 %v955, 0.014752088
  %v957 = vmul.f32 %v941, %v956
  %v958 = vadd.f32 %v957, 0.112945676
  %v959 = vmul.f32 %v941, %v958
  %v960 = vadd.f32 %v959, 0.4994258
  %v961 = vmul.f32 %v941, %v960
  %v962 = vadd.f32 %v961, 1.0
  %v963 = vrcp.pop %v962
  %v964 = vmul.f32 %v962, %v963
  %v965 = vsub.f32 1.0, %v964
  %v966 = vmul.f32 %v963, %v965
  %v967 = vadd.f32 %v963, %v966
  %vm968 = vweird.f32 %v962
  %vm969 = vweird.f32 %v963
  %vm970 = vmor %vm968, %vm969
  %v971 = vsel %vm970, %v963, %v967
  %v972 = vand.u32 2147483647, %v962
  %vm973 = vcmp.eq.f32.partialorder %v972, 8.507059e+37
  %v974 = vand.u32 %v962, 2147483648
  %v975 = vor.u32 1.1754944e-38, %v974
  %v976 = vsel %vm973, %v975, %v971
  %v977 = vmul.f32 %v952, %v976
  %v978 = vmin.f32 %v977, 1.0
  %v979 = vmax.f32 %v978, -1.0
  %v980 = vmul.f32 %v565, %v565
  %v981 = vmin.f32 16.0, %v980
  %v982 = vmul.f32 %v981, 2.1237322e-06
  %v983 = vadd.f32 %v982, 0.00028619796
  %v984 = vmul.f32 %v981, %v983
  %v985 = vadd.f32 %v984, 0.0036580483
  %v986 = vmul.f32 %v981, %v985
  %v987 = vadd.f32 %v986, 0.05243302
  %v988 = vmul.f32 %v981, %v987
  %v989 = vadd.f32 %v988, 0.18741608
  %v990 = vmul.f32 %v981, %v989
  %v991 = vadd.f32 %v990, 1.1283791
  %v992 = vmul.f32 %v565, %v991
  %v993 = vmul.f32 %v981, 3.8918573e-05
  %v994 = vadd.f32 %v993, 0.001143296
  %v995 = vmul.f32 %v981, %v994
  %v996 = vadd.f32 %v995, 0.014752088
  %v997 = vmul.f32 %v981, %v996
  %v998 = vadd.f32 %v997, 0.112945676
  %v999 = vmul.f32 %v981, %v998
  %v1000 = vadd.f32 %v999, 0.4994258
  %v1001 = vmul.f32 %v981, %v1000
  %v1002 = vadd.f32 %v1001, 1.0
  %v1003 = vrcp.pop %v1002
  %v1004 = vmul.f32 %v1002, %v1003
  %v1005 = vsub.f32 1.0, %v1004
  %v1006 = vmul.f32 %v1003, %v1005
  %v1007 = vadd.f32 %v1003, %v1006
  %vm1008 = vweird.f32 %v1002
  %vm1009 = vweird.f32 %v1003
  %vm1010 = vmor %vm1008, %vm1009
  %v1011 = vsel %vm1010, %v1003, %v1007
  %v1012 = vand.u32 2147483647, %v1002
  %vm1013 = vcmp.eq.f32.partialorder %v1012, 8.507059e+37
  %v1014 = vand.u32 %v1002, 2147483648
  %v1015 = vor.u32 1.1754944e-38, %v1014
  %v1016 = vsel %vm1013, %v1015, %v1011
  %v1017 = vmul.f32 %v992, %v1016
  %v1018 = vmin.f32 %v1017, 1.0
  %v1019 = vmax.f32 %v1018, -1.0
  %v1020 = vmul.f32 %v566, %v566
  %v1021 = vmin.f32 16.0, %v1020
  %v1022 = vmul.f32 %v1021, 2.1237322e-06
  %v1023 = vadd.f32 %v1022, 0.00028619796
  %v1024 = vmul.f32 %v1021, %v1023
  %v1025 = vadd.f32 %v1024, 0.0036580483
  %v1026 = vmul.f32 %v1021, %v1025
  %v1027 = vadd.f32 %v1026, 0.05243302
  %v1028 = vmul.f32 %v1021, %v1027
  %v1029 = vadd.f32 %v1028, 0.18741608
  %v1030 = vmul.f32 %v1021, %v1029
  %v1031 = vadd.f32 %v1030, 1.1283791
  %v1032 = vmul.f32 %v566, %v1031
  %v1033 = vmul.f32 %v1021, 3.8918573e-05
  %v1034 = vadd.f32 %v1033, 0.001143296
  %v1035 = vmul.f32 %v1021, %v1034
  %v1036 = vadd.f32 %v1035, 0.014752088
  %v1037 = vmul.f32 %v1021, %v1036
  %v1038 = vadd.f32 %v1037, 0.112945676
  %v1039 = vmul.f32 %v1021, %v1038
  %v1040 = vadd.f32 %v1039, 0.4994258
  %v1041 = vmul.f32 %v1021, %v1040
  %v1042 = vadd.f32 %v1041, 1.0
  %v1043 = vrcp.pop %v1042
  %v1044 = vmul.f32 %v1042, %v1043
  %v1045 = vsub.f32 1.0, %v1044
  %v1046 = vmul.f32 %v1043, %v1045
  %v1047 = vadd.f32 %v1043, %v1046
  %vm1048 = vweird.f32 %v1042
  %vm1049 = vweird.f32 %v1043
  %vm1050 = vmor %vm1048, %vm1049
  %v1051 = vsel %vm1050, %v1043, %v1047
  %v1052 = vand.u32 2147483647, %v1042
  %vm1053 = vcmp.eq.f32.partialorder %v1052, 8.507059e+37
  %v1054 = vand.u32 %v1042, 2147483648
  %v1055 = vor.u32 1.1754944e-38, %v1054
  %v1056 = vsel %vm1053, %v1055, %v1051
  %v1057 = vmul.f32 %v1032, %v1056
  %v1058 = vmin.f32 %v1057, 1.0
  %v1059 = vmax.f32 %v1058, -1.0
  %v1060 = vmul.f32 %v567, %v567
  %v1061 = vmin.f32 16.0, %v1060
  %v1062 = vmul.f32 %v1061, 2.1237322e-06
  %v1063 = vadd.f32 %v1062, 0.00028619796
  %v1064 = vmul.f32 %v1061, %v1063
  %v1065 = vadd.f32 %v1064, 0.0036580483
  %v1066 = vmul.f32 %v1061, %v1065
  %v1067 = vadd.f32 %v1066, 0.05243302
  %v1068 = vmul.f32 %v1061, %v1067
  %v1069 = vadd.f32 %v1068, 0.18741608
  %v1070 = vmul.f32 %v1061, %v1069
  %v1071 = vadd.f32 %v1070, 1.1283791
  %v1072 = vmul.f32 %v567, %v1071
  %v1073 = vmul.f32 %v1061, 3.8918573e-05
  %v1074 = vadd.f32 %v1073, 0.001143296
  %v1075 = vmul.f32 %v1061, %v1074
  %v1076 = vadd.f32 %v1075, 0.014752088
  %v1077 = vmul.f32 %v1061, %v1076
  %v1078 = vadd.f32 %v1077, 0.112945676
  %v1079 = vmul.f32 %v1061, %v1078
  %v1080 = vadd.f32 %v1079, 0.4994258
  %v1081 = vmul.f32 %v1061, %v1080
  %v1082 = vadd.f32 %v1081, 1.0
  %v1083 = vrcp.pop %v1082
  %v1084 = vmul.f32 %v1082, %v1083
  %v1085 = vsub.f32 1.0, %v1084
  %v1086 = vmul.f32 %v1083, %v1085
  %v1087 = vadd.f32 %v1083, %v1086
  %vm1088 = vweird.f32 %v1082
  %vm1089 = vweird.f32 %v1083
  %vm1090 = vmor %vm1088, %vm1089
  %v1091 = vsel %vm1090, %v1083, %v1087
  %v1092 = vand.u32 2147483647, %v1082
  %vm1093 = vcmp.eq.f32.partialorder %v1092, 8.507059e+37
  %v1094 = vand.u32 %v1082, 2147483648
  %v1095 = vor.u32 1.1754944e-38, %v1094
  %v1096 = vsel %vm1093, %v1095, %v1091
  %v1097 = vmul.f32 %v1072, %v1096
  %v1098 = vmin.f32 %v1097, 1.0
  %v1099 = vmax.f32 %v1098, -1.0
  %v1100 = vmul.f32 %v568, %v568
  %v1101 = vmin.f32 16.0, %v1100
  %v1102 = vmul.f32 %v1101, 2.1237322e-06
  %v1103 = vadd.f32 %v1102, 0.00028619796
  %v1104 = vmul.f32 %v1101, %v1103
  %v1105 = vadd.f32 %v1104, 0.0036580483
  %v1106 = vmul.f32 %v1101, %v1105
  %v1107 = vadd.f32 %v1106, 0.05243302
  %v1108 = vmul.f32 %v1101, %v1107
  %v1109 = vadd.f32 %v1108, 0.18741608
  %v1110 = vmul.f32 %v1101, %v1109
  %v1111 = vadd.f32 %v1110, 1.1283791
  %v1112 = vmul.f32 %v568, %v1111
  %v1113 = vmul.f32 %v1101, 3.8918573e-05
  %v1114 = vadd.f32 %v1113, 0.001143296
  %v1115 = vmul.f32 %v1101, %v1114
  %v1116 = vadd.f32 %v1115, 0.014752088
  %v1117 = vmul.f32 %v1101, %v1116
  %v1118 = vadd.f32 %v1117, 0.112945676
  %v1119 = vmul.f32 %v1101, %v1118
  %v1120 = vadd.f32 %v1119, 0.4994258
  %v1121 = vmul.f32 %v1101, %v1120
  %v1122 = vadd.f32 %v1121, 1.0
  %v1123 = vrcp.pop %v1122
  %v1124 = vmul.f32 %v1122, %v1123
  %v1125 = vsub.f32 1.0, %v1124
  %v1126 = vmul.f32 %v1123, %v1125
  %v1127 = vadd.f32 %v1123, %v1126
  %vm1128 = vweird.f32 %v1122
  %vm1129 = vweird.f32 %v1123
  %vm1130 = vmor %vm1128, %vm1129
  %v1131 = vsel %vm1130, %v1123, %v1127
  %v1132 = vand.u32 2147483647, %v1122
  %vm1133 = vcmp.eq.f32.partialorder %v1132, 8.507059e+37
  %v1134 = vand.u32 %v1122, 2147483648
  %v1135 = vor.u32 1.1754944e-38, %v1134
  %v1136 = vsel %vm1133, %v1135, %v1131
  %v1137 = vmul.f32 %v1112, %v1136
  %v1138 = vmin.f32 %v1137, 1.0
  %v1139 = vmax.f32 %v1138, -1.0
  %v1140 = vmul.f32 %v569, %v569
  %v1141 = vmin.f32 16.0, %v1140
  %v1142 = vmul.f32 %v1141, 2.1237322e-06
  %v1143 = vadd.f32 %v1142, 0.00028619796
  %v1144 = vmul.f32 %v1141, %v1143
  %v1145 = vadd.f32 %v1144, 0.0036580483
  %v1146 = vmul.f32 %v1141, %v1145
  %v1147 = vadd.f32 %v1146, 0.05243302
  %v1148 = vmul.f32 %v1141, %v1147
  %v1149 = vadd.f32 %v1148, 0.18741608
  %v1150 = vmul.f32 %v1141, %v1149
  %v1151 = vadd.f32 %v1150, 1.1283791
  %v1152 = vmul.f32 %v569, %v1151
  %v1153 = vmul.f32 %v1141, 3.8918573e-05
  %v1154 = vadd.f32 %v1153, 0.001143296
  %v1155 = vmul.f32 %v1141, %v1154
  %v1156 = vadd.f32 %v1155, 0.014752088
  %v1157 = vmul.f32 %v1141, %v1156
  %v1158 = vadd.f32 %v1157, 0.112945676
  %v1159 = vmul.f32 %v1141, %v1158
  %v1160 = vadd.f32 %v1159, 0.4994258
  %v1161 = vmul.f32 %v1141, %v1160
  %v1162 = vadd.f32 %v1161, 1.0
  %v1163 = vrcp.pop %v1162
  %v1164 = vmul.f32 %v1162, %v1163
  %v1165 = vsub.f32 1.0, %v1164
  %v1166 = vmul.f32 %v1163, %v1165
  %v1167 = vadd.f32 %v1163, %v1166
  %vm1168 = vweird.f32 %v1162
  %vm1169 = vweird.f32 %v1163
  %vm1170 = vmor %vm1168, %vm1169
  %v1171 = vsel %vm1170, %v1163, %v1167
  %v1172 = vand.u32 2147483647, %v1162
  %vm1173 = vcmp.eq.f32.partialorder %v1172, 8.507059e+37
  %v1174 = vand.u32 %v1162, 2147483648
  %v1175 = vor.u32 1.1754944e-38, %v1174
  %v1176 = vsel %vm1173, %v1175, %v1171
  %v1177 = vmul.f32 %v1152, %v1176
  %v1178 = vmin.f32 %v1177, 1.0
  %v1179 = vmax.f32 %v1178, -1.0
  %v1180 = vmul.f32 %v570, %v570
  %v1181 = vmin.f32 16.0, %v1180
  %v1182 = vmul.f32 %v1181, 2.1237322e-06
  %v1183 = vadd.f32 %v1182, 0.00028619796
  %v1184 = vmul.f32 %v1181, %v1183
  %v1185 = vadd.f32 %v1184, 0.0036580483
  %v1186 = vmul.f32 %v1181, %v1185
  %v1187 = vadd.f32 %v1186, 0.05243302
  %v1188 = vmul.f32 %v1181, %v1187
  %v1189 = vadd.f32 %v1188, 0.18741608
  %v1190 = vmul.f32 %v1181, %v1189
  %v1191 = vadd.f32 %v1190, 1.1283791
  %v1192 = vmul.f32 %v570, %v1191
  %v1193 = vmul.f32 %v1181, 3.8918573e-05
  %v1194 = vadd.f32 %v1193, 0.001143296
  %v1195 = vmul.f32 %v1181, %v1194
  %v1196 = vadd.f32 %v1195, 0.014752088
  %v1197 = vmul.f32 %v1181, %v1196
  %v1198 = vadd.f32 %v1197, 0.112945676
  %v1199 = vmul.f32 %v1181, %v1198
  %v1200 = vadd.f32 %v1199, 0.4994258
  %v1201 = vmul.f32 %v1181, %v1200
  %v1202 = vadd.f32 %v1201, 1.0
  %v1203 = vrcp.pop %v1202
  %v1204 = vmul.f32 %v1202, %v1203
  %v1205 = vsub.f32 1.0, %v1204
  %v1206 = vmul.f32 %v1203, %v1205
  %v1207 = vadd.f32 %v1203, %v1206
  %vm1208 = vweird.f32 %v1202
  %vm1209 = vweird.f32 %v1203
  %vm1210 = vmor %vm1208, %vm1209
  %v1211 = vsel %vm1210, %v1203, %v1207
  %v1212 = vand.u32 2147483647, %v1202
  %vm1213 = vcmp.eq.f32.partialorder %v1212, 8.507059e+37
  %v1214 = vand.u32 %v1202, 2147483648
  %v1215 = vor.u32 1.1754944e-38, %v1214
  %v1216 = vsel %vm1213, %v1215, %v1211
  %v1217 = vmul.f32 %v1192, %v1216
  %v1218 = vmin.f32 %v1217, 1.0
  %v1219 = vmax.f32 %v1218, -1.0
  %v1220 = vmul.f32 %v571, %v571
  %v1221 = vmin.f32 16.0, %v1220
  %v1222 = vmul.f32 %v1221, 2.1237322e-06
  %v1223 = vadd.f32 %v1222, 0.00028619796
  %v1224 = vmul.f32 %v1221, %v1223
  %v1225 = vadd.f32 %v1224, 0.0036580483
  %v1226 = vmul.f32 %v1221, %v1225
  %v1227 = vadd.f32 %v1226, 0.05243302
  %v1228 = vmul.f32 %v1221, %v1227
  %v1229 = vadd.f32 %v1228, 0.18741608
  %v1230 = vmul.f32 %v1221, %v1229
  %v1231 = vadd.f32 %v1230, 1.1283791
  %v1232 = vmul.f32 %v571, %v1231
  %v1233 = vmul.f32 %v1221, 3.8918573e-05
  %v1234 = vadd.f32 %v1233, 0.001143296
  %v1235 = vmul.f32 %v1221, %v1234
  %v1236 = vadd.f32 %v1235, 0.014752088
  %v1237 = vmul.f32 %v1221, %v1236
  %v1238 = vadd.f32 %v1237, 0.112945676
  %v1239 = vmul.f32 %v1221, %v1238
  %v1240 = vadd.f32 %v1239, 0.4994258
  %v1241 = vmul.f32 %v1221, %v1240
  %v1242 = vadd.f32 %v1241, 1.0
  %v1243 = vrcp.pop %v1242
  %v1244 = vmul.f32 %v1242, %v1243
  %v1245 = vsub.f32 1.0, %v1244
  %v1246 = vmul.f32 %v1243, %v1245
  %v1247 = vadd.f32 %v1243, %v1246
  %vm1248 = vweird.f32 %v1242
  %vm1249 = vweird.f32 %v1243
  %vm1250 = vmor %vm1248, %vm1249
  %v1251 = vsel %vm1250, %v1243, %v1247
  %v1252 = vand.u32 2147483647, %v1242
  %vm1253 = vcmp.eq.f32.partialorder %v1252, 8.507059e+37
  %v1254 = vand.u32 %v1242, 2147483648
  %v1255 = vor.u32 1.1754944e-38, %v1254
  %v1256 = vsel %vm1253, %v1255, %v1251
  %v1257 = vmul.f32 %v1232, %v1256
  %v1258 = vmin.f32 %v1257, 1.0
  %v1259 = vmax.f32 %v1258, -1.0
  %v1260 = vmul.f32 %v572, %v572
  %v1261 = vmin.f32 16.0, %v1260
  %v1262 = vmul.f32 %v1261, 2.1237322e-06
  %v1263 = vadd.f32 %v1262, 0.00028619796
  %v1264 = vmul.f32 %v1261, %v1263
  %v1265 = vadd.f32 %v1264, 0.0036580483
  %v1266 = vmul.f32 %v1261, %v1265
  %v1267 = vadd.f32 %v1266, 0.05243302
  %v1268 = vmul.f32 %v1261, %v1267
  %v1269 = vadd.f32 %v1268, 0.18741608
  %v1270 = vmul.f32 %v1261, %v1269
  %v1271 = vadd.f32 %v1270, 1.1283791
  %v1272 = vmul.f32 %v572, %v1271
  %v1273 = vmul.f32 %v1261, 3.8918573e-05
  %v1274 = vadd.f32 %v1273, 0.001143296
  %v1275 = vmul.f32 %v1261, %v1274
  %v1276 = vadd.f32 %v1275, 0.014752088
  %v1277 = vmul.f32 %v1261, %v1276
  %v1278 = vadd.f32 %v1277, 0.112945676
  %v1279 = vmul.f32 %v1261, %v1278
  %v1280 = vadd.f32 %v1279, 0.4994258
  %v1281 = vmul.f32 %v1261, %v1280
  %v1282 = vadd.f32 %v1281, 1.0
  %v1283 = vrcp.pop %v1282
  %v1284 = vmul.f32 %v1282, %v1283
  %v1285 = vsub.f32 1.0, %v1284
  %v1286 = vmul.f32 %v1283, %v1285
  %v1287 = vadd.f32 %v1283, %v1286
  %vm1288 = vweird.f32 %v1282
  %vm1289 = vweird.f32 %v1283
  %vm1290 = vmor %vm1288, %vm1289
  %v1291 = vsel %vm1290, %v1283, %v1287
  %v1292 = vand.u32 2147483647, %v1282
  %vm1293 = vcmp.eq.f32.partialorder %v1292, 8.507059e+37
  %v1294 = vand.u32 %v1282, 2147483648
  %v1295 = vor.u32 1.1754944e-38, %v1294
  %v1296 = vsel %vm1293, %v1295, %v1291
  %v1297 = vmul.f32 %v1272, %v1296
  %v1298 = vmin.f32 %v1297, 1.0
  %v1299 = vmax.f32 %v1298, -1.0
  %v1300 = vmul.f32 %v573, %v573
  %v1301 = vmin.f32 16.0, %v1300
  %v1302 = vmul.f32 %v1301, 2.1237322e-06
  %v1303 = vadd.f32 %v1302, 0.00028619796
  %v1304 = vmul.f32 %v1301, %v1303
  %v1305 = vadd.f32 %v1304, 0.0036580483
  %v1306 = vmul.f32 %v1301, %v1305
  %v1307 = vadd.f32 %v1306, 0.05243302
  %v1308 = vmul.f32 %v1301, %v1307
  %v1309 = vadd.f32 %v1308, 0.18741608
  %v1310 = vmul.f32 %v1301, %v1309
  %v1311 = vadd.f32 %v1310, 1.1283791
  %v1312 = vmul.f32 %v573, %v1311
  %v1313 = vmul.f32 %v1301, 3.8918573e-05
  %v1314 = vadd.f32 %v1313, 0.001143296
  %v1315 = vmul.f32 %v1301, %v1314
  %v1316 = vadd.f32 %v1315, 0.014752088
  %v1317 = vmul.f32 %v1301, %v1316
  %v1318 = vadd.f32 %v1317, 0.112945676
  %v1319 = vmul.f32 %v1301, %v1318
  %v1320 = vadd.f32 %v1319, 0.4994258
  %v1321 = vmul.f32 %v1301, %v1320
  %v1322 = vadd.f32 %v1321, 1.0
  %v1323 = vrcp.pop %v1322
  %v1324 = vmul.f32 %v1322, %v1323
  %v1325 = vsub.f32 1.0, %v1324
  %v1326 = vmul.f32 %v1323, %v1325
  %v1327 = vadd.f32 %v1323, %v1326
  %vm1328 = vweird.f32 %v1322
  %vm1329 = vweird.f32 %v1323
  %vm1330 = vmor %vm1328, %vm1329
  %v1331 = vsel %vm1330, %v1323, %v1327
  %v1332 = vand.u32 2147483647, %v1322
  %vm1333 = vcmp.eq.f32.partialorder %v1332, 8.507059e+37
  %v1334 = vand.u32 %v1322, 2147483648
  %v1335 = vor.u32 1.1754944e-38, %v1334
  %v1336 = vsel %vm1333, %v1335, %v1331
  %v1337 = vmul.f32 %v1312, %v1336
  %v1338 = vmin.f32 %v1337, 1.0
  %v1339 = vmax.f32 %v1338, -1.0
  %v1340 = vmul.f32 %v574, %v574
  %v1341 = vmin.f32 16.0, %v1340
  %v1342 = vmul.f32 %v1341, 2.1237322e-06
  %v1343 = vadd.f32 %v1342, 0.00028619796
  %v1344 = vmul.f32 %v1341, %v1343
  %v1345 = vadd.f32 %v1344, 0.0036580483
  %v1346 = vmul.f32 %v1341, %v1345
  %v1347 = vadd.f32 %v1346, 0.05243302
  %v1348 = vmul.f32 %v1341, %v1347
  %v1349 = vadd.f32 %v1348, 0.18741608
  %v1350 = vmul.f32 %v1341, %v1349
  %v1351 = vadd.f32 %v1350, 1.1283791
  %v1352 = vmul.f32 %v574, %v1351
  %v1353 = vmul.f32 %v1341, 3.8918573e-05
  %v1354 = vadd.f32 %v1353, 0.001143296
  %v1355 = vmul.f32 %v1341, %v1354
  %v1356 = vadd.f32 %v1355, 0.014752088
  %v1357 = vmul.f32 %v1341, %v1356
  %v1358 = vadd.f32 %v1357, 0.112945676
  %v1359 = vmul.f32 %v1341, %v1358
  %v1360 = vadd.f32 %v1359, 0.4994258
  %v1361 = vmul.f32 %v1341, %v1360
  %v1362 = vadd.f32 %v1361, 1.0
  %v1363 = vrcp.pop %v1362
  %v1364 = vmul.f32 %v1362, %v1363
  %v1365 = vsub.f32 1.0, %v1364
  %v1366 = vmul.f32 %v1363, %v1365
  %v1367 = vadd.f32 %v1363, %v1366
  %vm1368 = vweird.f32 %v1362
  %vm1369 = vweird.f32 %v1363
  %vm1370 = vmor %vm1368, %vm1369
  %v1371 = vsel %vm1370, %v1363, %v1367
  %v1372 = vand.u32 2147483647, %v1362
  %vm1373 = vcmp.eq.f32.partialorder %v1372, 8.507059e+37
  %v1374 = vand.u32 %v1362, 2147483648
  %v1375 = vor.u32 1.1754944e-38, %v1374
  %v1376 = vsel %vm1373, %v1375, %v1371
  %v1377 = vmul.f32 %v1352, %v1376
  %v1378 = vmin.f32 %v1377, 1.0
  %v1379 = vmax.f32 %v1378, -1.0
  %v1380 = vmul.f32 %v575, %v575
  %v1381 = vmin.f32 16.0, %v1380
  %v1382 = vmul.f32 %v1381, 2.1237322e-06
  %v1383 = vadd.f32 %v1382, 0.00028619796
  %v1384 = vmul.f32 %v1381, %v1383
  %v1385 = vadd.f32 %v1384, 0.0036580483
  %v1386 = vmul.f32 %v1381, %v1385
  %v1387 = vadd.f32 %v1386, 0.05243302
  %v1388 = vmul.f32 %v1381, %v1387
  %v1389 = vadd.f32 %v1388, 0.18741608
  %v1390 = vmul.f32 %v1381, %v1389
  %v1391 = vadd.f32 %v1390, 1.1283791
  %v1392 = vmul.f32 %v575, %v1391
  %v1393 = vmul.f32 %v1381, 3.8918573e-05
  %v1394 = vadd.f32 %v1393, 0.001143296
  %v1395 = vmul.f32 %v1381, %v1394
  %v1396 = vadd.f32 %v1395, 0.014752088
  %v1397 = vmul.f32 %v1381, %v1396
  %v1398 = vadd.f32 %v1397, 0.112945676
  %v1399 = vmul.f32 %v1381, %v1398
  %v1400 = vadd.f32 %v1399, 0.4994258
  %v1401 = vmul.f32 %v1381, %v1400
  %v1402 = vadd.f32 %v1401, 1.0
  %v1403 = vrcp.pop %v1402
  %v1404 = vmul.f32 %v1402, %v1403
  %v1405 = vsub.f32 1.0, %v1404
  %v1406 = vmul.f32 %v1403, %v1405
  %v1407 = vadd.f32 %v1403, %v1406
  %vm1408 = vweird.f32 %v1402
  %vm1409 = vweird.f32 %v1403
  %vm1410 = vmor %vm1408, %vm1409
  %v1411 = vsel %vm1410, %v1403, %v1407
  %v1412 = vand.u32 2147483647, %v1402
  %vm1413 = vcmp.eq.f32.partialorder %v1412, 8.507059e+37
  %v1414 = vand.u32 %v1402, 2147483648
  %v1415 = vor.u32 1.1754944e-38, %v1414
  %v1416 = vsel %vm1413, %v1415, %v1411
  %v1417 = vmul.f32 %v1392, %v1416
  %v1418 = vmin.f32 %v1417, 1.0
  %v1419 = vmax.f32 %v1418, -1.0
  %v1420 = vmul.f32 %v576, %v576
  %v1421 = vmin.f32 16.0, %v1420
  %v1422 = vmul.f32 %v1421, 2.1237322e-06
  %v1423 = vadd.f32 %v1422, 0.00028619796
  %v1424 = vmul.f32 %v1421, %v1423
  %v1425 = vadd.f32 %v1424, 0.0036580483
  %v1426 = vmul.f32 %v1421, %v1425
  %v1427 = vadd.f32 %v1426, 0.05243302
  %v1428 = vmul.f32 %v1421, %v1427
  %v1429 = vadd.f32 %v1428, 0.18741608
  %v1430 = vmul.f32 %v1421, %v1429
  %v1431 = vadd.f32 %v1430, 1.1283791
  %v1432 = vmul.f32 %v576, %v1431
  %v1433 = vmul.f32 %v1421, 3.8918573e-05
  %v1434 = vadd.f32 %v1433, 0.001143296
  %v1435 = vmul.f32 %v1421, %v1434
  %v1436 = vadd.f32 %v1435, 0.014752088
  %v1437 = vmul.f32 %v1421, %v1436
  %v1438 = vadd.f32 %v1437, 0.112945676
  %v1439 = vmul.f32 %v1421, %v1438
  %v1440 = vadd.f32 %v1439, 0.4994258
  %v1441 = vmul.f32 %v1421, %v1440
  %v1442 = vadd.f32 %v1441, 1.0
  %v1443 = vrcp.pop %v1442
  %v1444 = vmul.f32 %v1442, %v1443
  %v1445 = vsub.f32 1.0, %v1444
  %v1446 = vmul.f32 %v1443, %v1445
  %v1447 = vadd.f32 %v1443, %v1446
  %vm1448 = vweird.f32 %v1442
  %vm1449 = vweird.f32 %v1443
  %vm1450 = vmor %vm1448, %vm1449
  %v1451 = vsel %vm1450, %v1443, %v1447
  %v1452 = vand.u32 2147483647, %v1442
  %vm1453 = vcmp.eq.f32.partialorder %v1452, 8.507059e+37
  %v1454 = vand.u32 %v1442, 2147483648
  %v1455 = vor.u32 1.1754944e-38, %v1454
  %v1456 = vsel %vm1453, %v1455, %v1451
  %v1457 = vmul.f32 %v1432, %v1456
  %v1458 = vmin.f32 %v1457, 1.0
  %v1459 = vmax.f32 %v1458, -1.0
  %v1460 = vmul.f32 %v577, %v577
  %v1461 = vmin.f32 16.0, %v1460
  %v1462 = vmul.f32 %v1461, 2.1237322e-06
  %v1463 = vadd.f32 %v1462, 0.00028619796
  %v1464 = vmul.f32 %v1461, %v1463
  %v1465 = vadd.f32 %v1464, 0.0036580483
  %v1466 = vmul.f32 %v1461, %v1465
  %v1467 = vadd.f32 %v1466, 0.05243302
  %v1468 = vmul.f32 %v1461, %v1467
  %v1469 = vadd.f32 %v1468, 0.18741608
  %v1470 = vmul.f32 %v1461, %v1469
  %v1471 = vadd.f32 %v1470, 1.1283791
  %v1472 = vmul.f32 %v577, %v1471
  %v1473 = vmul.f32 %v1461, 3.8918573e-05
  %v1474 = vadd.f32 %v1473, 0.001143296
  %v1475 = vmul.f32 %v1461, %v1474
  %v1476 = vadd.f32 %v1475, 0.014752088
  %v1477 = vmul.f32 %v1461, %v1476
  %v1478 = vadd.f32 %v1477, 0.112945676
  %v1479 = vmul.f32 %v1461, %v1478
  %v1480 = vadd.f32 %v1479, 0.4994258
  %v1481 = vmul.f32 %v1461, %v1480
  %v1482 = vadd.f32 %v1481, 1.0
  %v1483 = vrcp.pop %v1482
  %v1484 = vmul.f32 %v1482, %v1483
  %v1485 = vsub.f32 1.0, %v1484
  %v1486 = vmul.f32 %v1483, %v1485
  %v1487 = vadd.f32 %v1483, %v1486
  %vm1488 = vweird.f32 %v1482
  %vm1489 = vweird.f32 %v1483
  %vm1490 = vmor %vm1488, %vm1489
  %v1491 = vsel %vm1490, %v1483, %v1487
  %v1492 = vand.u32 2147483647, %v1482
  %vm1493 = vcmp.eq.f32.partialorder %v1492, 8.507059e+37
  %v1494 = vand.u32 %v1482, 2147483648
  %v1495 = vor.u32 1.1754944e-38, %v1494
  %v1496 = vsel %vm1493, %v1495, %v1491
  %v1497 = vmul.f32 %v1472, %v1496
  %v1498 = vmin.f32 %v1497, 1.0
  %v1499 = vmax.f32 %v1498, -1.0
  %v1500 = vmul.f32 %v578, %v578
  %v1501 = vmin.f32 16.0, %v1500
  %v1502 = vmul.f32 %v1501, 2.1237322e-06
  %v1503 = vadd.f32 %v1502, 0.00028619796
  %v1504 = vmul.f32 %v1501, %v1503
  %v1505 = vadd.f32 %v1504, 0.0036580483
  %v1506 = vmul.f32 %v1501, %v1505
  %v1507 = vadd.f32 %v1506, 0.05243302
  %v1508 = vmul.f32 %v1501, %v1507
  %v1509 = vadd.f32 %v1508, 0.18741608
  %v1510 = vmul.f32 %v1501, %v1509
  %v1511 = vadd.f32 %v1510, 1.1283791
  %v1512 = vmul.f32 %v578, %v1511
  %v1513 = vmul.f32 %v1501, 3.8918573e-05
  %v1514 = vadd.f32 %v1513, 0.001143296
  %v1515 = vmul.f32 %v1501, %v1514
  %v1516 = vadd.f32 %v1515, 0.014752088
  %v1517 = vmul.f32 %v1501, %v1516
  %v1518 = vadd.f32 %v1517, 0.112945676
  %v1519 = vmul.f32 %v1501, %v1518
  %v1520 = vadd.f32 %v1519, 0.4994258
  %v1521 = vmul.f32 %v1501, %v1520
  %v1522 = vadd.f32 %v1521, 1.0
  %v1523 = vrcp.pop %v1522
  %v1524 = vmul.f32 %v1522, %v1523
  %v1525 = vsub.f32 1.0, %v1524
  %v1526 = vmul.f32 %v1523, %v1525
  %v1527 = vadd.f32 %v1523, %v1526
  %vm1528 = vweird.f32 %v1522
  %vm1529 = vweird.f32 %v1523
  %vm1530 = vmor %vm1528, %vm1529
  %v1531 = vsel %vm1530, %v1523, %v1527
  %v1532 = vand.u32 2147483647, %v1522
  %vm1533 = vcmp.eq.f32.partialorder %v1532, 8.507059e+37
  %v1534 = vand.u32 %v1522, 2147483648
  %v1535 = vor.u32 1.1754944e-38, %v1534
  %v1536 = vsel %vm1533, %v1535, %v1531
  %v1537 = vmul.f32 %v1512, %v1536
  %v1538 = vmin.f32 %v1537, 1.0
  %v1539 = vmax.f32 %v1538, -1.0
  %v1540 = vmul.f32 %v579, %v579
  %v1541 = vmin.f32 16.0, %v1540
  %v1542 = vmul.f32 %v1541, 2.1237322e-06
  %v1543 = vadd.f32 %v1542, 0.00028619796
  %v1544 = vmul.f32 %v1541, %v1543
  %v1545 = vadd.f32 %v1544, 0.0036580483
  %v1546 = vmul.f32 %v1541, %v1545
  %v1547 = vadd.f32 %v1546, 0.05243302
  %v1548 = vmul.f32 %v1541, %v1547
  %v1549 = vadd.f32 %v1548, 0.18741608
  %v1550 = vmul.f32 %v1541, %v1549
  %v1551 = vadd.f32 %v1550, 1.1283791
  %v1552 = vmul.f32 %v579, %v1551
  %v1553 = vmul.f32 %v1541, 3.8918573e-05
  %v1554 = vadd.f32 %v1553, 0.001143296
  %v1555 = vmul.f32 %v1541, %v1554
  %v1556 = vadd.f32 %v1555, 0.014752088
  %v1557 = vmul.f32 %v1541, %v1556
  %v1558 = vadd.f32 %v1557, 0.112945676
  %v1559 = vmul.f32 %v1541, %v1558
  %v1560 = vadd.f32 %v1559, 0.4994258
  %v1561 = vmul.f32 %v1541, %v1560
  %v1562 = vadd.f32 %v1561, 1.0
  %v1563 = vrcp.pop %v1562
  %v1564 = vmul.f32 %v1562, %v1563
  %v1565 = vsub.f32 1.0, %v1564
  %v1566 = vmul.f32 %v1563, %v1565
  %v1567 = vadd.f32 %v1563, %v1566
  %vm1568 = vweird.f32 %v1562
  %vm1569 = vweird.f32 %v1563
  %vm1570 = vmor %vm1568, %vm1569
  %v1571 = vsel %vm1570, %v1563, %v1567
  %v1572 = vand.u32 2147483647, %v1562
  %vm1573 = vcmp.eq.f32.partialorder %v1572, 8.507059e+37
  %v1574 = vand.u32 %v1562, 2147483648
  %v1575 = vor.u32 1.1754944e-38, %v1574
  %v1576 = vsel %vm1573, %v1575, %v1571
  %v1577 = vmul.f32 %v1552, %v1576
  %v1578 = vmin.f32 %v1577, 1.0
  %v1579 = vmax.f32 %v1578, -1.0
  %v1580 = vmul.f32 %v580, %v580
  %v1581 = vmin.f32 16.0, %v1580
  %v1582 = vmul.f32 %v1581, 2.1237322e-06
  %v1583 = vadd.f32 %v1582, 0.00028619796
  %v1584 = vmul.f32 %v1581, %v1583
  %v1585 = vadd.f32 %v1584, 0.0036580483
  %v1586 = vmul.f32 %v1581, %v1585
  %v1587 = vadd.f32 %v1586, 0.05243302
  %v1588 = vmul.f32 %v1581, %v1587
  %v1589 = vadd.f32 %v1588, 0.18741608
  %v1590 = vmul.f32 %v1581, %v1589
  %v1591 = vadd.f32 %v1590, 1.1283791
  %v1592 = vmul.f32 %v580, %v1591
  %v1593 = vmul.f32 %v1581, 3.8918573e-05
  %v1594 = vadd.f32 %v1593, 0.001143296
  %v1595 = vmul.f32 %v1581, %v1594
  %v1596 = vadd.f32 %v1595, 0.014752088
  %v1597 = vmul.f32 %v1581, %v1596
  %v1598 = vadd.f32 %v1597, 0.112945676
  %v1599 = vmul.f32 %v1581, %v1598
  %v1600 = vadd.f32 %v1599, 0.4994258
  %v1601 = vmul.f32 %v1581, %v1600
  %v1602 = vadd.f32 %v1601, 1.0
  %v1603 = vrcp.pop %v1602
  %v1604 = vmul.f32 %v1602, %v1603
  %v1605 = vsub.f32 1.0, %v1604
  %v1606 = vmul.f32 %v1603, %v1605
  %v1607 = vadd.f32 %v1603, %v1606
  %vm1608 = vweird.f32 %v1602
  %vm1609 = vweird.f32 %v1603
  %vm1610 = vmor %vm1608, %vm1609
  %v1611 = vsel %vm1610, %v1603, %v1607
  %v1612 = vand.u32 2147483647, %v1602
  %vm1613 = vcmp.eq.f32.partialorder %v1612, 8.507059e+37
  %v1614 = vand.u32 %v1602, 2147483648
  %v1615 = vor.u32 1.1754944e-38, %v1614
  %v1616 = vsel %vm1613, %v1615, %v1611
  %v1617 = vmul.f32 %v1592, %v1616
  %v1618 = vmin.f32 %v1617, 1.0
  %v1619 = vmax.f32 %v1618, -1.0
  %v1620 = vmul.f32 %v581, %v581
  %v1621 = vmin.f32 16.0, %v1620
  %v1622 = vmul.f32 %v1621, 2.1237322e-06
  %v1623 = vadd.f32 %v1622, 0.00028619796
  %v1624 = vmul.f32 %v1621, %v1623
  %v1625 = vadd.f32 %v1624, 0.0036580483
  %v1626 = vmul.f32 %v1621, %v1625
  %v1627 = vadd.f32 %v1626, 0.05243302
  %v1628 = vmul.f32 %v1621, %v1627
  %v1629 = vadd.f32 %v1628, 0.18741608
  %v1630 = vmul.f32 %v1621, %v1629
  %v1631 = vadd.f32 %v1630, 1.1283791
  %v1632 = vmul.f32 %v581, %v1631
  %v1633 = vmul.f32 %v1621, 3.8918573e-05
  %v1634 = vadd.f32 %v1633, 0.001143296
  %v1635 = vmul.f32 %v1621, %v1634
  %v1636 = vadd.f32 %v1635, 0.014752088
  %v1637 = vmul.f32 %v1621, %v1636
  %v1638 = vadd.f32 %v1637, 0.112945676
  %v1639 = vmul.f32 %v1621, %v1638
  %v1640 = vadd.f32 %v1639, 0.4994258
  %v1641 = vmul.f32 %v1621, %v1640
  %v1642 = vadd.f32 %v1641, 1.0
  %v1643 = vrcp.pop %v1642
  %v1644 = vmul.f32 %v1642, %v1643
  %v1645 = vsub.f32 1.0, %v1644
  %v1646 = vmul.f32 %v1643, %v1645
  %v1647 = vadd.f32 %v1643, %v1646
  %vm1648 = vweird.f32 %v1642
  %vm1649 = vweird.f32 %v1643
  %vm1650 = vmor %vm1648, %vm1649
  %v1651 = vsel %vm1650, %v1643, %v1647
  %v1652 = vand.u32 2147483647, %v1642
  %vm1653 = vcmp.eq.f32.partialorder %v1652, 8.507059e+37
  %v1654 = vand.u32 %v1642, 2147483648
  %v1655 = vor.u32 1.1754944e-38, %v1654
  %v1656 = vsel %vm1653, %v1655, %v1651
  %v1657 = vmul.f32 %v1632, %v1656
  %v1658 = vmin.f32 %v1657, 1.0
  %v1659 = vmax.f32 %v1658, -1.0
  %v1660 = vmul.f32 %v582, %v582
  %v1661 = vmin.f32 16.0, %v1660
  %v1662 = vmul.f32 %v1661, 2.1237322e-06
  %v1663 = vadd.f32 %v1662, 0.00028619796
  %v1664 = vmul.f32 %v1661, %v1663
  %v1665 = vadd.f32 %v1664, 0.0036580483
  %v1666 = vmul.f32 %v1661, %v1665
  %v1667 = vadd.f32 %v1666, 0.05243302
  %v1668 = vmul.f32 %v1661, %v1667
  %v1669 = vadd.f32 %v1668, 0.18741608
  %v1670 = vmul.f32 %v1661, %v1669
  %v1671 = vadd.f32 %v1670, 1.1283791
  %v1672 = vmul.f32 %v582, %v1671
  %v1673 = vmul.f32 %v1661, 3.8918573e-05
  %v1674 = vadd.f32 %v1673, 0.001143296
  %v1675 = vmul.f32 %v1661, %v1674
  %v1676 = vadd.f32 %v1675, 0.014752088
  %v1677 = vmul.f32 %v1661, %v1676
  %v1678 = vadd.f32 %v1677, 0.112945676
  %v1679 = vmul.f32 %v1661, %v1678
  %v1680 = vadd.f32 %v1679, 0.4994258
  %v1681 = vmul.f32 %v1661, %v1680
  %v1682 = vadd.f32 %v1681, 1.0
  %v1683 = vrcp.pop %v1682
  %v1684 = vmul.f32 %v1682, %v1683
  %v1685 = vsub.f32 1.0, %v1684
  %v1686 = vmul.f32 %v1683, %v1685
  %v1687 = vadd.f32 %v1683, %v1686
  %vm1688 = vweird.f32 %v1682
  %vm1689 = vweird.f32 %v1683
  %vm1690 = vmor %vm1688, %vm1689
  %v1691 = vsel %vm1690, %v1683, %v1687
  %v1692 = vand.u32 2147483647, %v1682
  %vm1693 = vcmp.eq.f32.partialorder %v1692, 8.507059e+37
  %v1694 = vand.u32 %v1682, 2147483648
  %v1695 = vor.u32 1.1754944e-38, %v1694
  %v1696 = vsel %vm1693, %v1695, %v1691
  %v1697 = vmul.f32 %v1672, %v1696
  %v1698 = vmin.f32 %v1697, 1.0
  %v1699 = vmax.f32 %v1698, -1.0
  %v1700 = vmul.f32 %v583, %v583
  %v1701 = vmin.f32 16.0, %v1700
  %v1702 = vmul.f32 %v1701, 2.1237322e-06
  %v1703 = vadd.f32 %v1702, 0.00028619796
  %v1704 = vmul.f32 %v1701, %v1703
  %v1705 = vadd.f32 %v1704, 0.0036580483
  %v1706 = vmul.f32 %v1701, %v1705
  %v1707 = vadd.f32 %v1706, 0.05243302
  %v1708 = vmul.f32 %v1701, %v1707
  %v1709 = vadd.f32 %v1708, 0.18741608
  %v1710 = vmul.f32 %v1701, %v1709
  %v1711 = vadd.f32 %v1710, 1.1283791
  %v1712 = vmul.f32 %v583, %v1711
  %v1713 = vmul.f32 %v1701, 3.8918573e-05
  %v1714 = vadd.f32 %v1713, 0.001143296
  %v1715 = vmul.f32 %v1701, %v1714
  %v1716 = vadd.f32 %v1715, 0.014752088
  %v1717 = vmul.f32 %v1701, %v1716
  %v1718 = vadd.f32 %v1717, 0.112945676
  %v1719 = vmul.f32 %v1701, %v1718
  %v1720 = vadd.f32 %v1719, 0.4994258
  %v1721 = vmul.f32 %v1701, %v1720
  %v1722 = vadd.f32 %v1721, 1.0
  %v1723 = vrcp.pop %v1722
  %v1724 = vmul.f32 %v1722, %v1723
  %v1725 = vsub.f32 1.0, %v1724
  %v1726 = vmul.f32 %v1723, %v1725
  %v1727 = vadd.f32 %v1723, %v1726
  %vm1728 = vweird.f32 %v1722
  %vm1729 = vweird.f32 %v1723
  %vm1730 = vmor %vm1728, %vm1729
  %v1731 = vsel %vm1730, %v1723, %v1727
  %v1732 = vand.u32 2147483647, %v1722
  %vm1733 = vcmp.eq.f32.partialorder %v1732, 8.507059e+37
  %v1734 = vand.u32 %v1722, 2147483648
  %v1735 = vor.u32 1.1754944e-38, %v1734
  %v1736 = vsel %vm1733, %v1735, %v1731
  %v1737 = vmul.f32 %v1712, %v1736
  %v1738 = vmin.f32 %v1737, 1.0
  %v1739 = vmax.f32 %v1738, -1.0
  %v1740 = vmul.f32 %v584, %v584
  %v1741 = vmin.f32 16.0, %v1740
  %v1742 = vmul.f32 %v1741, 2.1237322e-06
  %v1743 = vadd.f32 %v1742, 0.00028619796
  %v1744 = vmul.f32 %v1741, %v1743
  %v1745 = vadd.f32 %v1744, 0.0036580483
  %v1746 = vmul.f32 %v1741, %v1745
  %v1747 = vadd.f32 %v1746, 0.05243302
  %v1748 = vmul.f32 %v1741, %v1747
  %v1749 = vadd.f32 %v1748, 0.18741608
  %v1750 = vmul.f32 %v1741, %v1749
  %v1751 = vadd.f32 %v1750, 1.1283791
  %v1752 = vmul.f32 %v584, %v1751
  %v1753 = vmul.f32 %v1741, 3.8918573e-05
  %v1754 = vadd.f32 %v1753, 0.001143296
  %v1755 = vmul.f32 %v1741, %v1754
  %v1756 = vadd.f32 %v1755, 0.014752088
  %v1757 = vmul.f32 %v1741, %v1756
  %v1758 = vadd.f32 %v1757, 0.112945676
  %v1759 = vmul.f32 %v1741, %v1758
  %v1760 = vadd.f32 %v1759, 0.4994258
  %v1761 = vmul.f32 %v1741, %v1760
  %v1762 = vadd.f32 %v1761, 1.0
  %v1763 = vrcp.pop %v1762
  %v1764 = vmul.f32 %v1762, %v1763
  %v1765 = vsub.f32 1.0, %v1764
  %v1766 = vmul.f32 %v1763, %v1765
  %v1767 = vadd.f32 %v1763, %v1766
  %vm1768 = vweird.f32 %v1762
  %vm1769 = vweird.f32 %v1763
  %vm1770 = vmor %vm1768, %vm1769
  %v1771 = vsel %vm1770, %v1763, %v1767
  %v1772 = vand.u32 2147483647, %v1762
  %vm1773 = vcmp.eq.f32.partialorder %v1772, 8.507059e+37
  %v1774 = vand.u32 %v1762, 2147483648
  %v1775 = vor.u32 1.1754944e-38, %v1774
  %v1776 = vsel %vm1773, %v1775, %v1771
  %v1777 = vmul.f32 %v1752, %v1776
  %v1778 = vmin.f32 %v1777, 1.0
  %v1779 = vmax.f32 %v1778, -1.0
  %v1780 = vmul.f32 %v585, %v585
  %v1781 = vmin.f32 16.0, %v1780
  %v1782 = vmul.f32 %v1781, 2.1237322e-06
  %v1783 = vadd.f32 %v1782, 0.00028619796
  %v1784 = vmul.f32 %v1781, %v1783
  %v1785 = vadd.f32 %v1784, 0.0036580483
  %v1786 = vmul.f32 %v1781, %v1785
  %v1787 = vadd.f32 %v1786, 0.05243302
  %v1788 = vmul.f32 %v1781, %v1787
  %v1789 = vadd.f32 %v1788, 0.18741608
  %v1790 = vmul.f32 %v1781, %v1789
  %v1791 = vadd.f32 %v1790, 1.1283791
  %v1792 = vmul.f32 %v585, %v1791
  %v1793 = vmul.f32 %v1781, 3.8918573e-05
  %v1794 = vadd.f32 %v1793, 0.001143296
  %v1795 = vmul.f32 %v1781, %v1794
  %v1796 = vadd.f32 %v1795, 0.014752088
  %v1797 = vmul.f32 %v1781, %v1796
  %v1798 = vadd.f32 %v1797, 0.112945676
  %v1799 = vmul.f32 %v1781, %v1798
  %v1800 = vadd.f32 %v1799, 0.4994258
  %v1801 = vmul.f32 %v1781, %v1800
  %v1802 = vadd.f32 %v1801, 1.0
  %v1803 = vrcp.pop %v1802
  %v1804 = vmul.f32 %v1802, %v1803
  %v1805 = vsub.f32 1.0, %v1804
  %v1806 = vmul.f32 %v1803, %v1805
  %v1807 = vadd.f32 %v1803, %v1806
  %vm1808 = vweird.f32 %v1802
  %vm1809 = vweird.f32 %v1803
  %vm1810 = vmor %vm1808, %vm1809
  %v1811 = vsel %vm1810, %v1803, %v1807
  %v1812 = vand.u32 2147483647, %v1802
  %vm1813 = vcmp.eq.f32.partialorder %v1812, 8.507059e+37
  %v1814 = vand.u32 %v1802, 2147483648
  %v1815 = vor.u32 1.1754944e-38, %v1814
  %v1816 = vsel %vm1813, %v1815, %v1811
  %v1817 = vmul.f32 %v1792, %v1816
  %v1818 = vmin.f32 %v1817, 1.0
  %v1819 = vmax.f32 %v1818, -1.0
  %v1820 = vmul.f32 %v586, %v586
  %v1821 = vmin.f32 16.0, %v1820
  %v1822 = vmul.f32 %v1821, 2.1237322e-06
  %v1823 = vadd.f32 %v1822, 0.00028619796
  %v1824 = vmul.f32 %v1821, %v1823
  %v1825 = vadd.f32 %v1824, 0.0036580483
  %v1826 = vmul.f32 %v1821, %v1825
  %v1827 = vadd.f32 %v1826, 0.05243302
  %v1828 = vmul.f32 %v1821, %v1827
  %v1829 = vadd.f32 %v1828, 0.18741608
  %v1830 = vmul.f32 %v1821, %v1829
  %v1831 = vadd.f32 %v1830, 1.1283791
  %v1832 = vmul.f32 %v586, %v1831
  %v1833 = vmul.f32 %v1821, 3.8918573e-05
  %v1834 = vadd.f32 %v1833, 0.001143296
  %v1835 = vmul.f32 %v1821, %v1834
  %v1836 = vadd.f32 %v1835, 0.014752088
  %v1837 = vmul.f32 %v1821, %v1836
  %v1838 = vadd.f32 %v1837, 0.112945676
  %v1839 = vmul.f32 %v1821, %v1838
  %v1840 = vadd.f32 %v1839, 0.4994258
  %v1841 = vmul.f32 %v1821, %v1840
  %v1842 = vadd.f32 %v1841, 1.0
  %v1843 = vrcp.pop %v1842
  %v1844 = vmul.f32 %v1842, %v1843
  %v1845 = vsub.f32 1.0, %v1844
  %v1846 = vmul.f32 %v1843, %v1845
  %v1847 = vadd.f32 %v1843, %v1846
  %vm1848 = vweird.f32 %v1842
  %vm1849 = vweird.f32 %v1843
  %vm1850 = vmor %vm1848, %vm1849
  %v1851 = vsel %vm1850, %v1843, %v1847
  %v1852 = vand.u32 2147483647, %v1842
  %vm1853 = vcmp.eq.f32.partialorder %v1852, 8.507059e+37
  %v1854 = vand.u32 %v1842, 2147483648
  %v1855 = vor.u32 1.1754944e-38, %v1854
  %v1856 = vsel %vm1853, %v1855, %v1851
  %v1857 = vmul.f32 %v1832, %v1856
  %v1858 = vmin.f32 %v1857, 1.0
  %v1859 = vmax.f32 %v1858, -1.0
  %v1860 = vmul.f32 %v587, %v587
  %v1861 = vmin.f32 16.0, %v1860
  %v1862 = vmul.f32 %v1861, 2.1237322e-06
  %v1863 = vadd.f32 %v1862, 0.00028619796
  %v1864 = vmul.f32 %v1861, %v1863
  %v1865 = vadd.f32 %v1864, 0.0036580483
  %v1866 = vmul.f32 %v1861, %v1865
  %v1867 = vadd.f32 %v1866, 0.05243302
  %v1868 = vmul.f32 %v1861, %v1867
  %v1869 = vadd.f32 %v1868, 0.18741608
  %v1870 = vmul.f32 %v1861, %v1869
  %v1871 = vadd.f32 %v1870, 1.1283791
  %v1872 = vmul.f32 %v587, %v1871
  %v1873 = vmul.f32 %v1861, 3.8918573e-05
  %v1874 = vadd.f32 %v1873, 0.001143296
  %v1875 = vmul.f32 %v1861, %v1874
  %v1876 = vadd.f32 %v1875, 0.014752088
  %v1877 = vmul.f32 %v1861, %v1876
  %v1878 = vadd.f32 %v1877, 0.112945676
  %v1879 = vmul.f32 %v1861, %v1878
  %v1880 = vadd.f32 %v1879, 0.4994258
  %v1881 = vmul.f32 %v1861, %v1880
  %v1882 = vadd.f32 %v1881, 1.0
  %v1883 = vrcp.pop %v1882
  %v1884 = vmul.f32 %v1882, %v1883
  %v1885 = vsub.f32 1.0, %v1884
  %v1886 = vmul.f32 %v1883, %v1885
  %v1887 = vadd.f32 %v1883, %v1886
  %vm1888 = vweird.f32 %v1882
  %vm1889 = vweird.f32 %v1883
  %vm1890 = vmor %vm1888, %vm1889
  %v1891 = vsel %vm1890, %v1883, %v1887
  %v1892 = vand.u32 2147483647, %v1882
  %vm1893 = vcmp.eq.f32.partialorder %v1892, 8.507059e+37
  %v1894 = vand.u32 %v1882, 2147483648
  %v1895 = vor.u32 1.1754944e-38, %v1894
  %v1896 = vsel %vm1893, %v1895, %v1891
  %v1897 = vmul.f32 %v1872, %v1896
  %v1898 = vmin.f32 %v1897, 1.0
  %v1899 = vmax.f32 %v1898, -1.0
  %v1900 = vmul.f32 %v588, %v588
  %v1901 = vmin.f32 16.0, %v1900
  %v1902 = vmul.f32 %v1901, 2.1237322e-06
  %v1903 = vadd.f32 %v1902, 0.00028619796
  %v1904 = vmul.f32 %v1901, %v1903
  %v1905 = vadd.f32 %v1904, 0.0036580483
  %v1906 = vmul.f32 %v1901, %v1905
  %v1907 = vadd.f32 %v1906, 0.05243302
  %v1908 = vmul.f32 %v1901, %v1907
  %v1909 = vadd.f32 %v1908, 0.18741608
  %v1910 = vmul.f32 %v1901, %v1909
  %v1911 = vadd.f32 %v1910, 1.1283791
  %v1912 = vmul.f32 %v588, %v1911
  %v1913 = vmul.f32 %v1901, 3.8918573e-05
  %v1914 = vadd.f32 %v1913, 0.001143296
  %v1915 = vmul.f32 %v1901, %v1914
  %v1916 = vadd.f32 %v1915, 0.014752088
  %v1917 = vmul.f32 %v1901, %v1916
  %v1918 = vadd.f32 %v1917, 0.112945676
  %v1919 = vmul.f32 %v1901, %v1918
  %v1920 = vadd.f32 %v1919, 0.4994258
  %v1921 = vmul.f32 %v1901, %v1920
  %v1922 = vadd.f32 %v1921, 1.0
  %v1923 = vrcp.pop %v1922
  %v1924 = vmul.f32 %v1922, %v1923
  %v1925 = vsub.f32 1.0, %v1924
  %v1926 = vmul.f32 %v1923, %v1925
  %v1927 = vadd.f32 %v1923, %v1926
  %vm1928 = vweird.f32 %v1922
  %vm1929 = vweird.f32 %v1923
  %vm1930 = vmor %vm1928, %vm1929
  %v1931 = vsel %vm1930, %v1923, %v1927
  %v1932 = vand.u32 2147483647, %v1922
  %vm1933 = vcmp.eq.f32.partialorder %v1932, 8.507059e+37
  %v1934 = vand.u32 %v1922, 2147483648
  %v1935 = vor.u32 1.1754944e-38, %v1934
  %v1936 = vsel %vm1933, %v1935, %v1931
  %v1937 = vmul.f32 %v1912, %v1936
  %v1938 = vmin.f32 %v1937, 1.0
  %v1939 = vmax.f32 %v1938, -1.0
  %v1940 = vmul.f32 %v589, %v589
  %v1941 = vmin.f32 16.0, %v1940
  %v1942 = vmul.f32 %v1941, 2.1237322e-06
  %v1943 = vadd.f32 %v1942, 0.00028619796
  %v1944 = vmul.f32 %v1941, %v1943
  %v1945 = vadd.f32 %v1944, 0.0036580483
  %v1946 = vmul.f32 %v1941, %v1945
  %v1947 = vadd.f32 %v1946, 0.05243302
  %v1948 = vmul.f32 %v1941, %v1947
  %v1949 = vadd.f32 %v1948, 0.18741608
  %v1950 = vmul.f32 %v1941, %v1949
  %v1951 = vadd.f32 %v1950, 1.1283791
  %v1952 = vmul.f32 %v589, %v1951
  %v1953 = vmul.f32 %v1941, 3.8918573e-05
  %v1954 = vadd.f32 %v1953, 0.001143296
  %v1955 = vmul.f32 %v1941, %v1954
  %v1956 = vadd.f32 %v1955, 0.014752088
  %v1957 = vmul.f32 %v1941, %v1956
  %v1958 = vadd.f32 %v1957, 0.112945676
  %v1959 = vmul.f32 %v1941, %v1958
  %v1960 = vadd.f32 %v1959, 0.4994258
  %v1961 = vmul.f32 %v1941, %v1960
  %v1962 = vadd.f32 %v1961, 1.0
  %v1963 = vrcp.pop %v1962
  %v1964 = vmul.f32 %v1962, %v1963
  %v1965 = vsub.f32 1.0, %v1964
  %v1966 = vmul.f32 %v1963, %v1965
  %v1967 = vadd.f32 %v1963, %v1966
  %vm1968 = vweird.f32 %v1962
  %vm1969 = vweird.f32 %v1963
  %vm1970 = vmor %vm1968, %vm1969
  %v1971 = vsel %vm1970, %v1963, %v1967
  %v1972 = vand.u32 2147483647, %v1962
  %vm1973 = vcmp.eq.f32.partialorder %v1972, 8.507059e+37
  %v1974 = vand.u32 %v1962, 2147483648
  %v1975 = vor.u32 1.1754944e-38, %v1974
  %v1976 = vsel %vm1973, %v1975, %v1971
  %v1977 = vmul.f32 %v1952, %v1976
  %v1978 = vmin.f32 %v1977, 1.0
  %v1979 = vmax.f32 %v1978, -1.0
  %v1980 = vmul.f32 %v590, %v590
  %v1981 = vmin.f32 16.0, %v1980
  %v1982 = vmul.f32 %v1981, 2.1237322e-06
  %v1983 = vadd.f32 %v1982, 0.00028619796
  %v1984 = vmul.f32 %v1981, %v1983
  %v1985 = vadd.f32 %v1984, 0.0036580483
  %v1986 = vmul.f32 %v1981, %v1985
  %v1987 = vadd.f32 %v1986, 0.05243302
  %v1988 = vmul.f32 %v1981, %v1987
  %v1989 = vadd.f32 %v1988, 0.18741608
  %v1990 = vmul.f32 %v1981, %v1989
  %v1991 = vadd.f32 %v1990, 1.1283791
  %v1992 = vmul.f32 %v590, %v1991
  %v1993 = vmul.f32 %v1981, 3.8918573e-05
  %v1994 = vadd.f32 %v1993, 0.001143296
  %v1995 = vmul.f32 %v1981, %v1994
  %v1996 = vadd.f32 %v1995, 0.014752088
  %v1997 = vmul.f32 %v1981, %v1996
  %v1998 = vadd.f32 %v1997, 0.112945676
  %v1999 = vmul.f32 %v1981, %v1998
  %v2000 = vadd.f32 %v1999, 0.4994258
  %v2001 = vmul.f32 %v1981, %v2000
  %v2002 = vadd.f32 %v2001, 1.0
  %v2003 = vrcp.pop %v2002
  %v2004 = vmul.f32 %v2002, %v2003
  %v2005 = vsub.f32 1.0, %v2004
  %v2006 = vmul.f32 %v2003, %v2005
  %v2007 = vadd.f32 %v2003, %v2006
  %vm2008 = vweird.f32 %v2002
  %vm2009 = vweird.f32 %v2003
  %vm2010 = vmor %vm2008, %vm2009
  %v2011 = vsel %vm2010, %v2003, %v2007
  %v2012 = vand.u32 2147483647, %v2002
  %vm2013 = vcmp.eq.f32.partialorder %v2012, 8.507059e+37
  %v2014 = vand.u32 %v2002, 2147483648
  %v2015 = vor.u32 1.1754944e-38, %v2014
  %v2016 = vsel %vm2013, %v2015, %v2011
  %v2017 = vmul.f32 %v1992, %v2016
  %v2018 = vmin.f32 %v2017, 1.0
  %v2019 = vmax.f32 %v2018, -1.0
  %v2020 = vmul.f32 %v591, %v591
  %v2021 = vmin.f32 16.0, %v2020
  %v2022 = vmul.f32 %v2021, 2.1237322e-06
  %v2023 = vadd.f32 %v2022, 0.00028619796
  %v2024 = vmul.f32 %v2021, %v2023
  %v2025 = vadd.f32 %v2024, 0.0036580483
  %v2026 = vmul.f32 %v2021, %v2025
  %v2027 = vadd.f32 %v2026, 0.05243302
  %v2028 = vmul.f32 %v2021, %v2027
  %v2029 = vadd.f32 %v2028, 0.18741608
  %v2030 = vmul.f32 %v2021, %v2029
  %v2031 = vadd.f32 %v2030, 1.1283791
  %v2032 = vmul.f32 %v591, %v2031
  %v2033 = vmul.f32 %v2021, 3.8918573e-05
  %v2034 = vadd.f32 %v2033, 0.001143296
  %v2035 = vmul.f32 %v2021, %v2034
  %v2036 = vadd.f32 %v2035, 0.014752088
  %v2037 = vmul.f32 %v2021, %v2036
  %v2038 = vadd.f32 %v2037, 0.112945676
  %v2039 = vmul.f32 %v2021, %v2038
  %v2040 = vadd.f32 %v2039, 0.4994258
  %v2041 = vmul.f32 %v2021, %v2040
  %v2042 = vadd.f32 %v2041, 1.0
  %v2043 = vrcp.pop %v2042
  %v2044 = vmul.f32 %v2042, %v2043
  %v2045 = vsub.f32 1.0, %v2044
  %v2046 = vmul.f32 %v2043, %v2045
  %v2047 = vadd.f32 %v2043, %v2046
  %vm2048 = vweird.f32 %v2042
  %vm2049 = vweird.f32 %v2043
  %vm2050 = vmor %vm2048, %vm2049
  %v2051 = vsel %vm2050, %v2043, %v2047
  %v2052 = vand.u32 2147483647, %v2042
  %vm2053 = vcmp.eq.f32.partialorder %v2052, 8.507059e+37
  %v2054 = vand.u32 %v2042, 2147483648
  %v2055 = vor.u32 1.1754944e-38, %v2054
  %v2056 = vsel %vm2053, %v2055, %v2051
  %v2057 = vmul.f32 %v2032, %v2056
  %v2058 = vmin.f32 %v2057, 1.0
  %v2059 = vmax.f32 %v2058, -1.0
  %v2060 = vmul.f32 %v592, %v592
  %v2061 = vmin.f32 16.0, %v2060
  %v2062 = vmul.f32 %v2061, 2.1237322e-06
  %v2063 = vadd.f32 %v2062, 0.00028619796
  %v2064 = vmul.f32 %v2061, %v2063
  %v2065 = vadd.f32 %v2064, 0.0036580483
  %v2066 = vmul.f32 %v2061, %v2065
  %v2067 = vadd.f32 %v2066, 0.05243302
  %v2068 = vmul.f32 %v2061, %v2067
  %v2069 = vadd.f32 %v2068, 0.18741608
  %v2070 = vmul.f32 %v2061, %v2069
  %v2071 = vadd.f32 %v2070, 1.1283791
  %v2072 = vmul.f32 %v592, %v2071
  %v2073 = vmul.f32 %v2061, 3.8918573e-05
  %v2074 = vadd.f32 %v2073, 0.001143296
  %v2075 = vmul.f32 %v2061, %v2074
  %v2076 = vadd.f32 %v2075, 0.014752088
  %v2077 = vmul.f32 %v2061, %v2076
  %v2078 = vadd.f32 %v2077, 0.112945676
  %v2079 = vmul.f32 %v2061, %v2078
  %v2080 = vadd.f32 %v2079, 0.4994258
  %v2081 = vmul.f32 %v2061, %v2080
  %v2082 = vadd.f32 %v2081, 1.0
  %v2083 = vrcp.pop %v2082
  %v2084 = vmul.f32 %v2082, %v2083
  %v2085 = vsub.f32 1.0, %v2084
  %v2086 = vmul.f32 %v2083, %v2085
  %v2087 = vadd.f32 %v2083, %v2086
  %vm2088 = vweird.f32 %v2082
  %vm2089 = vweird.f32 %v2083
  %vm2090 = vmor %vm2088, %vm2089
  %v2091 = vsel %vm2090, %v2083, %v2087
  %v2092 = vand.u32 2147483647, %v2082
  %vm2093 = vcmp.eq.f32.partialorder %v2092, 8.507059e+37
  %v2094 = vand.u32 %v2082, 2147483648
  %v2095 = vor.u32 1.1754944e-38, %v2094
  %v2096 = vsel %vm2093, %v2095, %v2091
  %v2097 = vmul.f32 %v2072, %v2096
  %v2098 = vmin.f32 %v2097, 1.0
  %v2099 = vmax.f32 %v2098, -1.0
  %v2100 = vmul.f32 %v593, %v593
  %v2101 = vmin.f32 16.0, %v2100
  %v2102 = vmul.f32 %v2101, 2.1237322e-06
  %v2103 = vadd.f32 %v2102, 0.00028619796
  %v2104 = vmul.f32 %v2101, %v2103
  %v2105 = vadd.f32 %v2104, 0.0036580483
  %v2106 = vmul.f32 %v2101, %v2105
  %v2107 = vadd.f32 %v2106, 0.05243302
  %v2108 = vmul.f32 %v2101, %v2107
  %v2109 = vadd.f32 %v2108, 0.18741608
  %v2110 = vmul.f32 %v2101, %v2109
  %v2111 = vadd.f32 %v2110, 1.1283791
  %v2112 = vmul.f32 %v593, %v2111
  %v2113 = vmul.f32 %v2101, 3.8918573e-05
  %v2114 = vadd.f32 %v2113, 0.001143296
  %v2115 = vmul.f32 %v2101, %v2114
  %v2116 = vadd.f32 %v2115, 0.014752088
  %v2117 = vmul.f32 %v2101, %v2116
  %v2118 = vadd.f32 %v2117, 0.112945676
  %v2119 = vmul.f32 %v2101, %v2118
  %v2120 = vadd.f32 %v2119, 0.4994258
  %v2121 = vmul.f32 %v2101, %v2120
  %v2122 = vadd.f32 %v2121, 1.0
  %v2123 = vrcp.pop %v2122
  %v2124 = vmul.f32 %v2122, %v2123
  %v2125 = vsub.f32 1.0, %v2124
  %v2126 = vmul.f32 %v2123, %v2125
  %v2127 = vadd.f32 %v2123, %v2126
  %vm2128 = vweird.f32 %v2122
  %vm2129 = vweird.f32 %v2123
  %vm2130 = vmor %vm2128, %vm2129
  %v2131 = vsel %vm2130, %v2123, %v2127
  %v2132 = vand.u32 2147483647, %v2122
  %vm2133 = vcmp.eq.f32.partialorder %v2132, 8.507059e+37
  %v2134 = vand.u32 %v2122, 2147483648
  %v2135 = vor.u32 1.1754944e-38, %v2134
  %v2136 = vsel %vm2133, %v2135, %v2131
  %v2137 = vmul.f32 %v2112, %v2136
  %v2138 = vmin.f32 %v2137, 1.0
  %v2139 = vmax.f32 %v2138, -1.0
  %v2140 = vmul.f32 %v594, %v594
  %v2141 = vmin.f32 16.0, %v2140
  %v2142 = vmul.f32 %v2141, 2.1237322e-06
  %v2143 = vadd.f32 %v2142, 0.00028619796
  %v2144 = vmul.f32 %v2141, %v2143
  %v2145 = vadd.f32 %v2144, 0.0036580483
  %v2146 = vmul.f32 %v2141, %v2145
  %v2147 = vadd.f32 %v2146, 0.05243302
  %v2148 = vmul.f32 %v2141, %v2147
  %v2149 = vadd.f32 %v2148, 0.18741608
  %v2150 = vmul.f32 %v2141, %v2149
  %v2151 = vadd.f32 %v2150, 1.1283791
  %v2152 = vmul.f32 %v594, %v2151
  %v2153 = vmul.f32 %v2141, 3.8918573e-05
  %v2154 = vadd.f32 %v2153, 0.001143296
  %v2155 = vmul.f32 %v2141, %v2154
  %v2156 = vadd.f32 %v2155, 0.014752088
  %v2157 = vmul.f32 %v2141, %v2156
  %v2158 = vadd.f32 %v2157, 0.112945676
  %v2159 = vmul.f32 %v2141, %v2158
  %v2160 = vadd.f32 %v2159, 0.4994258
  %v2161 = vmul.f32 %v2141, %v2160
  %v2162 = vadd.f32 %v2161, 1.0
  %v2163 = vrcp.pop %v2162
  %v2164 = vmul.f32 %v2162, %v2163
  %v2165 = vsub.f32 1.0, %v2164
  %v2166 = vmul.f32 %v2163, %v2165
  %v2167 = vadd.f32 %v2163, %v2166
  %vm2168 = vweird.f32 %v2162
  %vm2169 = vweird.f32 %v2163
  %vm2170 = vmor %vm2168, %vm2169
  %v2171 = vsel %vm2170, %v2163, %v2167
  %v2172 = vand.u32 2147483647, %v2162
  %vm2173 = vcmp.eq.f32.partialorder %v2172, 8.507059e+37
  %v2174 = vand.u32 %v2162, 2147483648
  %v2175 = vor.u32 1.1754944e-38, %v2174
  %v2176 = vsel %vm2173, %v2175, %v2171
  %v2177 = vmul.f32 %v2152, %v2176
  %v2178 = vmin.f32 %v2177, 1.0
  %v2179 = vmax.f32 %v2178, -1.0
  %v2180 = vmul.f32 %v595, %v595
  %v2181 = vmin.f32 16.0, %v2180
  %v2182 = vmul.f32 %v2181, 2.1237322e-06
  %v2183 = vadd.f32 %v2182, 0.00028619796
  %v2184 = vmul.f32 %v2181, %v2183
  %v2185 = vadd.f32 %v2184, 0.0036580483
  %v2186 = vmul.f32 %v2181, %v2185
  %v2187 = vadd.f32 %v2186, 0.05243302
  %v2188 = vmul.f32 %v2181, %v2187
  %v2189 = vadd.f32 %v2188, 0.18741608
  %v2190 = vmul.f32 %v2181, %v2189
  %v2191 = vadd.f32 %v2190, 1.1283791
  %v2192 = vmul.f32 %v595, %v2191
  %v2193 = vmul.f32 %v2181, 3.8918573e-05
  %v2194 = vadd.f32 %v2193, 0.001143296
  %v2195 = vmul.f32 %v2181, %v2194
  %v2196 = vadd.f32 %v2195, 0.014752088
  %v2197 = vmul.f32 %v2181, %v2196
  %v2198 = vadd.f32 %v2197, 0.112945676
  %v2199 = vmul.f32 %v2181, %v2198
  %v2200 = vadd.f32 %v2199, 0.4994258
  %v2201 = vmul.f32 %v2181, %v2200
  %v2202 = vadd.f32 %v2201, 1.0
  %v2203 = vrcp.pop %v2202
  %v2204 = vmul.f32 %v2202, %v2203
  %v2205 = vsub.f32 1.0, %v2204
  %v2206 = vmul.f32 %v2203, %v2205
  %v2207 = vadd.f32 %v2203, %v2206
  %vm2208 = vweird.f32 %v2202
  %vm2209 = vweird.f32 %v2203
  %vm2210 = vmor %vm2208, %vm2209
  %v2211 = vsel %vm2210, %v2203, %v2207
  %v2212 = vand.u32 2147483647, %v2202
  %vm2213 = vcmp.eq.f32.partialorder %v2212, 8.507059e+37
  %v2214 = vand.u32 %v2202, 2147483648
  %v2215 = vor.u32 1.1754944e-38, %v2214
  %v2216 = vsel %vm2213, %v2215, %v2211
  %v2217 = vmul.f32 %v2192, %v2216
  %v2218 = vmin.f32 %v2217, 1.0
  %v2219 = vmax.f32 %v2218, -1.0
  %v2220 = vmul.f32 %v596, %v596
  %v2221 = vmin.f32 16.0, %v2220
  %v2222 = vmul.f32 %v2221, 2.1237322e-06
  %v2223 = vadd.f32 %v2222, 0.00028619796
  %v2224 = vmul.f32 %v2221, %v2223
  %v2225 = vadd.f32 %v2224, 0.0036580483
  %v2226 = vmul.f32 %v2221, %v2225
  %v2227 = vadd.f32 %v2226, 0.05243302
  %v2228 = vmul.f32 %v2221, %v2227
  %v2229 = vadd.f32 %v2228, 0.18741608
  %v2230 = vmul.f32 %v2221, %v2229
  %v2231 = vadd.f32 %v2230, 1.1283791
  %v2232 = vmul.f32 %v596, %v2231
  %v2233 = vmul.f32 %v2221, 3.8918573e-05
  %v2234 = vadd.f32 %v2233, 0.001143296
  %v2235 = vmul.f32 %v2221, %v2234
  %v2236 = vadd.f32 %v2235, 0.014752088
  %v2237 = vmul.f32 %v2221, %v2236
  %v2238 = vadd.f32 %v2237, 0.112945676
  %v2239 = vmul.f32 %v2221, %v2238
  %v2240 = vadd.f32 %v2239, 0.4994258
  %v2241 = vmul.f32 %v2221, %v2240
  %v2242 = vadd.f32 %v2241, 1.0
  %v2243 = vrcp.pop %v2242
  %v2244 = vmul.f32 %v2242, %v2243
  %v2245 = vsub.f32 1.0, %v2244
  %v2246 = vmul.f32 %v2243, %v2245
  %v2247 = vadd.f32 %v2243, %v2246
  %vm2248 = vweird.f32 %v2242
  %vm2249 = vweird.f32 %v2243
  %vm2250 = vmor %vm2248, %vm2249
  %v2251 = vsel %vm2250, %v2243, %v2247
  %v2252 = vand.u32 2147483647, %v2242
  %vm2253 = vcmp.eq.f32.partialorder %v2252, 8.507059e+37
  %v2254 = vand.u32 %v2242, 2147483648
  %v2255 = vor.u32 1.1754944e-38, %v2254
  %v2256 = vsel %vm2253, %v2255, %v2251
  %v2257 = vmul.f32 %v2232, %v2256
  %v2258 = vmin.f32 %v2257, 1.0
  %v2259 = vmax.f32 %v2258, -1.0
  %v2260 = vmul.f32 %v597, %v597
  %v2261 = vmin.f32 16.0, %v2260
  %v2262 = vmul.f32 %v2261, 2.1237322e-06
  %v2263 = vadd.f32 %v2262, 0.00028619796
  %v2264 = vmul.f32 %v2261, %v2263
  %v2265 = vadd.f32 %v2264, 0.0036580483
  %v2266 = vmul.f32 %v2261, %v2265
  %v2267 = vadd.f32 %v2266, 0.05243302
  %v2268 = vmul.f32 %v2261, %v2267
  %v2269 = vadd.f32 %v2268, 0.18741608
  %v2270 = vmul.f32 %v2261, %v2269
  %v2271 = vadd.f32 %v2270, 1.1283791
  %v2272 = vmul.f32 %v597, %v2271
  %v2273 = vmul.f32 %v2261, 3.8918573e-05
  %v2274 = vadd.f32 %v2273, 0.001143296
  %v2275 = vmul.f32 %v2261, %v2274
  %v2276 = vadd.f32 %v2275, 0.014752088
  %v2277 = vmul.f32 %v2261, %v2276
  %v2278 = vadd.f32 %v2277, 0.112945676
  %v2279 = vmul.f32 %v2261, %v2278
  %v2280 = vadd.f32 %v2279, 0.4994258
  %v2281 = vmul.f32 %v2261, %v2280
  %v2282 = vadd.f32 %v2281, 1.0
  %v2283 = vrcp.pop %v2282
  %v2284 = vmul.f32 %v2282, %v2283
  %v2285 = vsub.f32 1.0, %v2284
  %v2286 = vmul.f32 %v2283, %v2285
  %v2287 = vadd.f32 %v2283, %v2286
  %vm2288 = vweird.f32 %v2282
  %vm2289 = vweird.f32 %v2283
  %vm2290 = vmor %vm2288, %vm2289
  %v2291 = vsel %vm2290, %v2283, %v2287
  %v2292 = vand.u32 2147483647, %v2282
  %vm2293 = vcmp.eq.f32.partialorder %v2292, 8.507059e+37
  %v2294 = vand.u32 %v2282, 2147483648
  %v2295 = vor.u32 1.1754944e-38, %v2294
  %v2296 = vsel %vm2293, %v2295, %v2291
  %v2297 = vmul.f32 %v2272, %v2296
  %v2298 = vmin.f32 %v2297, 1.0
  %v2299 = vmax.f32 %v2298, -1.0
  %v2300 = vmul.f32 %v598, %v598
  %v2301 = vmin.f32 16.0, %v2300
  %v2302 = vmul.f32 %v2301, 2.1237322e-06
  %v2303 = vadd.f32 %v2302, 0.00028619796
  %v2304 = vmul.f32 %v2301, %v2303
  %v2305 = vadd.f32 %v2304, 0.0036580483
  %v2306 = vmul.f32 %v2301, %v2305
  %v2307 = vadd.f32 %v2306, 0.05243302
  %v2308 = vmul.f32 %v2301, %v2307
  %v2309 = vadd.f32 %v2308, 0.18741608
  %v2310 = vmul.f32 %v2301, %v2309
  %v2311 = vadd.f32 %v2310, 1.1283791
  %v2312 = vmul.f32 %v598, %v2311
  %v2313 = vmul.f32 %v2301, 3.8918573e-05
  %v2314 = vadd.f32 %v2313, 0.001143296
  %v2315 = vmul.f32 %v2301, %v2314
  %v2316 = vadd.f32 %v2315, 0.014752088
  %v2317 = vmul.f32 %v2301, %v2316
  %v2318 = vadd.f32 %v2317, 0.112945676
  %v2319 = vmul.f32 %v2301, %v2318
  %v2320 = vadd.f32 %v2319, 0.4994258
  %v2321 = vmul.f32 %v2301, %v2320
  %v2322 = vadd.f32 %v2321, 1.0
  %v2323 = vrcp.pop %v2322
  %v2324 = vmul.f32 %v2322, %v2323
  %v2325 = vsub.f32 1.0, %v2324
  %v2326 = vmul.f32 %v2323, %v2325
  %v2327 = vadd.f32 %v2323, %v2326
  %vm2328 = vweird.f32 %v2322
  %vm2329 = vweird.f32 %v2323
  %vm2330 = vmor %vm2328, %vm2329
  %v2331 = vsel %vm2330, %v2323, %v2327
  %v2332 = vand.u32 2147483647, %v2322
  %vm2333 = vcmp.eq.f32.partialorder %v2332, 8.507059e+37
  %v2334 = vand.u32 %v2322, 2147483648
  %v2335 = vor.u32 1.1754944e-38, %v2334
  %v2336 = vsel %vm2333, %v2335, %v2331
  %v2337 = vmul.f32 %v2312, %v2336
  %v2338 = vmin.f32 %v2337, 1.0
  %v2339 = vmax.f32 %v2338, -1.0
  %v2340 = vmul.f32 %v599, %v599
  %v2341 = vmin.f32 16.0, %v2340
  %v2342 = vmul.f32 %v2341, 2.1237322e-06
  %v2343 = vadd.f32 %v2342, 0.00028619796
  %v2344 = vmul.f32 %v2341, %v2343
  %v2345 = vadd.f32 %v2344, 0.0036580483
  %v2346 = vmul.f32 %v2341, %v2345
  %v2347 = vadd.f32 %v2346, 0.05243302
  %v2348 = vmul.f32 %v2341, %v2347
  %v2349 = vadd.f32 %v2348, 0.18741608
  %v2350 = vmul.f32 %v2341, %v2349
  %v2351 = vadd.f32 %v2350, 1.1283791
  %v2352 = vmul.f32 %v599, %v2351
  %v2353 = vmul.f32 %v2341, 3.8918573e-05
  %v2354 = vadd.f32 %v2353, 0.001143296
  %v2355 = vmul.f32 %v2341, %v2354
  %v2356 = vadd.f32 %v2355, 0.014752088
  %v2357 = vmul.f32 %v2341, %v2356
  %v2358 = vadd.f32 %v2357, 0.112945676
  %v2359 = vmul.f32 %v2341, %v2358
  %v2360 = vadd.f32 %v2359, 0.4994258
  %v2361 = vmul.f32 %v2341, %v2360
  %v2362 = vadd.f32 %v2361, 1.0
  %v2363 = vrcp.pop %v2362
  %v2364 = vmul.f32 %v2362, %v2363
  %v2365 = vsub.f32 1.0, %v2364
  %v2366 = vmul.f32 %v2363, %v2365
  %v2367 = vadd.f32 %v2363, %v2366
  %vm2368 = vweird.f32 %v2362
  %vm2369 = vweird.f32 %v2363
  %vm2370 = vmor %vm2368, %vm2369
  %v2371 = vsel %vm2370, %v2363, %v2367
  %v2372 = vand.u32 2147483647, %v2362
  %vm2373 = vcmp.eq.f32.partialorder %v2372, 8.507059e+37
  %v2374 = vand.u32 %v2362, 2147483648
  %v2375 = vor.u32 1.1754944e-38, %v2374
  %v2376 = vsel %vm2373, %v2375, %v2371
  %v2377 = vmul.f32 %v2352, %v2376
  %v2378 = vmin.f32 %v2377, 1.0
  %v2379 = vmax.f32 %v2378, -1.0
  %v2380 = vmul.f32 %v600, %v600
  %v2381 = vmin.f32 16.0, %v2380
  %v2382 = vmul.f32 %v2381, 2.1237322e-06
  %v2383 = vadd.f32 %v2382, 0.00028619796
  %v2384 = vmul.f32 %v2381, %v2383
  %v2385 = vadd.f32 %v2384, 0.0036580483
  %v2386 = vmul.f32 %v2381, %v2385
  %v2387 = vadd.f32 %v2386, 0.05243302
  %v2388 = vmul.f32 %v2381, %v2387
  %v2389 = vadd.f32 %v2388, 0.18741608
  %v2390 = vmul.f32 %v2381, %v2389
  %v2391 = vadd.f32 %v2390, 1.1283791
  %v2392 = vmul.f32 %v600, %v2391
  %v2393 = vmul.f32 %v2381, 3.8918573e-05
  %v2394 = vadd.f32 %v2393, 0.001143296
  %v2395 = vmul.f32 %v2381, %v2394
  %v2396 = vadd.f32 %v2395, 0.014752088
  %v2397 = vmul.f32 %v2381, %v2396
  %v2398 = vadd.f32 %v2397, 0.112945676
  %v2399 = vmul.f32 %v2381, %v2398
  %v2400 = vadd.f32 %v2399, 0.4994258
  %v2401 = vmul.f32 %v2381, %v2400
  %v2402 = vadd.f32 %v2401, 1.0
  %v2403 = vrcp.pop %v2402
  %v2404 = vmul.f32 %v2402, %v2403
  %v2405 = vsub.f32 1.0, %v2404
  %v2406 = vmul.f32 %v2403, %v2405
  %v2407 = vadd.f32 %v2403, %v2406
  %vm2408 = vweird.f32 %v2402
  %vm2409 = vweird.f32 %v2403
  %vm2410 = vmor %vm2408, %vm2409
  %v2411 = vsel %vm2410, %v2403, %v2407
  %v2412 = vand.u32 2147483647, %v2402
  %vm2413 = vcmp.eq.f32.partialorder %v2412, 8.507059e+37
  %v2414 = vand.u32 %v2402, 2147483648
  %v2415 = vor.u32 1.1754944e-38, %v2414
  %v2416 = vsel %vm2413, %v2415, %v2411
  %v2417 = vmul.f32 %v2392, %v2416
  %v2418 = vmin.f32 %v2417, 1.0
  %v2419 = vmax.f32 %v2418, -1.0
  %v2420 = vmul.f32 %v601, %v601
  %v2421 = vmin.f32 16.0, %v2420
  %v2422 = vmul.f32 %v2421, 2.1237322e-06
  %v2423 = vadd.f32 %v2422, 0.00028619796
  %v2424 = vmul.f32 %v2421, %v2423
  %v2425 = vadd.f32 %v2424, 0.0036580483
  %v2426 = vmul.f32 %v2421, %v2425
  %v2427 = vadd.f32 %v2426, 0.05243302
  %v2428 = vmul.f32 %v2421, %v2427
  %v2429 = vadd.f32 %v2428, 0.18741608
  %v2430 = vmul.f32 %v2421, %v2429
  %v2431 = vadd.f32 %v2430, 1.1283791
  %v2432 = vmul.f32 %v601, %v2431
  %v2433 = vmul.f32 %v2421, 3.8918573e-05
  %v2434 = vadd.f32 %v2433, 0.001143296
  %v2435 = vmul.f32 %v2421, %v2434
  %v2436 = vadd.f32 %v2435, 0.014752088
  %v2437 = vmul.f32 %v2421, %v2436
  %v2438 = vadd.f32 %v2437, 0.112945676
  %v2439 = vmul.f32 %v2421, %v2438
  %v2440 = vadd.f32 %v2439, 0.4994258
  %v2441 = vmul.f32 %v2421, %v2440
  %v2442 = vadd.f32 %v2441, 1.0
  %v2443 = vrcp.pop %v2442
  %v2444 = vmul.f32 %v2442, %v2443
  %v2445 = vsub.f32 1.0, %v2444
  %v2446 = vmul.f32 %v2443, %v2445
  %v2447 = vadd.f32 %v2443, %v2446
  %vm2448 = vweird.f32 %v2442
  %vm2449 = vweird.f32 %v2443
  %vm2450 = vmor %vm2448, %vm2449
  %v2451 = vsel %vm2450, %v2443, %v2447
  %v2452 = vand.u32 2147483647, %v2442
  %vm2453 = vcmp.eq.f32.partialorder %v2452, 8.507059e+37
  %v2454 = vand.u32 %v2442, 2147483648
  %v2455 = vor.u32 1.1754944e-38, %v2454
  %v2456 = vsel %vm2453, %v2455, %v2451
  %v2457 = vmul.f32 %v2432, %v2456
  %v2458 = vmin.f32 %v2457, 1.0
  %v2459 = vmax.f32 %v2458, -1.0
  %v2460 = vmul.f32 %v602, %v602
  %v2461 = vmin.f32 16.0, %v2460
  %v2462 = vmul.f32 %v2461, 2.1237322e-06
  %v2463 = vadd.f32 %v2462, 0.00028619796
  %v2464 = vmul.f32 %v2461, %v2463
  %v2465 = vadd.f32 %v2464, 0.0036580483
  %v2466 = vmul.f32 %v2461, %v2465
  %v2467 = vadd.f32 %v2466, 0.05243302
  %v2468 = vmul.f32 %v2461, %v2467
  %v2469 = vadd.f32 %v2468, 0.18741608
  %v2470 = vmul.f32 %v2461, %v2469
  %v2471 = vadd.f32 %v2470, 1.1283791
  %v2472 = vmul.f32 %v602, %v2471
  %v2473 = vmul.f32 %v2461, 3.8918573e-05
  %v2474 = vadd.f32 %v2473, 0.001143296
  %v2475 = vmul.f32 %v2461, %v2474
  %v2476 = vadd.f32 %v2475, 0.014752088
  %v2477 = vmul.f32 %v2461, %v2476
  %v2478 = vadd.f32 %v2477, 0.112945676
  %v2479 = vmul.f32 %v2461, %v2478
  %v2480 = vadd.f32 %v2479, 0.4994258
  %v2481 = vmul.f32 %v2461, %v2480
  %v2482 = vadd.f32 %v2481, 1.0
  %v2483 = vrcp.pop %v2482
  %v2484 = vmul.f32 %v2482, %v2483
  %v2485 = vsub.f32 1.0, %v2484
  %v2486 = vmul.f32 %v2483, %v2485
  %v2487 = vadd.f32 %v2483, %v2486
  %vm2488 = vweird.f32 %v2482
  %vm2489 = vweird.f32 %v2483
  %vm2490 = vmor %vm2488, %vm2489
  %v2491 = vsel %vm2490, %v2483, %v2487
  %v2492 = vand.u32 2147483647, %v2482
  %vm2493 = vcmp.eq.f32.partialorder %v2492, 8.507059e+37
  %v2494 = vand.u32 %v2482, 2147483648
  %v2495 = vor.u32 1.1754944e-38, %v2494
  %v2496 = vsel %vm2493, %v2495, %v2491
  %v2497 = vmul.f32 %v2472, %v2496
  %v2498 = vmin.f32 %v2497, 1.0
  %v2499 = vmax.f32 %v2498, -1.0
  %v2500 = vmul.f32 %v603, %v603
  %v2501 = vmin.f32 16.0, %v2500
  %v2502 = vmul.f32 %v2501, 2.1237322e-06
  %v2503 = vadd.f32 %v2502, 0.00028619796
  %v2504 = vmul.f32 %v2501, %v2503
  %v2505 = vadd.f32 %v2504, 0.0036580483
  %v2506 = vmul.f32 %v2501, %v2505
  %v2507 = vadd.f32 %v2506, 0.05243302
  %v2508 = vmul.f32 %v2501, %v2507
  %v2509 = vadd.f32 %v2508, 0.18741608
  %v2510 = vmul.f32 %v2501, %v2509
  %v2511 = vadd.f32 %v2510, 1.1283791
  %v2512 = vmul.f32 %v603, %v2511
  %v2513 = vmul.f32 %v2501, 3.8918573e-05
  %v2514 = vadd.f32 %v2513, 0.001143296
  %v2515 = vmul.f32 %v2501, %v2514
  %v2516 = vadd.f32 %v2515, 0.014752088
  %v2517 = vmul.f32 %v2501, %v2516
  %v2518 = vadd.f32 %v2517, 0.112945676
  %v2519 = vmul.f32 %v2501, %v2518
  %v2520 = vadd.f32 %v2519, 0.4994258
  %v2521 = vmul.f32 %v2501, %v2520
  %v2522 = vadd.f32 %v2521, 1.0
  %v2523 = vrcp.pop %v2522
  %v2524 = vmul.f32 %v2522, %v2523
  %v2525 = vsub.f32 1.0, %v2524
  %v2526 = vmul.f32 %v2523, %v2525
  %v2527 = vadd.f32 %v2523, %v2526
  %vm2528 = vweird.f32 %v2522
  %vm2529 = vweird.f32 %v2523
  %vm2530 = vmor %vm2528, %vm2529
  %v2531 = vsel %vm2530, %v2523, %v2527
  %v2532 = vand.u32 2147483647, %v2522
  %vm2533 = vcmp.eq.f32.partialorder %v2532, 8.507059e+37
  %v2534 = vand.u32 %v2522, 2147483648
  %v2535 = vor.u32 1.1754944e-38, %v2534
  %v2536 = vsel %vm2533, %v2535, %v2531
  %v2537 = vmul.f32 %v2512, %v2536
  %v2538 = vmin.f32 %v2537, 1.0
  %v2539 = vmax.f32 %v2538, -1.0
  %v2540 = vmul.f32 %v604, %v604
  %v2541 = vmin.f32 16.0, %v2540
  %v2542 = vmul.f32 %v2541, 2.1237322e-06
  %v2543 = vadd.f32 %v2542, 0.00028619796
  %v2544 = vmul.f32 %v2541, %v2543
  %v2545 = vadd.f32 %v2544, 0.0036580483
  %v2546 = vmul.f32 %v2541, %v2545
  %v2547 = vadd.f32 %v2546, 0.05243302
  %v2548 = vmul.f32 %v2541, %v2547
  %v2549 = vadd.f32 %v2548, 0.18741608
  %v2550 = vmul.f32 %v2541, %v2549
  %v2551 = vadd.f32 %v2550, 1.1283791
  %v2552 = vmul.f32 %v604, %v2551
  %v2553 = vmul.f32 %v2541, 3.8918573e-05
  %v2554 = vadd.f32 %v2553, 0.001143296
  %v2555 = vmul.f32 %v2541, %v2554
  %v2556 = vadd.f32 %v2555, 0.014752088
  %v2557 = vmul.f32 %v2541, %v2556
  %v2558 = vadd.f32 %v2557, 0.112945676
  %v2559 = vmul.f32 %v2541, %v2558
  %v2560 = vadd.f32 %v2559, 0.4994258
  %v2561 = vmul.f32 %v2541, %v2560
  %v2562 = vadd.f32 %v2561, 1.0
  %v2563 = vrcp.pop %v2562
  %v2564 = vmul.f32 %v2562, %v2563
  %v2565 = vsub.f32 1.0, %v2564
  %v2566 = vmul.f32 %v2563, %v2565
  %v2567 = vadd.f32 %v2563, %v2566
  %vm2568 = vweird.f32 %v2562
  %vm2569 = vweird.f32 %v2563
  %vm2570 = vmor %vm2568, %vm2569
  %v2571 = vsel %vm2570, %v2563, %v2567
  %v2572 = vand.u32 2147483647, %v2562
  %vm2573 = vcmp.eq.f32.partialorder %v2572, 8.507059e+37
  %v2574 = vand.u32 %v2562, 2147483648
  %v2575 = vor.u32 1.1754944e-38, %v2574
  %v2576 = vsel %vm2573, %v2575, %v2571
  %v2577 = vmul.f32 %v2552, %v2576
  %v2578 = vmin.f32 %v2577, 1.0
  %v2579 = vmax.f32 %v2578, -1.0
  %v2580 = vmul.f32 %v605, %v605
  %v2581 = vmin.f32 16.0, %v2580
  %v2582 = vmul.f32 %v2581, 2.1237322e-06
  %v2583 = vadd.f32 %v2582, 0.00028619796
  %v2584 = vmul.f32 %v2581, %v2583
  %v2585 = vadd.f32 %v2584, 0.0036580483
  %v2586 = vmul.f32 %v2581, %v2585
  %v2587 = vadd.f32 %v2586, 0.05243302
  %v2588 = vmul.f32 %v2581, %v2587
  %v2589 = vadd.f32 %v2588, 0.18741608
  %v2590 = vmul.f32 %v2581, %v2589
  %v2591 = vadd.f32 %v2590, 1.1283791
  %v2592 = vmul.f32 %v605, %v2591
  %v2593 = vmul.f32 %v2581, 3.8918573e-05
  %v2594 = vadd.f32 %v2593, 0.001143296
  %v2595 = vmul.f32 %v2581, %v2594
  %v2596 = vadd.f32 %v2595, 0.014752088
  %v2597 = vmul.f32 %v2581, %v2596
  %v2598 = vadd.f32 %v2597, 0.112945676
  %v2599 = vmul.f32 %v2581, %v2598
  %v2600 = vadd.f32 %v2599, 0.4994258
  %v2601 = vmul.f32 %v2581, %v2600
  %v2602 = vadd.f32 %v2601, 1.0
  %v2603 = vrcp.pop %v2602
  %v2604 = vmul.f32 %v2602, %v2603
  %v2605 = vsub.f32 1.0, %v2604
  %v2606 = vmul.f32 %v2603, %v2605
  %v2607 = vadd.f32 %v2603, %v2606
  %vm2608 = vweird.f32 %v2602
  %vm2609 = vweird.f32 %v2603
  %vm2610 = vmor %vm2608, %vm2609
  %v2611 = vsel %vm2610, %v2603, %v2607
  %v2612 = vand.u32 2147483647, %v2602
  %vm2613 = vcmp.eq.f32.partialorder %v2612, 8.507059e+37
  %v2614 = vand.u32 %v2602, 2147483648
  %v2615 = vor.u32 1.1754944e-38, %v2614
  %v2616 = vsel %vm2613, %v2615, %v2611
  %v2617 = vmul.f32 %v2592, %v2616
  %v2618 = vmin.f32 %v2617, 1.0
  %v2619 = vmax.f32 %v2618, -1.0
  %v2620 = vmul.f32 %v606, %v606
  %v2621 = vmin.f32 16.0, %v2620
  %v2622 = vmul.f32 %v2621, 2.1237322e-06
  %v2623 = vadd.f32 %v2622, 0.00028619796
  %v2624 = vmul.f32 %v2621, %v2623
  %v2625 = vadd.f32 %v2624, 0.0036580483
  %v2626 = vmul.f32 %v2621, %v2625
  %v2627 = vadd.f32 %v2626, 0.05243302
  %v2628 = vmul.f32 %v2621, %v2627
  %v2629 = vadd.f32 %v2628, 0.18741608
  %v2630 = vmul.f32 %v2621, %v2629
  %v2631 = vadd.f32 %v2630, 1.1283791
  %v2632 = vmul.f32 %v606, %v2631
  %v2633 = vmul.f32 %v2621, 3.8918573e-05
  %v2634 = vadd.f32 %v2633, 0.001143296
  %v2635 = vmul.f32 %v2621, %v2634
  %v2636 = vadd.f32 %v2635, 0.014752088
  %v2637 = vmul.f32 %v2621, %v2636
  %v2638 = vadd.f32 %v2637, 0.112945676
  %v2639 = vmul.f32 %v2621, %v2638
  %v2640 = vadd.f32 %v2639, 0.4994258
  %v2641 = vmul.f32 %v2621, %v2640
  %v2642 = vadd.f32 %v2641, 1.0
  %v2643 = vrcp.pop %v2642
  %v2644 = vmul.f32 %v2642, %v2643
  %v2645 = vsub.f32 1.0, %v2644
  %v2646 = vmul.f32 %v2643, %v2645
  %v2647 = vadd.f32 %v2643, %v2646
  %vm2648 = vweird.f32 %v2642
  %vm2649 = vweird.f32 %v2643
  %vm2650 = vmor %vm2648, %vm2649
  %v2651 = vsel %vm2650, %v2643, %v2647
  %v2652 = vand.u32 2147483647, %v2642
  %vm2653 = vcmp.eq.f32.partialorder %v2652, 8.507059e+37
  %v2654 = vand.u32 %v2642, 2147483648
  %v2655 = vor.u32 1.1754944e-38, %v2654
  %v2656 = vsel %vm2653, %v2655, %v2651
  %v2657 = vmul.f32 %v2632, %v2656
  %v2658 = vmin.f32 %v2657, 1.0
  %v2659 = vmax.f32 %v2658, -1.0
  %v2660 = vmul.f32 %v607, %v607
  %v2661 = vmin.f32 16.0, %v2660
  %v2662 = vmul.f32 %v2661, 2.1237322e-06
  %v2663 = vadd.f32 %v2662, 0.00028619796
  %v2664 = vmul.f32 %v2661, %v2663
  %v2665 = vadd.f32 %v2664, 0.0036580483
  %v2666 = vmul.f32 %v2661, %v2665
  %v2667 = vadd.f32 %v2666, 0.05243302
  %v2668 = vmul.f32 %v2661, %v2667
  %v2669 = vadd.f32 %v2668, 0.18741608
  %v2670 = vmul.f32 %v2661, %v2669
  %v2671 = vadd.f32 %v2670, 1.1283791
  %v2672 = vmul.f32 %v607, %v2671
  %v2673 = vmul.f32 %v2661, 3.8918573e-05
  %v2674 = vadd.f32 %v2673, 0.001143296
  %v2675 = vmul.f32 %v2661, %v2674
  %v2676 = vadd.f32 %v2675, 0.014752088
  %v2677 = vmul.f32 %v2661, %v2676
  %v2678 = vadd.f32 %v2677, 0.112945676
  %v2679 = vmul.f32 %v2661, %v2678
  %v2680 = vadd.f32 %v2679, 0.4994258
  %v2681 = vmul.f32 %v2661, %v2680
  %v2682 = vadd.f32 %v2681, 1.0
  %v2683 = vrcp.pop %v2682
  %v2684 = vmul.f32 %v2682, %v2683
  %v2685 = vsub.f32 1.0, %v2684
  %v2686 = vmul.f32 %v2683, %v2685
  %v2687 = vadd.f32 %v2683, %v2686
  %vm2688 = vweird.f32 %v2682
  %vm2689 = vweird.f32 %v2683
  %vm2690 = vmor %vm2688, %vm2689
  %v2691 = vsel %vm2690, %v2683, %v2687
  %v2692 = vand.u32 2147483647, %v2682
  %vm2693 = vcmp.eq.f32.partialorder %v2692, 8.507059e+37
  %v2694 = vand.u32 %v2682, 2147483648
  %v2695 = vor.u32 1.1754944e-38, %v2694
  %v2696 = vsel %vm2693, %v2695, %v2691
  %v2697 = vmul.f32 %v2672, %v2696
  %v2698 = vmin.f32 %v2697, 1.0
  %v2699 = vmax.f32 %v2698, -1.0
  %v2700 = vmul.f32 %v608, %v608
  %v2701 = vmin.f32 16.0, %v2700
  %v2702 = vmul.f32 %v2701, 2.1237322e-06
  %v2703 = vadd.f32 %v2702, 0.00028619796
  %v2704 = vmul.f32 %v2701, %v2703
  %v2705 = vadd.f32 %v2704, 0.0036580483
  %v2706 = vmul.f32 %v2701, %v2705
  %v2707 = vadd.f32 %v2706, 0.05243302
  %v2708 = vmul.f32 %v2701, %v2707
  %v2709 = vadd.f32 %v2708, 0.18741608
  %v2710 = vmul.f32 %v2701, %v2709
  %v2711 = vadd.f32 %v2710, 1.1283791
  %v2712 = vmul.f32 %v608, %v2711
  %v2713 = vmul.f32 %v2701, 3.8918573e-05
  %v2714 = vadd.f32 %v2713, 0.001143296
  %v2715 = vmul.f32 %v2701, %v2714
  %v2716 = vadd.f32 %v2715, 0.014752088
  %v2717 = vmul.f32 %v2701, %v2716
  %v2718 = vadd.f32 %v2717, 0.112945676
  %v2719 = vmul.f32 %v2701, %v2718
  %v2720 = vadd.f32 %v2719, 0.4994258
  %v2721 = vmul.f32 %v2701, %v2720
  %v2722 = vadd.f32 %v2721, 1.0
  %v2723 = vrcp.pop %v2722
  %v2724 = vmul.f32 %v2722, %v2723
  %v2725 = vsub.f32 1.0, %v2724
  %v2726 = vmul.f32 %v2723, %v2725
  %v2727 = vadd.f32 %v2723, %v2726
  %vm2728 = vweird.f32 %v2722
  %vm2729 = vweird.f32 %v2723
  %vm2730 = vmor %vm2728, %vm2729
  %v2731 = vsel %vm2730, %v2723, %v2727
  %v2732 = vand.u32 2147483647, %v2722
  %vm2733 = vcmp.eq.f32.partialorder %v2732, 8.507059e+37
  %v2734 = vand.u32 %v2722, 2147483648
  %v2735 = vor.u32 1.1754944e-38, %v2734
  %v2736 = vsel %vm2733, %v2735, %v2731
  %v2737 = vmul.f32 %v2712, %v2736
  %v2738 = vmin.f32 %v2737, 1.0
  %v2739 = vmax.f32 %v2738, -1.0
  %v2740 = vmul.f32 %v609, %v609
  %v2741 = vmin.f32 16.0, %v2740
  %v2742 = vmul.f32 %v2741, 2.1237322e-06
  %v2743 = vadd.f32 %v2742, 0.00028619796
  %v2744 = vmul.f32 %v2741, %v2743
  %v2745 = vadd.f32 %v2744, 0.0036580483
  %v2746 = vmul.f32 %v2741, %v2745
  %v2747 = vadd.f32 %v2746, 0.05243302
  %v2748 = vmul.f32 %v2741, %v2747
  %v2749 = vadd.f32 %v2748, 0.18741608
  %v2750 = vmul.f32 %v2741, %v2749
  %v2751 = vadd.f32 %v2750, 1.1283791
  %v2752 = vmul.f32 %v609, %v2751
  %v2753 = vmul.f32 %v2741, 3.8918573e-05
  %v2754 = vadd.f32 %v2753, 0.001143296
  %v2755 = vmul.f32 %v2741, %v2754
  %v2756 = vadd.f32 %v2755, 0.014752088
  %v2757 = vmul.f32 %v2741, %v2756
  %v2758 = vadd.f32 %v2757, 0.112945676
  %v2759 = vmul.f32 %v2741, %v2758
  %v2760 = vadd.f32 %v2759, 0.4994258
  %v2761 = vmul.f32 %v2741, %v2760
  %v2762 = vadd.f32 %v2761, 1.0
  %v2763 = vrcp.pop %v2762
  %v2764 = vmul.f32 %v2762, %v2763
  %v2765 = vsub.f32 1.0, %v2764
  %v2766 = vmul.f32 %v2763, %v2765
  %v2767 = vadd.f32 %v2763, %v2766
  %vm2768 = vweird.f32 %v2762
  %vm2769 = vweird.f32 %v2763
  %vm2770 = vmor %vm2768, %vm2769
  %v2771 = vsel %vm2770, %v2763, %v2767
  %v2772 = vand.u32 2147483647, %v2762
  %vm2773 = vcmp.eq.f32.partialorder %v2772, 8.507059e+37
  %v2774 = vand.u32 %v2762, 2147483648
  %v2775 = vor.u32 1.1754944e-38, %v2774
  %v2776 = vsel %vm2773, %v2775, %v2771
  %v2777 = vmul.f32 %v2752, %v2776
  %v2778 = vmin.f32 %v2777, 1.0
  %v2779 = vmax.f32 %v2778, -1.0
  %v2780 = vmul.f32 %v610, %v610
  %v2781 = vmin.f32 16.0, %v2780
  %v2782 = vmul.f32 %v2781, 2.1237322e-06
  %v2783 = vadd.f32 %v2782, 0.00028619796
  %v2784 = vmul.f32 %v2781, %v2783
  %v2785 = vadd.f32 %v2784, 0.0036580483
  %v2786 = vmul.f32 %v2781, %v2785
  %v2787 = vadd.f32 %v2786, 0.05243302
  %v2788 = vmul.f32 %v2781, %v2787
  %v2789 = vadd.f32 %v2788, 0.18741608
  %v2790 = vmul.f32 %v2781, %v2789
  %v2791 = vadd.f32 %v2790, 1.1283791
  %v2792 = vmul.f32 %v610, %v2791
  %v2793 = vmul.f32 %v2781, 3.8918573e-05
  %v2794 = vadd.f32 %v2793, 0.001143296
  %v2795 = vmul.f32 %v2781, %v2794
  %v2796 = vadd.f32 %v2795, 0.014752088
  %v2797 = vmul.f32 %v2781, %v2796
  %v2798 = vadd.f32 %v2797, 0.112945676
  %v2799 = vmul.f32 %v2781, %v2798
  %v2800 = vadd.f32 %v2799, 0.4994258
  %v2801 = vmul.f32 %v2781, %v2800
  %v2802 = vadd.f32 %v2801, 1.0
  %v2803 = vrcp.pop %v2802
  %v2804 = vmul.f32 %v2802, %v2803
  %v2805 = vsub.f32 1.0, %v2804
  %v2806 = vmul.f32 %v2803, %v2805
  %v2807 = vadd.f32 %v2803, %v2806
  %vm2808 = vweird.f32 %v2802
  %vm2809 = vweird.f32 %v2803
  %vm2810 = vmor %vm2808, %vm2809
  %v2811 = vsel %vm2810, %v2803, %v2807
  %v2812 = vand.u32 2147483647, %v2802
  %vm2813 = vcmp.eq.f32.partialorder %v2812, 8.507059e+37
  %v2814 = vand.u32 %v2802, 2147483648
  %v2815 = vor.u32 1.1754944e-38, %v2814
  %v2816 = vsel %vm2813, %v2815, %v2811
  %v2817 = vmul.f32 %v2792, %v2816
  %v2818 = vmin.f32 %v2817, 1.0
  %v2819 = vmax.f32 %v2818, -1.0
  %v2820 = vmul.f32 %v611, %v611
  %v2821 = vmin.f32 16.0, %v2820
  %v2822 = vmul.f32 %v2821, 2.1237322e-06
  %v2823 = vadd.f32 %v2822, 0.00028619796
  %v2824 = vmul.f32 %v2821, %v2823
  %v2825 = vadd.f32 %v2824, 0.0036580483
  %v2826 = vmul.f32 %v2821, %v2825
  %v2827 = vadd.f32 %v2826, 0.05243302
  %v2828 = vmul.f32 %v2821, %v2827
  %v2829 = vadd.f32 %v2828, 0.18741608
  %v2830 = vmul.f32 %v2821, %v2829
  %v2831 = vadd.f32 %v2830, 1.1283791
  %v2832 = vmul.f32 %v611, %v2831
  %v2833 = vmul.f32 %v2821, 3.8918573e-05
  %v2834 = vadd.f32 %v2833, 0.001143296
  %v2835 = vmul.f32 %v2821, %v2834
  %v2836 = vadd.f32 %v2835, 0.014752088
  %v2837 = vmul.f32 %v2821, %v2836
  %v2838 = vadd.f32 %v2837, 0.112945676
  %v2839 = vmul.f32 %v2821, %v2838
  %v2840 = vadd.f32 %v2839, 0.4994258
  %v2841 = vmul.f32 %v2821, %v2840
  %v2842 = vadd.f32 %v2841, 1.0
  %v2843 = vrcp.pop %v2842
  %v2844 = vmul.f32 %v2842, %v2843
  %v2845 = vsub.f32 1.0, %v2844
  %v2846 = vmul.f32 %v2843, %v2845
  %v2847 = vadd.f32 %v2843, %v2846
  %vm2848 = vweird.f32 %v2842
  %vm2849 = vweird.f32 %v2843
  %vm2850 = vmor %vm2848, %vm2849
  %v2851 = vsel %vm2850, %v2843, %v2847
  %v2852 = vand.u32 2147483647, %v2842
  %vm2853 = vcmp.eq.f32.partialorder %v2852, 8.507059e+37
  %v2854 = vand.u32 %v2842, 2147483648
  %v2855 = vor.u32 1.1754944e-38, %v2854
  %v2856 = vsel %vm2853, %v2855, %v2851
  %v2857 = vmul.f32 %v2832, %v2856
  %v2858 = vmin.f32 %v2857, 1.0
  %v2859 = vmax.f32 %v2858, -1.0
  %v2860 = vmul.f32 %v612, %v612
  %v2861 = vmin.f32 16.0, %v2860
  %v2862 = vmul.f32 %v2861, 2.1237322e-06
  %v2863 = vadd.f32 %v2862, 0.00028619796
  %v2864 = vmul.f32 %v2861, %v2863
  %v2865 = vadd.f32 %v2864, 0.0036580483
  %v2866 = vmul.f32 %v2861, %v2865
  %v2867 = vadd.f32 %v2866, 0.05243302
  %v2868 = vmul.f32 %v2861, %v2867
  %v2869 = vadd.f32 %v2868, 0.18741608
  %v2870 = vmul.f32 %v2861, %v2869
  %v2871 = vadd.f32 %v2870, 1.1283791
  %v2872 = vmul.f32 %v612, %v2871
  %v2873 = vmul.f32 %v2861, 3.8918573e-05
  %v2874 = vadd.f32 %v2873, 0.001143296
  %v2875 = vmul.f32 %v2861, %v2874
  %v2876 = vadd.f32 %v2875, 0.014752088
  %v2877 = vmul.f32 %v2861, %v2876
  %v2878 = vadd.f32 %v2877, 0.112945676
  %v2879 = vmul.f32 %v2861, %v2878
  %v2880 = vadd.f32 %v2879, 0.4994258
  %v2881 = vmul.f32 %v2861, %v2880
  %v2882 = vadd.f32 %v2881, 1.0
  %v2883 = vrcp.pop %v2882
  %v2884 = vmul.f32 %v2882, %v2883
  %v2885 = vsub.f32 1.0, %v2884
  %v2886 = vmul.f32 %v2883, %v2885
  %v2887 = vadd.f32 %v2883, %v2886
  %vm2888 = vweird.f32 %v2882
  %vm2889 = vweird.f32 %v2883
  %vm2890 = vmor %vm2888, %vm2889
  %v2891 = vsel %vm2890, %v2883, %v2887
  %v2892 = vand.u32 2147483647, %v2882
  %vm2893 = vcmp.eq.f32.partialorder %v2892, 8.507059e+37
  %v2894 = vand.u32 %v2882, 2147483648
  %v2895 = vor.u32 1.1754944e-38, %v2894
  %v2896 = vsel %vm2893, %v2895, %v2891
  %v2897 = vmul.f32 %v2872, %v2896
  %v2898 = vmin.f32 %v2897, 1.0
  %v2899 = vmax.f32 %v2898, -1.0
  %v2900 = vmul.f32 %v613, %v613
  %v2901 = vmin.f32 16.0, %v2900
  %v2902 = vmul.f32 %v2901, 2.1237322e-06
  %v2903 = vadd.f32 %v2902, 0.00028619796
  %v2904 = vmul.f32 %v2901, %v2903
  %v2905 = vadd.f32 %v2904, 0.0036580483
  %v2906 = vmul.f32 %v2901, %v2905
  %v2907 = vadd.f32 %v2906, 0.05243302
  %v2908 = vmul.f32 %v2901, %v2907
  %v2909 = vadd.f32 %v2908, 0.18741608
  %v2910 = vmul.f32 %v2901, %v2909
  %v2911 = vadd.f32 %v2910, 1.1283791
  %v2912 = vmul.f32 %v613, %v2911
  %v2913 = vmul.f32 %v2901, 3.8918573e-05
  %v2914 = vadd.f32 %v2913, 0.001143296
  %v2915 = vmul.f32 %v2901, %v2914
  %v2916 = vadd.f32 %v2915, 0.014752088
  %v2917 = vmul.f32 %v2901, %v2916
  %v2918 = vadd.f32 %v2917, 0.112945676
  %v2919 = vmul.f32 %v2901, %v2918
  %v2920 = vadd.f32 %v2919, 0.4994258
  %v2921 = vmul.f32 %v2901, %v2920
  %v2922 = vadd.f32 %v2921, 1.0
  %v2923 = vrcp.pop %v2922
  %v2924 = vmul.f32 %v2922, %v2923
  %v2925 = vsub.f32 1.0, %v2924
  %v2926 = vmul.f32 %v2923, %v2925
  %v2927 = vadd.f32 %v2923, %v2926
  %vm2928 = vweird.f32 %v2922
  %vm2929 = vweird.f32 %v2923
  %vm2930 = vmor %vm2928, %vm2929
  %v2931 = vsel %vm2930, %v2923, %v2927
  %v2932 = vand.u32 2147483647, %v2922
  %vm2933 = vcmp.eq.f32.partialorder %v2932, 8.507059e+37
  %v2934 = vand.u32 %v2922, 2147483648
  %v2935 = vor.u32 1.1754944e-38, %v2934
  %v2936 = vsel %vm2933, %v2935, %v2931
  %v2937 = vmul.f32 %v2912, %v2936
  %v2938 = vmin.f32 %v2937, 1.0
  %v2939 = vmax.f32 %v2938, -1.0
  %v2940 = vmul.f32 %v614, %v614
  %v2941 = vmin.f32 16.0, %v2940
  %v2942 = vmul.f32 %v2941, 2.1237322e-06
  %v2943 = vadd.f32 %v2942, 0.00028619796
  %v2944 = vmul.f32 %v2941, %v2943
  %v2945 = vadd.f32 %v2944, 0.0036580483
  %v2946 = vmul.f32 %v2941, %v2945
  %v2947 = vadd.f32 %v2946, 0.05243302
  %v2948 = vmul.f32 %v2941, %v2947
  %v2949 = vadd.f32 %v2948, 0.18741608
  %v2950 = vmul.f32 %v2941, %v2949
  %v2951 = vadd.f32 %v2950, 1.1283791
  %v2952 = vmul.f32 %v614, %v2951
  %v2953 = vmul.f32 %v2941, 3.8918573e-05
  %v2954 = vadd.f32 %v2953, 0.001143296
  %v2955 = vmul.f32 %v2941, %v2954
  %v2956 = vadd.f32 %v2955, 0.014752088
  %v2957 = vmul.f32 %v2941, %v2956
  %v2958 = vadd.f32 %v2957, 0.112945676
  %v2959 = vmul.f32 %v2941, %v2958
  %v2960 = vadd.f32 %v2959, 0.4994258
  %v2961 = vmul.f32 %v2941, %v2960
  %v2962 = vadd.f32 %v2961, 1.0
  %v2963 = vrcp.pop %v2962
  %v2964 = vmul.f32 %v2962, %v2963
  %v2965 = vsub.f32 1.0, %v2964
  %v2966 = vmul.f32 %v2963, %v2965
  %v2967 = vadd.f32 %v2963, %v2966
  %vm2968 = vweird.f32 %v2962
  %vm2969 = vweird.f32 %v2963
  %vm2970 = vmor %vm2968, %vm2969
  %v2971 = vsel %vm2970, %v2963, %v2967
  %v2972 = vand.u32 2147483647, %v2962
  %vm2973 = vcmp.eq.f32.partialorder %v2972, 8.507059e+37
  %v2974 = vand.u32 %v2962, 2147483648
  %v2975 = vor.u32 1.1754944e-38, %v2974
  %v2976 = vsel %vm2973, %v2975, %v2971
  %v2977 = vmul.f32 %v2952, %v2976
  %v2978 = vmin.f32 %v2977, 1.0
  %v2979 = vmax.f32 %v2978, -1.0
  %v2980 = vmul.f32 %v615, %v615
  %v2981 = vmin.f32 16.0, %v2980
  %v2982 = vmul.f32 %v2981, 2.1237322e-06
  %v2983 = vadd.f32 %v2982, 0.00028619796
  %v2984 = vmul.f32 %v2981, %v2983
  %v2985 = vadd.f32 %v2984, 0.0036580483
  %v2986 = vmul.f32 %v2981, %v2985
  %v2987 = vadd.f32 %v2986, 0.05243302
  %v2988 = vmul.f32 %v2981, %v2987
  %v2989 = vadd.f32 %v2988, 0.18741608
  %v2990 = vmul.f32 %v2981, %v2989
  %v2991 = vadd.f32 %v2990, 1.1283791
  %v2992 = vmul.f32 %v615, %v2991
  %v2993 = vmul.f32 %v2981, 3.8918573e-05
  %v2994 = vadd.f32 %v2993, 0.001143296
  %v2995 = vmul.f32 %v2981, %v2994
  %v2996 = vadd.f32 %v2995, 0.014752088
  %v2997 = vmul.f32 %v2981, %v2996
  %v2998 = vadd.f32 %v2997, 0.112945676
  %v2999 = vmul.f32 %v2981, %v2998
  %v3000 = vadd.f32 %v2999, 0.4994258
  %v3001 = vmul.f32 %v2981, %v3000
  %v3002 = vadd.f32 %v3001, 1.0
  %v3003 = vrcp.pop %v3002
  %v3004 = vmul.f32 %v3002, %v3003
  %v3005 = vsub.f32 1.0, %v3004
  %v3006 = vmul.f32 %v3003, %v3005
  %v3007 = vadd.f32 %v3003, %v3006
  %vm3008 = vweird.f32 %v3002
  %vm3009 = vweird.f32 %v3003
  %vm3010 = vmor %vm3008, %vm3009
  %v3011 = vsel %vm3010, %v3003, %v3007
  %v3012 = vand.u32 2147483647, %v3002
  %vm3013 = vcmp.eq.f32.partialorder %v3012, 8.507059e+37
  %v3014 = vand.u32 %v3002, 2147483648
  %v3015 = vor.u32 1.1754944e-38, %v3014
  %v3016 = vsel %vm3013, %v3015, %v3011
  %v3017 = vmul.f32 %v2992, %v3016
  %v3018 = vmin.f32 %v3017, 1.0
  %v3019 = vmax.f32 %v3018, -1.0
  %v3020 = vmul.f32 %v616, %v616
  %v3021 = vmin.f32 16.0, %v3020
  %v3022 = vmul.f32 %v3021, 2.1237322e-06
  %v3023 = vadd.f32 %v3022, 0.00028619796
  %v3024 = vmul.f32 %v3021, %v3023
  %v3025 = vadd.f32 %v3024, 0.0036580483
  %v3026 = vmul.f32 %v3021, %v3025
  %v3027 = vadd.f32 %v3026, 0.05243302
  %v3028 = vmul.f32 %v3021, %v3027
  %v3029 = vadd.f32 %v3028, 0.18741608
  %v3030 = vmul.f32 %v3021, %v3029
  %v3031 = vadd.f32 %v3030, 1.1283791
  %v3032 = vmul.f32 %v616, %v3031
  %v3033 = vmul.f32 %v3021, 3.8918573e-05
  %v3034 = vadd.f32 %v3033, 0.001143296
  %v3035 = vmul.f32 %v3021, %v3034
  %v3036 = vadd.f32 %v3035, 0.014752088
  %v3037 = vmul.f32 %v3021, %v3036
  %v3038 = vadd.f32 %v3037, 0.112945676
  %v3039 = vmul.f32 %v3021, %v3038
  %v3040 = vadd.f32 %v3039, 0.4994258
  %v3041 = vmul.f32 %v3021, %v3040
  %v3042 = vadd.f32 %v3041, 1.0
  %v3043 = vrcp.pop %v3042
  %v3044 = vmul.f32 %v3042, %v3043
  %v3045 = vsub.f32 1.0, %v3044
  %v3046 = vmul.f32 %v3043, %v3045
  %v3047 = vadd.f32 %v3043, %v3046
  %vm3048 = vweird.f32 %v3042
  %vm3049 = vweird.f32 %v3043
  %vm3050 = vmor %vm3048, %vm3049
  %v3051 = vsel %vm3050, %v3043, %v3047
  %v3052 = vand.u32 2147483647, %v3042
  %vm3053 = vcmp.eq.f32.partialorder %v3052, 8.507059e+37
  %v3054 = vand.u32 %v3042, 2147483648
  %v3055 = vor.u32 1.1754944e-38, %v3054
  %v3056 = vsel %vm3053, %v3055, %v3051
  %v3057 = vmul.f32 %v3032, %v3056
  %v3058 = vmin.f32 %v3057, 1.0
  %v3059 = vmax.f32 %v3058, -1.0
  %v3060 = vmul.f32 %v617, %v617
  %v3061 = vmin.f32 16.0, %v3060
  %v3062 = vmul.f32 %v3061, 2.1237322e-06
  %v3063 = vadd.f32 %v3062, 0.00028619796
  %v3064 = vmul.f32 %v3061, %v3063
  %v3065 = vadd.f32 %v3064, 0.0036580483
  %v3066 = vmul.f32 %v3061, %v3065
  %v3067 = vadd.f32 %v3066, 0.05243302
  %v3068 = vmul.f32 %v3061, %v3067
  %v3069 = vadd.f32 %v3068, 0.18741608
  %v3070 = vmul.f32 %v3061, %v3069
  %v3071 = vadd.f32 %v3070, 1.1283791
  %v3072 = vmul.f32 %v617, %v3071
  %v3073 = vmul.f32 %v3061, 3.8918573e-05
  %v3074 = vadd.f32 %v3073, 0.001143296
  %v3075 = vmul.f32 %v3061, %v3074
  %v3076 = vadd.f32 %v3075, 0.014752088
  %v3077 = vmul.f32 %v3061, %v3076
  %v3078 = vadd.f32 %v3077, 0.112945676
  %v3079 = vmul.f32 %v3061, %v3078
  %v3080 = vadd.f32 %v3079, 0.4994258
  %v3081 = vmul.f32 %v3061, %v3080
  %v3082 = vadd.f32 %v3081, 1.0
  %v3083 = vrcp.pop %v3082
  %v3084 = vmul.f32 %v3082, %v3083
  %v3085 = vsub.f32 1.0, %v3084
  %v3086 = vmul.f32 %v3083, %v3085
  %v3087 = vadd.f32 %v3083, %v3086
  %vm3088 = vweird.f32 %v3082
  %vm3089 = vweird.f32 %v3083
  %vm3090 = vmor %vm3088, %vm3089
  %v3091 = vsel %vm3090, %v3083, %v3087
  %v3092 = vand.u32 2147483647, %v3082
  %vm3093 = vcmp.eq.f32.partialorder %v3092, 8.507059e+37
  %v3094 = vand.u32 %v3082, 2147483648
  %v3095 = vor.u32 1.1754944e-38, %v3094
  %v3096 = vsel %vm3093, %v3095, %v3091
  %v3097 = vmul.f32 %v3072, %v3096
  %v3098 = vmin.f32 %v3097, 1.0
  %v3099 = vmax.f32 %v3098, -1.0
  %v3100 = vmul.f32 %v618, %v618
  %v3101 = vmin.f32 16.0, %v3100
  %v3102 = vmul.f32 %v3101, 2.1237322e-06
  %v3103 = vadd.f32 %v3102, 0.00028619796
  %v3104 = vmul.f32 %v3101, %v3103
  %v3105 = vadd.f32 %v3104, 0.0036580483
  %v3106 = vmul.f32 %v3101, %v3105
  %v3107 = vadd.f32 %v3106, 0.05243302
  %v3108 = vmul.f32 %v3101, %v3107
  %v3109 = vadd.f32 %v3108, 0.18741608
  %v3110 = vmul.f32 %v3101, %v3109
  %v3111 = vadd.f32 %v3110, 1.1283791
  %v3112 = vmul.f32 %v618, %v3111
  %v3113 = vmul.f32 %v3101, 3.8918573e-05
  %v3114 = vadd.f32 %v3113, 0.001143296
  %v3115 = vmul.f32 %v3101, %v3114
  %v3116 = vadd.f32 %v3115, 0.014752088
  %v3117 = vmul.f32 %v3101, %v3116
  %v3118 = vadd.f32 %v3117, 0.112945676
  %v3119 = vmul.f32 %v3101, %v3118
  %v3120 = vadd.f32 %v3119, 0.4994258
  %v3121 = vmul.f32 %v3101, %v3120
  %v3122 = vadd.f32 %v3121, 1.0
  %v3123 = vrcp.pop %v3122
  %v3124 = vmul.f32 %v3122, %v3123
  %v3125 = vsub.f32 1.0, %v3124
  %v3126 = vmul.f32 %v3123, %v3125
  %v3127 = vadd.f32 %v3123, %v3126
  %vm3128 = vweird.f32 %v3122
  %vm3129 = vweird.f32 %v3123
  %vm3130 = vmor %vm3128, %vm3129
  %v3131 = vsel %vm3130, %v3123, %v3127
  %v3132 = vand.u32 2147483647, %v3122
  %vm3133 = vcmp.eq.f32.partialorder %v3132, 8.507059e+37
  %v3134 = vand.u32 %v3122, 2147483648
  %v3135 = vor.u32 1.1754944e-38, %v3134
  %v3136 = vsel %vm3133, %v3135, %v3131
  %v3137 = vmul.f32 %v3112, %v3136
  %v3138 = vmin.f32 %v3137, 1.0
  %v3139 = vmax.f32 %v3138, -1.0
  %v3140 = vmul.f32 %v619, %v619
  %v3141 = vmin.f32 16.0, %v3140
  %v3142 = vmul.f32 %v3141, 2.1237322e-06
  %v3143 = vadd.f32 %v3142, 0.00028619796
  %v3144 = vmul.f32 %v3141, %v3143
  %v3145 = vadd.f32 %v3144, 0.0036580483
  %v3146 = vmul.f32 %v3141, %v3145
  %v3147 = vadd.f32 %v3146, 0.05243302
  %v3148 = vmul.f32 %v3141, %v3147
  %v3149 = vadd.f32 %v3148, 0.18741608
  %v3150 = vmul.f32 %v3141, %v3149
  %v3151 = vadd.f32 %v3150, 1.1283791
  %v3152 = vmul.f32 %v619, %v3151
  %v3153 = vmul.f32 %v3141, 3.8918573e-05
  %v3154 = vadd.f32 %v3153, 0.001143296
  %v3155 = vmul.f32 %v3141, %v3154
  %v3156 = vadd.f32 %v3155, 0.014752088
  %v3157 = vmul.f32 %v3141, %v3156
  %v3158 = vadd.f32 %v3157, 0.112945676
  %v3159 = vmul.f32 %v3141, %v3158
  %v3160 = vadd.f32 %v3159, 0.4994258
  %v3161 = vmul.f32 %v3141, %v3160
  %v3162 = vadd.f32 %v3161, 1.0
  %v3163 = vrcp.pop %v3162
  %v3164 = vmul.f32 %v3162, %v3163
  %v3165 = vsub.f32 1.0, %v3164
  %v3166 = vmul.f32 %v3163, %v3165
  %v3167 = vadd.f32 %v3163, %v3166
  %vm3168 = vweird.f32 %v3162
  %vm3169 = vweird.f32 %v3163
  %vm3170 = vmor %vm3168, %vm3169
  %v3171 = vsel %vm3170, %v3163, %v3167
  %v3172 = vand.u32 2147483647, %v3162
  %vm3173 = vcmp.eq.f32.partialorder %v3172, 8.507059e+37
  %v3174 = vand.u32 %v3162, 2147483648
  %v3175 = vor.u32 1.1754944e-38, %v3174
  %v3176 = vsel %vm3173, %v3175, %v3171
  %v3177 = vmul.f32 %v3152, %v3176
  %v3178 = vmin.f32 %v3177, 1.0
  %v3179 = vmax.f32 %v3178, -1.0
  %v3180 = vadd.f32 %v659, 1.0
  %v3181 = vadd.f32 %v699, 1.0
  %v3182 = vadd.f32 %v739, 1.0
  %v3183 = vadd.f32 %v779, 1.0
  %v3184 = vadd.f32 %v819, 1.0
  %v3185 = vadd.f32 %v859, 1.0
  %v3186 = vadd.f32 %v899, 1.0
  %v3187 = vadd.f32 %v939, 1.0
  %v3188 = vadd.f32 %v979, 1.0
  %v3189 = vadd.f32 %v1019, 1.0
  %v3190 = vadd.f32 %v1059, 1.0
  %v3191 = vadd.f32 %v1099, 1.0
  %v3192 = vadd.f32 %v1139, 1.0
  %v3193 = vadd.f32 %v1179, 1.0
  %v3194 = vadd.f32 %v1219, 1.0
  %v3195 = vadd.f32 %v1259, 1.0
  %v3196 = vadd.f32 %v1299, 1.0
  %v3197 = vadd.f32 %v1339, 1.0
  %v3198 = vadd.f32 %v1379, 1.0
  %v3199 = vadd.f32 %v1419, 1.0
  %v3200 = vadd.f32 %v1459, 1.0
  %v3201 = vadd.f32 %v1499, 1.0
  %v3202 = vadd.f32 %v1539, 1.0
  %v3203 = vadd.f32 %v1579, 1.0
  %v3204 = vadd.f32 %v1619, 1.0
  %v3205 = vadd.f32 %v1659, 1.0
  %v3206 = vadd.f32 %v1699, 1.0
  %v3207 = vadd.f32 %v1739, 1.0
  %v3208 = vadd.f32 %v1779, 1.0
  %v3209 = vadd.f32 %v1819, 1.0
  %v3210 = vadd.f32 %v1859, 1.0
  %v3211 = vadd.f32 %v1899, 1.0
  %v3212 = vadd.f32 %v1939, 1.0
  %v3213 = vadd.f32 %v1979, 1.0
  %v3214 = vadd.f32 %v2019, 1.0
  %v3215 = vadd.f32 %v2059, 1.0
  %v3216 = vadd.f32 %v2099, 1.0
  %v3217 = vadd.f32 %v2139, 1.0
  %v3218 = vadd.f32 %v2179, 1.0
  %v3219 = vadd.f32 %v2219, 1.0
  %v3220 = vadd.f32 %v2259, 1.0
  %v3221 = vadd.f32 %v2299, 1.0
  %v3222 = vadd.f32 %v2339, 1.0
  %v3223 = vadd.f32 %v2379, 1.0
  %v3224 = vadd.f32 %v2419, 1.0
  %v3225 = vadd.f32 %v2459, 1.0
  %v3226 = vadd.f32 %v2499, 1.0
  %v3227 = vadd.f32 %v2539, 1.0
  %v3228 = vadd.f32 %v2579, 1.0
  %v3229 = vadd.f32 %v2619, 1.0
  %v3230 = vadd.f32 %v2659, 1.0
  %v3231 = vadd.f32 %v2699, 1.0
  %v3232 = vadd.f32 %v2739, 1.0
  %v3233 = vadd.f32 %v2779, 1.0
  %v3234 = vadd.f32 %v2819, 1.0
  %v3235 = vadd.f32 %v2859, 1.0
  %v3236 = vadd.f32 %v2899, 1.0
  %v3237 = vadd.f32 %v2939, 1.0
  %v3238 = vadd.f32 %v2979, 1.0
  %v3239 = vadd.f32 %v3019, 1.0
  %v3240 = vadd.f32 %v3059, 1.0
  %v3241 = vadd.f32 %v3099, 1.0
  %v3242 = vadd.f32 %v3139, 1.0
  %v3243 = vadd.f32 %v3179, 1.0
  %v3244 = vmul.f32 %v492, %v3180
  %v3245 = vmul.f32 %v493, %v3181
  %v3246 = vmul.f32 %v494, %v3182
  %v3247 = vmul.f32 %v495, %v3183
  %v3248 = vmul.f32 %v496, %v3184
  %v3249 = vmul.f32 %v497, %v3185
  %v3250 = vmul.f32 %v498, %v3186
  %v3251 = vmul.f32 %v499, %v3187
  %v3252 = vmul.f32 %v500, %v3188
  %v3253 = vmul.f32 %v501, %v3189
  %v3254 = vmul.f32 %v502, %v3190
  %v3255 = vmul.f32 %v503, %v3191
  %v3256 = vmul.f32 %v504, %v3192
  %v3257 = vmul.f32 %v505, %v3193
  %v3258 = vmul.f32 %v506, %v3194
  %v3259 = vmul.f32 %v507, %v3195
  %v3260 = vmul.f32 %v508, %v3196
  %v3261 = vmul.f32 %v509, %v3197
  %v3262 = vmul.f32 %v510, %v3198
  %v3263 = vmul.f32 %v511, %v3199
  %v3264 = vmul.f32 %v512, %v3200
  %v3265 = vmul.f32 %v513, %v3201
  %v3266 = vmul.f32 %v514, %v3202
  %v3267 = vmul.f32 %v515, %v3203
  %v3268 = vmul.f32 %v516, %v3204
  %v3269 = vmul.f32 %v517, %v3205
  %v3270 = vmul.f32 %v518, %v3206
  %v3271 = vmul.f32 %v519, %v3207
  %v3272 = vmul.f32 %v520, %v3208
  %v3273 = vmul.f32 %v521, %v3209
  %v3274 = vmul.f32 %v522, %v3210
  %v3275 = vmul.f32 %v523, %v3211
  %v3276 = vmul.f32 %v524, %v3212
  %v3277 = vmul.f32 %v525, %v3213
  %v3278 = vmul.f32 %v526, %v3214
  %v3279 = vmul.f32 %v527, %v3215
  %v3280 = vmul.f32 %v528, %v3216
  %v3281 = vmul.f32 %v529, %v3217
  %v3282 = vmul.f32 %v530, %v3218
  %v3283 = vmul.f32 %v531, %v3219
  %v3284 = vmul.f32 %v532, %v3220
  %v3285 = vmul.f32 %v533, %v3221
  %v3286 = vmul.f32 %v534, %v3222
  %v3287 = vmul.f32 %v535, %v3223
  %v3288 = vmul.f32 %v536, %v3224
  %v3289 = vmul.f32 %v537, %v3225
  %v3290 = vmul.f32 %v538, %v3226
  %v3291 = vmul.f32 %v539, %v3227
  %v3292 = vmul.f32 %v540, %v3228
  %v3293 = vmul.f32 %v541, %v3229
  %v3294 = vmul.f32 %v542, %v3230
  %v3295 = vmul.f32 %v543, %v3231
  %v3296 = vmul.f32 %v544, %v3232
  %v3297 = vmul.f32 %v545, %v3233
  %v3298 = vmul.f32 %v546, %v3234
  %v3299 = vmul.f32 %v547, %v3235
  %v3300 = vmul.f32 %v548, %v3236
  %v3301 = vmul.f32 %v549, %v3237
  %v3302 = vmul.f32 %v550, %v3238
  %v3303 = vmul.f32 %v551, %v3239
  %v3304 = vmul.f32 %v552, %v3240
  %v3305 = vmul.f32 %v553, %v3241
  %v3306 = vmul.f32 %v554, %v3242
  %v3307 = vmul.f32 %v555, %v3243
  %v3308 = vld [vmem:[%s3] sm:$0xff]
  %v3309 = vld [vmem:[%s3 + $0x8] sm:$0xff]
  %v3310 = vld [vmem:[%s3 + $0x10] sm:$0xff]
  %v3311 = vld [vmem:[%s3 + $0x18] sm:$0xff]
  %v3312 = vld [vmem:[%s3 + $0x20] sm:$0xff]
  %v3313 = vld [vmem:[%s3 + $0x28] sm:$0xff]
  %v3314 = vld [vmem:[%s3 + $0x30] sm:$0xff]
  %v3315 = vld [vmem:[%s3 + $0x38] sm:$0xff]
  %v3316 = vld [vmem:[%s3 + $0x40] sm:$0xff]
  %v3317 = vld [vmem:[%s3 + $0x48] sm:$0xff]
  %v3318 = vld [vmem:[%s3 + $0x50] sm:$0xff]
  %v3319 = vld [vmem:[%s3 + $0x58] sm:$0xff]
  %v3320 = vld [vmem:[%s3 + $0x60] sm:$0xff]
  %v3321 = vld [vmem:[%s3 + $0x68] sm:$0xff]
  %v3322 = vld [vmem:[%s3 + $0x70] sm:$0xff]
  %v3323 = vld [vmem:[%s3 + $0x78] sm:$0xff]
  %v3324 = vld [vmem:[%s4] sm:$0x1]
  %v3326 = vperm.slane %v3324, 0
  %3328 = vmatpush.msra.mxu0 %v3323
  %3329 = vmatpush.msra.mxu0 %v3322
  %3330 = vmatpush.msra.mxu0 %v3321
  %3331 = vmatpush.msra.mxu0 %v3320
  %3332 = vmatpush.msra.mxu0 %v3319
  %3333 = vmatpush.msra.mxu0 %v3318
  %3334 = vmatpush.msra.mxu0 %v3317
  %3335 = vmatpush.msra.mxu0 %v3316
  %3336 = vmatpush.msra.mxu0 %v3315
  %3337 = vmatpush.msra.mxu0 %v3314
  %3338 = vmatpush.msra.mxu0 %v3313
  %3339 = vmatpush.msra.mxu0 %v3312
  %3340 = vmatpush.msra.mxu0 %v3311
  %3341 = vmatpush.msra.mxu0 %v3310
  %3342 = vmatpush.msra.mxu0 %v3309
  %3343 = vmatpush.msra.mxu0 %v3308
  %3344 = vmatmul.f32.gmra.mxu0 %v3244
  %v3345 = vpop.f32.mrf.mxu0
  %v3346 = vadd.f32 %v3326, %v3345
  %3347 = vmatmul.f32.gmra.mxu0 %v3245
  %v3348 = vpop.f32.mrf.mxu0
  %v3349 = vadd.f32 %v3326, %v3348
  %3350 = vmatmul.f32.gmra.mxu0 %v3246
  %v3351 = vpop.f32.mrf.mxu0
  %v3352 = vadd.f32 %v3326, %v3351
  %3353 = vmatmul.f32.gmra.mxu0 %v3247
  %v3354 = vpop.f32.mrf.mxu0
  %v3355 = vadd.f32 %v3326, %v3354
  %3356 = vmatmul.f32.gmra.mxu0 %v3248
  %v3357 = vpop.f32.mrf.mxu0
  %v3358 = vadd.f32 %v3326, %v3357
  %3359 = vmatmul.f32.gmra.mxu0 %v3249
  %v3360 = vpop.f32.mrf.mxu0
  %v3361 = vadd.f32 %v3326, %v3360
  %3362 = vmatmul.f32.gmra.mxu0 %v3250
  %v3363 = vpop.f32.mrf.mxu0
  %v3364 = vadd.f32 %v3326, %v3363
  %3365 = vmatmul.f32.gmra.mxu0 %v3251
  %v3366 = vpop.f32.mrf.mxu0
  %v3367 = vadd.f32 %v3326, %v3366
  %3368 = vmatmul.f32.gmra.mxu0 %v3252
  %v3369 = vpop.f32.mrf.mxu0
  %v3370 = vadd.f32 %v3326, %v3369
  %3371 = vmatmul.f32.gmra.mxu0 %v3253
  %v3372 = vpop.f32.mrf.mxu0
  %v3373 = vadd.f32 %v3326, %v3372
  %3374 = vmatmul.f32.gmra.mxu0 %v3254
  %v3375 = vpop.f32.mrf.mxu0
  %v3376 = vadd.f32 %v3326, %v3375
  %3377 = vmatmul.f32.gmra.mxu0 %v3255
  %v3378 = vpop.f32.mrf.mxu0
  %v3379 = vadd.f32 %v3326, %v3378
  %3380 = vmatmul.f32.gmra.mxu0 %v3256
  %v3381 = vpop.f32.mrf.mxu0
  %v3382 = vadd.f32 %v3326, %v3381
  %3383 = vmatmul.f32.gmra.mxu0 %v3257
  %v3384 = vpop.f32.mrf.mxu0
  %v3385 = vadd.f32 %v3326, %v3384
  %3386 = vmatmul.f32.gmra.mxu0 %v3258
  %v3387 = vpop.f32.mrf.mxu0
  %v3388 = vadd.f32 %v3326, %v3387
  %3389 = vmatmul.f32.gmra.mxu0 %v3259
  %v3390 = vpop.f32.mrf.mxu0
  %v3391 = vadd.f32 %v3326, %v3390
  %3392 = vmatmul.f32.gmra.mxu0 %v3260
  %v3393 = vpop.f32.mrf.mxu0
  %v3394 = vadd.f32 %v3326, %v3393
  %3395 = vmatmul.f32.gmra.mxu0 %v3261
  %v3396 = vpop.f32.mrf.mxu0
  %v3397 = vadd.f32 %v3326, %v3396
  %3398 = vmatmul.f32.gmra.mxu0 %v3262
  %v3399 = vpop.f32.mrf.mxu0
  %v3400 = vadd.f32 %v3326, %v3399
  %3401 = vmatmul.f32.gmra.mxu0 %v3263
  %v3402 = vpop.f32.mrf.mxu0
  %v3403 = vadd.f32 %v3326, %v3402
  %3404 = vmatmul.f32.gmra.mxu0 %v3264
  %v3405 = vpop.f32.mrf.mxu0
  %v3406 = vadd.f32 %v3326, %v3405
  %3407 = vmatmul.f32.gmra.mxu0 %v3265
  %v3408 = vpop.f32.mrf.mxu0
  %v3409 = vadd.f32 %v3326, %v3408
  %3410 = vmatmul.f32.gmra.mxu0 %v3266
  %v3411 = vpop.f32.mrf.mxu0
  %v3412 = vadd.f32 %v3326, %v3411
  %3413 = vmatmul.f32.gmra.mxu0 %v3267
  %v3414 = vpop.f32.mrf.mxu0
  %v3415 = vadd.f32 %v3326, %v3414
  %3416 = vmatmul.f32.gmra.mxu0 %v3268
  %v3417 = vpop.f32.mrf.mxu0
  %v3418 = vadd.f32 %v3326, %v3417
  %3419 = vmatmul.f32.gmra.mxu0 %v3269
  %v3420 = vpop.f32.mrf.mxu0
  %v3421 = vadd.f32 %v3326, %v3420
  %3422 = vmatmul.f32.gmra.mxu0 %v3270
  %v3423 = vpop.f32.mrf.mxu0
  %v3424 = vadd.f32 %v3326, %v3423
  %3425 = vmatmul.f32.gmra.mxu0 %v3271
  %v3426 = vpop.f32.mrf.mxu0
  %v3427 = vadd.f32 %v3326, %v3426
  %3428 = vmatmul.f32.gmra.mxu0 %v3272
  %v3429 = vpop.f32.mrf.mxu0
  %v3430 = vadd.f32 %v3326, %v3429
  %3431 = vmatmul.f32.gmra.mxu0 %v3273
  %v3432 = vpop.f32.mrf.mxu0
  %v3433 = vadd.f32 %v3326, %v3432
  %3434 = vmatmul.f32.gmra.mxu0 %v3274
  %v3435 = vpop.f32.mrf.mxu0
  %v3436 = vadd.f32 %v3326, %v3435
  %3437 = vmatmul.f32.gmra.mxu0 %v3275
  %v3438 = vpop.f32.mrf.mxu0
  %v3439 = vadd.f32 %v3326, %v3438
  %3440 = vmatmul.f32.gmra.mxu0 %v3276
  %v3441 = vpop.f32.mrf.mxu0
  %v3442 = vadd.f32 %v3326, %v3441
  %3443 = vmatmul.f32.gmra.mxu0 %v3277
  %v3444 = vpop.f32.mrf.mxu0
  %v3445 = vadd.f32 %v3326, %v3444
  %3446 = vmatmul.f32.gmra.mxu0 %v3278
  %v3447 = vpop.f32.mrf.mxu0
  %v3448 = vadd.f32 %v3326, %v3447
  %3449 = vmatmul.f32.gmra.mxu0 %v3279
  %v3450 = vpop.f32.mrf.mxu0
  %v3451 = vadd.f32 %v3326, %v3450
  %3452 = vmatmul.f32.gmra.mxu0 %v3280
  %v3453 = vpop.f32.mrf.mxu0
  %v3454 = vadd.f32 %v3326, %v3453
  %3455 = vmatmul.f32.gmra.mxu0 %v3281
  %v3456 = vpop.f32.mrf.mxu0
  %v3457 = vadd.f32 %v3326, %v3456
  %3458 = vmatmul.f32.gmra.mxu0 %v3282
  %v3459 = vpop.f32.mrf.mxu0
  %v3460 = vadd.f32 %v3326, %v3459
  %3461 = vmatmul.f32.gmra.mxu0 %v3283
  %v3462 = vpop.f32.mrf.mxu0
  %v3463 = vadd.f32 %v3326, %v3462
  %3464 = vmatmul.f32.gmra.mxu0 %v3284
  %v3465 = vpop.f32.mrf.mxu0
  %v3466 = vadd.f32 %v3326, %v3465
  %3467 = vmatmul.f32.gmra.mxu0 %v3285
  %v3468 = vpop.f32.mrf.mxu0
  %v3469 = vadd.f32 %v3326, %v3468
  %3470 = vmatmul.f32.gmra.mxu0 %v3286
  %v3471 = vpop.f32.mrf.mxu0
  %v3472 = vadd.f32 %v3326, %v3471
  %3473 = vmatmul.f32.gmra.mxu0 %v3287
  %v3474 = vpop.f32.mrf.mxu0
  %v3475 = vadd.f32 %v3326, %v3474
  %3476 = vmatmul.f32.gmra.mxu0 %v3288
  %v3477 = vpop.f32.mrf.mxu0
  %v3478 = vadd.f32 %v3326, %v3477
  %3479 = vmatmul.f32.gmra.mxu0 %v3289
  %v3480 = vpop.f32.mrf.mxu0
  %v3481 = vadd.f32 %v3326, %v3480
  %3482 = vmatmul.f32.gmra.mxu0 %v3290
  %v3483 = vpop.f32.mrf.mxu0
  %v3484 = vadd.f32 %v3326, %v3483
  %3485 = vmatmul.f32.gmra.mxu0 %v3291
  %v3486 = vpop.f32.mrf.mxu0
  %v3487 = vadd.f32 %v3326, %v3486
  %3488 = vmatmul.f32.gmra.mxu0 %v3292
  %v3489 = vpop.f32.mrf.mxu0
  %v3490 = vadd.f32 %v3326, %v3489
  %3491 = vmatmul.f32.gmra.mxu0 %v3293
  %v3492 = vpop.f32.mrf.mxu0
  %v3493 = vadd.f32 %v3326, %v3492
  %3494 = vmatmul.f32.gmra.mxu0 %v3294
  %v3495 = vpop.f32.mrf.mxu0
  %v3496 = vadd.f32 %v3326, %v3495
  %3497 = vmatmul.f32.gmra.mxu0 %v3295
  %v3498 = vpop.f32.mrf.mxu0
  %v3499 = vadd.f32 %v3326, %v3498
  %3500 = vmatmul.f32.gmra.mxu0 %v3296
  %v3501 = vpop.f32.mrf.mxu0
  %v3502 = vadd.f32 %v3326, %v3501
  %3503 = vmatmul.f32.gmra.mxu0 %v3297
  %v3504 = vpop.f32.mrf.mxu0
  %v3505 = vadd.f32 %v3326, %v3504
  %3506 = vmatmul.f32.gmra.mxu0 %v3298
  %v3507 = vpop.f32.mrf.mxu0
  %v3508 = vadd.f32 %v3326, %v3507
  %3509 = vmatmul.f32.gmra.mxu0 %v3299
  %v3510 = vpop.f32.mrf.mxu0
  %v3511 = vadd.f32 %v3326, %v3510
  %3512 = vmatmul.f32.gmra.mxu0 %v3300
  %v3513 = vpop.f32.mrf.mxu0
  %v3514 = vadd.f32 %v3326, %v3513
  %3515 = vmatmul.f32.gmra.mxu0 %v3301
  %v3516 = vpop.f32.mrf.mxu0
  %v3517 = vadd.f32 %v3326, %v3516
  %3518 = vmatmul.f32.gmra.mxu0 %v3302
  %v3519 = vpop.f32.mrf.mxu0
  %v3520 = vadd.f32 %v3326, %v3519
  %3521 = vmatmul.f32.gmra.mxu0 %v3303
  %v3522 = vpop.f32.mrf.mxu0
  %v3523 = vadd.f32 %v3326, %v3522
  %3524 = vmatmul.f32.gmra.mxu0 %v3304
  %v3525 = vpop.f32.mrf.mxu0
  %v3526 = vadd.f32 %v3326, %v3525
  %3527 = vmatmul.f32.gmra.mxu0 %v3305
  %v3528 = vpop.f32.mrf.mxu0
  %v3529 = vadd.f32 %v3326, %v3528
  %3530 = vmatmul.f32.gmra.mxu0 %v3306
  %v3531 = vpop.f32.mrf.mxu0
  %v3532 = vadd.f32 %v3326, %v3531
  %3533 = vmatmul.f32.gmra.mxu0 %v3307
  %v3534 = vpop.f32.mrf.mxu0
  %v3535 = vadd.f32 %v3326, %v3534
  %3536 = vdwg.mxu0
  %3537 = vst.msk [vmem:[%s5] sm:$0xff] %vm90, %v3346
  %3538 = vst.msk [vmem:[%s5 + $0x8] sm:$0xff] %vm90, %v3349
  %3539 = vst.msk [vmem:[%s5 + $0x10] sm:$0xff] %vm90, %v3352
  %3540 = vst.msk [vmem:[%s5 + $0x18] sm:$0xff] %vm90, %v3355
  %3541 = vst.msk [vmem:[%s5 + $0x20] sm:$0xff] %vm90, %v3358
  %3542 = vst.msk [vmem:[%s5 + $0x28] sm:$0xff] %vm90, %v3361
  %3543 = vst.msk [vmem:[%s5 + $0x30] sm:$0xff] %vm90, %v3364
  %3544 = vst.msk [vmem:[%s5 + $0x38] sm:$0xff] %vm90, %v3367
  %3545 = vst.msk [vmem:[%s5 + $0x40] sm:$0xff] %vm90, %v3370
  %3546 = vst.msk [vmem:[%s5 + $0x48] sm:$0xff] %vm90, %v3373
  %3547 = vst.msk [vmem:[%s5 + $0x50] sm:$0xff] %vm90, %v3376
  %3548 = vst.msk [vmem:[%s5 + $0x58] sm:$0xff] %vm90, %v3379
  %3549 = vst.msk [vmem:[%s5 + $0x60] sm:$0xff] %vm90, %v3382
  %3550 = vst.msk [vmem:[%s5 + $0x68] sm:$0xff] %vm90, %v3385
  %3551 = vst.msk [vmem:[%s5 + $0x70] sm:$0xff] %vm90, %v3388
  %3552 = vst.msk [vmem:[%s5 + $0x78] sm:$0xff] %vm90, %v3391
  %3553 = vst.msk [vmem:[%s5 + $0x80] sm:$0xff] %vm90, %v3394
  %3554 = vst.msk [vmem:[%s5 + $0x88] sm:$0xff] %vm90, %v3397
  %3555 = vst.msk [vmem:[%s5 + $0x90] sm:$0xff] %vm90, %v3400
  %3556 = vst.msk [vmem:[%s5 + $0x98] sm:$0xff] %vm90, %v3403
  %3557 = vst.msk [vmem:[%s5 + $0xa0] sm:$0xff] %vm90, %v3406
  %3558 = vst.msk [vmem:[%s5 + $0xa8] sm:$0xff] %vm90, %v3409
  %3559 = vst.msk [vmem:[%s5 + $0xb0] sm:$0xff] %vm90, %v3412
  %3560 = vst.msk [vmem:[%s5 + $0xb8] sm:$0xff] %vm90, %v3415
  %3561 = vst.msk [vmem:[%s5 + $0xc0] sm:$0xff] %vm90, %v3418
  %3562 = vst.msk [vmem:[%s5 + $0xc8] sm:$0xff] %vm90, %v3421
  %3563 = vst.msk [vmem:[%s5 + $0xd0] sm:$0xff] %vm90, %v3424
  %3564 = vst.msk [vmem:[%s5 + $0xd8] sm:$0xff] %vm90, %v3427
  %3565 = vst.msk [vmem:[%s5 + $0xe0] sm:$0xff] %vm90, %v3430
  %3566 = vst.msk [vmem:[%s5 + $0xe8] sm:$0xff] %vm90, %v3433
  %3567 = vst.msk [vmem:[%s5 + $0xf0] sm:$0xff] %vm90, %v3436
  %3568 = vst.msk [vmem:[%s5 + $0xf8] sm:$0xff] %vm90, %v3439
  %3569 = vst.msk [vmem:[%s5 + $0x100] sm:$0xff] %vm90, %v3442
  %3570 = vst.msk [vmem:[%s5 + $0x108] sm:$0xff] %vm90, %v3445
  %3571 = vst.msk [vmem:[%s5 + $0x110] sm:$0xff] %vm90, %v3448
  %3572 = vst.msk [vmem:[%s5 + $0x118] sm:$0xff] %vm90, %v3451
  %3573 = vst.msk [vmem:[%s5 + $0x120] sm:$0xff] %vm90, %v3454
  %3574 = vst.msk [vmem:[%s5 + $0x128] sm:$0xff] %vm90, %v3457
  %3575 = vst.msk [vmem:[%s5 + $0x130] sm:$0xff] %vm90, %v3460
  %3576 = vst.msk [vmem:[%s5 + $0x138] sm:$0xff] %vm90, %v3463
  %3577 = vst.msk [vmem:[%s5 + $0x140] sm:$0xff] %vm90, %v3466
  %3578 = vst.msk [vmem:[%s5 + $0x148] sm:$0xff] %vm90, %v3469
  %3579 = vst.msk [vmem:[%s5 + $0x150] sm:$0xff] %vm90, %v3472
  %3580 = vst.msk [vmem:[%s5 + $0x158] sm:$0xff] %vm90, %v3475
  %3581 = vst.msk [vmem:[%s5 + $0x160] sm:$0xff] %vm90, %v3478
  %3582 = vst.msk [vmem:[%s5 + $0x168] sm:$0xff] %vm90, %v3481
  %3583 = vst.msk [vmem:[%s5 + $0x170] sm:$0xff] %vm90, %v3484
  %3584 = vst.msk [vmem:[%s5 + $0x178] sm:$0xff] %vm90, %v3487
  %3585 = vst.msk [vmem:[%s5 + $0x180] sm:$0xff] %vm90, %v3490
  %3586 = vst.msk [vmem:[%s5 + $0x188] sm:$0xff] %vm90, %v3493
  %3587 = vst.msk [vmem:[%s5 + $0x190] sm:$0xff] %vm90, %v3496
  %3588 = vst.msk [vmem:[%s5 + $0x198] sm:$0xff] %vm90, %v3499
  %3589 = vst.msk [vmem:[%s5 + $0x1a0] sm:$0xff] %vm90, %v3502
  %3590 = vst.msk [vmem:[%s5 + $0x1a8] sm:$0xff] %vm90, %v3505
  %3591 = vst.msk [vmem:[%s5 + $0x1b0] sm:$0xff] %vm90, %v3508
  %3592 = vst.msk [vmem:[%s5 + $0x1b8] sm:$0xff] %vm90, %v3511
  %3593 = vst.msk [vmem:[%s5 + $0x1c0] sm:$0xff] %vm90, %v3514
  %3594 = vst.msk [vmem:[%s5 + $0x1c8] sm:$0xff] %vm90, %v3517
  %3595 = vst.msk [vmem:[%s5 + $0x1d0] sm:$0xff] %vm90, %v3520
  %3596 = vst.msk [vmem:[%s5 + $0x1d8] sm:$0xff] %vm90, %v3523
  %3597 = vst.msk [vmem:[%s5 + $0x1e0] sm:$0xff] %vm90, %v3526
  %3598 = vst.msk [vmem:[%s5 + $0x1e8] sm:$0xff] %vm90, %v3529
  %3599 = vst.msk [vmem:[%s5 + $0x1f0] sm:$0xff] %vm90, %v3532
  %3600 = vst.msk [vmem:[%s5 + $0x1f8] sm:$0xff] %vm90, %v3535
  // Predicated region
  $region22: #{mae_decoder_forward.3} parent=0 // pred_check
    _
  $region23: #{mae_decoder_forward.3} parent=0 // pred_check_branch
    %3602 = sbr.rel (0) target = $region25
  $region24: #{mae_decoder_forward.3} parent=0 // pred_region
    _
  $region25: #{mae_decoder_forward.3} parent=0 // pred_fallthru
    _
  // Predicated region
  $region26: #{mae_decoder_forward.3} parent=0 // pred_check
    _
  $region27: #{mae_decoder_forward.3} parent=0 // pred_check_branch
    %3604 = sbr.rel (0) target = $region29
  $region28: #{mae_decoder_forward.3} parent=0 // pred_region
    _
  $region29: #{mae_decoder_forward.3} parent=0 // pred_fallthru
    _

</llo_original>
